<compile_context>
chip_gen: v7x
topology: tpu7x:2x2x1
jax: 0.10.0
libtpu: 0.0.40
codegen_flags: <defaults>
</compile_context>

<pallas_src>
import functools

import jax
import jax.numpy as jnp
from jax.experimental import pallas as pl
from jax.experimental.pallas import tpu as pltpu

_MIB = 1024 * 1024


# ----------------------------------------------------------------------------- planning helpers

def _round_up(x, m):
    return (x + m - 1) // m * m


_VMEM_CAP = None


def _vmem_capacity():
    """Physical VMEM of the local TPU generation (64 MiB on v7x, 128 MiB on v5e/v6e)."""
    global _VMEM_CAP
    if _VMEM_CAP is None:
        cap = None
        try:
            info = pltpu.get_tpu_info()
            for attr in ("vmem_capacity_bytes", "vmem_size_bytes", "vmem_bytes"):
                v = getattr(info, attr, None)
                if v:
                    cap = int(v)
                    break
        except Exception:
            cap = None
        _VMEM_CAP = cap if cap else 64 * _MIB  # conservative default == v7x
    return _VMEM_CAP


_BUF1_OK = None


def _make_const_spec(shape, force_buffered=False):
    """BlockSpec for a grid-invariant (weight/bias) operand; single-buffered when supported."""
    idx = lambda i: tuple(0 for _ in shape)
    if force_buffered or _single_buffer_ok():
        try:
            mode = pl.Buffered(buffer_count=1)
        except TypeError:
            mode = pl.Buffered(1)
        return pl.BlockSpec(shape, idx, pipeline_mode=mode)
    return pl.BlockSpec(shape, idx)


def _single_buffer_ok():
    """Probe once whether BlockSpec(pipeline_mode=pl.Buffered(1)) compiles+runs on this install."""
    global _BUF1_OK
    if _BUF1_OK is None:
        try:
            def _k(x_ref, w_ref, o_ref):
                o_ref[...] = x_ref[...] + w_ref[...]

            probe = pl.pallas_call(
                _k,
                out_shape=jax.ShapeDtypeStruct((16, 128), jnp.float32),
                grid=(2,),
                in_specs=[pl.BlockSpec((8, 128), lambda i: (i, 0)),
                          _make_const_spec((8, 128), force_buffered=True)],
                out_specs=pl.BlockSpec((8, 128), lambda i: (i, 0)),
            )
            jax.block_until_ready(
                probe(jnp.zeros((16, 128), jnp.float32), jnp.zeros((8, 128), jnp.float32)))
            _BUF1_OK = True
        except Exception:
            _BUF1_OK = False
    return _BUF1_OK


def _plan_rows(m, io_row_bytes, fixed_bytes, live_row_bytes=0, *, min_steps=4):
    """Pick (row_tile, padded_rows, vmem_limit_bytes) for a 1-D row grid.

    io_row_bytes:   bytes/row of row-tiled inputs+outputs (double-buffered by the pipeline)
    fixed_bytes:    bytes of grid-invariant weights/biases (x2 if single-buffering unsupported)
    live_row_bytes: bytes/row of in-kernel intermediates that live in VMEM/registers
    """
    cap = _vmem_capacity()
    budget = max(cap - 16 * _MIB, 32 * _MIB)          # keep headroom for internal scratch/spills
    wbuf = 1 if _single_buffer_ok() else 2
    fixed = fixed_bytes * wbuf
    per_tile_row = 2 * io_row_bytes + live_row_bytes
    tile_cap = 512 if cap <= 64 * _MIB else 1024      # smaller row tiles on v7x (64 MiB VMEM)
    tm_fit = max(8, ((budget - fixed) // max(per_tile_row, 1)) // 8 * 8)
    tm_steps = _round_up(pl.cdiv(m, min_steps), 8)    # keep >= min_steps grid steps
    tm = max(8, min(tile_cap, tm_fit, tm_steps, _round_up(m, 8)))
    m_pad = _round_up(m, tm)
    vmem_limit = int(min(budget, max(32 * _MIB, fixed + per_tile_row * tm + 2 * _MIB)))
    return tm, m_pad, vmem_limit


def _cparams(vmem_limit):
    # Row axis is embarrassingly parallel -> v7x megacore can split the grid (no-op on v5e/v6e).
    return pltpu.CompilerParams(
        dimension_semantics=("parallel",),
        vmem_limit_bytes=int(vmem_limit),
    )


def _pad_rows(x, m_pad):
    m = x.shape[0]
    return x if m == m_pad else jnp.pad(x, ((0, m_pad - m), (0, 0)))


def _unpad_rows(x, m):
    return x if x.shape[0] == m else x[:m]


def _gelu_tanh(x):
    # TODO(synk): tanh-approximate GELU; nn.GELU default is exact erf.
    c = 0.7978845608028654  # sqrt(2/pi)
    return 0.5 * x * (1.0 + jnp.tanh(c * (x + 0.044715 * x * x * x)))


# ----------------------------------------------------------------------------- Pallas kernels

def _matmul_bias_kernel(x_ref, w_ref, b_ref, o_ref):
    x = x_ref[...].astype(jnp.bfloat16)   # cast inside the kernel (no extra XLA pass over HBM)
    o_ref[...] = jnp.dot(x, w_ref[...], preferred_element_type=jnp.float32) + b_ref[...]


def matmul_bias(x, w, b):
    """out = x @ w + b.  x f32 (M, K), w bf16 (K, N), b f32 (1, N) -> f32 (M, N)."""
    M, K = x.shape
    N = w.shape[1]
    tm, m_pad, vlim = _plan_rows(M, io_row_bytes=4 * (K + N),
                                 fixed_bytes=w.size * 2 + b.size * 4,
                                 live_row_bytes=2 * K)
    out = pl.pallas_call(
        _matmul_bias_kernel,
        out_shape=jax.ShapeDtypeStruct((m_pad, N), jnp.float32),
        grid=(m_pad // tm,),
        in_specs=[pl.BlockSpec((tm, K), lambda i: (i, 0)),
                  _make_const_spec((K, N)),
                  _make_const_spec((1, N))],
        out_specs=pl.BlockSpec((tm, N), lambda i: (i, 0)),
        compiler_params=_cparams(vlim),
    )(_pad_rows(x, m_pad), w, b)
    return _unpad_rows(out, M)


def _layernorm_kernel(x_ref, g_ref, b_ref, o_ref, *, eps):
    x = x_ref[...]
    mu = jnp.mean(x, axis=-1, keepdims=True)
    xc = x - mu
    var = jnp.mean(xc * xc, axis=-1, keepdims=True)
    o_ref[...] = xc * jax.lax.rsqrt(var + eps) * g_ref[...] + b_ref[...]


def layernorm(x, gamma, beta, eps=1e-6):
    """LayerNorm over last dim; x:(M,C) f32. eps=1e-6 matches partial(nn.LayerNorm, eps=1e-06)."""
    M, C = x.shape
    tm, m_pad, vlim = _plan_rows(M, io_row_bytes=8 * C, fixed_bytes=8 * C)
    out = pl.pallas_call(
        functools.partial(_layernorm_kernel, eps=eps),
        out_shape=jax.ShapeDtypeStruct((m_pad, C), jnp.float32),
        grid=(m_pad // tm,),
        in_specs=[pl.BlockSpec((tm, C), lambda i: (i, 0)),
                  _make_const_spec((1, C)),
                  _make_const_spec((1, C))],
        out_specs=pl.BlockSpec((tm, C), lambda i: (i, 0)),
        compiler_params=_cparams(vlim),
    )(_pad_rows(x, m_pad), gamma, beta)
    return _unpad_rows(out, M)


def _spectral_kernel(xr_ref, xi_ref, w1r_ref, w1i_ref, b1r_ref, b1i_ref,
                     w2r_ref, w2i_ref, b2r_ref, b2i_ref, yr_ref, yi_ref):
    f32 = jnp.float32
    xr, xi = xr_ref[...], xi_ref[...]
    # complex layer 1 (+bias) then ReLU on real/imag parts — intermediate never leaves VMEM
    hr = (jnp.dot(xr, w1r_ref[...], preferred_element_type=f32)
          - jnp.dot(xi, w1i_ref[...], preferred_element_type=f32) + b1r_ref[...])
    hi = (jnp.dot(xr, w1i_ref[...], preferred_element_type=f32)
          + jnp.dot(xi, w1r_ref[...], preferred_element_type=f32) + b1i_ref[...])
    hr = jnp.maximum(hr, 0.0)
    hi = jnp.maximum(hi, 0.0)
    # complex layer 2 (+bias)
    yr_ref[...] = (jnp.dot(hr, w2r_ref[...], preferred_element_type=f32)
                   - jnp.dot(hi, w2i_ref[...], preferred_element_type=f32) + b2r_ref[...])
    yi_ref[...] = (jnp.dot(hr, w2i_ref[...], preferred_element_type=f32)
                   + jnp.dot(hi, w2r_ref[...], preferred_element_type=f32) + b2i_ref[...])


def spectral_mlp2(xr, xi, p):
    """Fused 2-layer block-diagonal complex MLP; real/imag as separate refs, f32 operands."""
    M, C = xr.shape
    fixed = 4 * (C * C * 4) + 4 * (C * 4)
    tm, m_pad, vlim = _plan_rows(M, io_row_bytes=16 * C, fixed_bytes=fixed,
                                 live_row_bytes=8 * C)
    yr, yi = pl.pallas_call(
        _spectral_kernel,
        out_shape=(jax.ShapeDtypeStruct((m_pad, C), jnp.float32),
                   jax.ShapeDtypeStruct((m_pad, C), jnp.float32)),
        grid=(m_pad // tm,),
        in_specs=[pl.BlockSpec((tm, C), lambda i: (i, 0)),
                  pl.BlockSpec((tm, C), lambda i: (i, 0)),
                  _make_const_spec((C, C)), _make_const_spec((C, C)),
                  _make_const_spec((1, C)), _make_const_spec((1, C)),
                  _make_const_spec((C, C)), _make_const_spec((C, C)),
                  _make_const_spec((1, C)), _make_const_spec((1, C))],
        out_specs=(pl.BlockSpec((tm, C), lambda i: (i, 0)),
                   pl.BlockSpec((tm, C), lambda i: (i, 0))),
        compiler_params=_cparams(vlim),
    )(_pad_rows(xr, m_pad), _pad_rows(xi, m_pad),
      p["w1r"], p["w1i"], p["b1r"], p["b1i"],
      p["w2r"], p["w2i"], p["b2r"], p["b2i"])
    return _unpad_rows(yr, M), _unpad_rows(yi, M)


def _block_mlp_kernel(tok_ref, filt_ref, g_ref, b_ref, w1_ref, b1_ref, w2_ref, b2_ref,
                      o_ref, *, eps):
    x = tok_ref[...] + filt_ref[...]                                  # residual add #1
    mu = jnp.mean(x, axis=-1, keepdims=True)
    xc = x - mu
    var = jnp.mean(xc * xc, axis=-1, keepdims=True)
    xn = xc * jax.lax.rsqrt(var + eps) * g_ref[...] + b_ref[...]      # norm2 (fused)
    h = jnp.dot(xn.astype(jnp.bfloat16), w1_ref[...],
                preferred_element_type=jnp.float32) + b1_ref[...]     # fc1
    h = _gelu_tanh(h)                                                 # GELU (stays in VMEM)
    y = jnp.dot(h.astype(jnp.bfloat16), w2_ref[...],
                preferred_element_type=jnp.float32) + b2_ref[...]     # fc2 (fused, no HBM trip)
    o_ref[...] = x + y                                                # residual add #2


def block_mlp(tok, filt, p, eps=1e-6):
    """out = x + fc2(gelu(fc1(LN2(x)))) with x = tok + filt, entirely inside one kernel."""
    M, C = tok.shape
    Hd = p["fc1_w"].shape[1]
    fixed = 2 * (C * Hd + Hd * C) + 4 * (Hd + C) + 8 * C
    tm, m_pad, vlim = _plan_rows(M, io_row_bytes=12 * C, fixed_bytes=fixed,
                                 live_row_bytes=6 * Hd + 2 * C)
    out = pl.pallas_call(
        functools.partial(_block_mlp_kernel, eps=eps),
        out_shape=jax.ShapeDtypeStruct((m_pad, C), jnp.float32),
        grid=(m_pad // tm,),
        in_specs=[pl.BlockSpec((tm, C), lambda i: (i, 0)),
                  pl.BlockSpec((tm, C), lambda i: (i, 0)),
                  _make_const_spec((1, C)), _make_const_spec((1, C)),
                  _make_const_spec((C, Hd)), _make_const_spec((1, Hd)),
                  _make_const_spec((Hd, C)), _make_const_spec((1, C))],
        out_specs=pl.BlockSpec((tm, C), lambda i: (i, 0)),
        compiler_params=_cparams(vlim),
    )(_pad_rows(tok, m_pad), _pad_rows(filt, m_pad),
      p["n2_g"], p["n2_b"], p["fc1_w"], p["fc1_b"], p["fc2_w"], p["fc2_b"])
    return _unpad_rows(out, M)


def _norm_decoder_kernel(x_ref, g_ref, b_ref, w1_ref, b1_ref, w2_ref, b2_ref,
                         w3_ref, b3_ref, o_ref, *, eps):
    x = x_ref[...]
    mu = jnp.mean(x, axis=-1, keepdims=True)
    xc = x - mu
    var = jnp.mean(xc * xc, axis=-1, keepdims=True)
    xn = xc * jax.lax.rsqrt(var + eps) * g_ref[...] + b_ref[...]                  # final LayerNorm
    h1 = jnp.tanh(jnp.dot(xn.astype(jnp.bfloat16), w1_ref[...],
                          preferred_element_type=jnp.float32) + b1_ref[...])      # dec conv1+tanh
    h2 = jnp.tanh(jnp.dot(h1.astype(jnp.bfloat16), w2_ref[...],
                          preferred_element_type=jnp.float32) + b2_ref[...])      # dec conv2+tanh
    o_ref[...] = jnp.dot(h2.astype(jnp.bfloat16), w3_ref[...],
                         preferred_element_type=jnp.float32) + b3_ref[...]        # head


def norm_decoder_head(tok, params, eps=1e-6):
    """Final LN + 3 ConvTranspose2d(k=2,s=2) stages (tanh, tanh, none) fused per token-pixel;
    lanes of the output are position-major (8x8 pixel block) x out_channels."""
    M, E = tok.shape
    w1, w2, w3 = params["dec1_w"], params["dec2_w"], params["head_w"]
    N1, N2, N3 = w1.shape[1], w2.shape[1], w3.shape[1]
    fixed = 2 * (w1.size + w2.size + w3.size) + 4 * (N1 + N2 + N3) + 8 * E
    tm, m_pad, vlim = _plan_rows(M, io_row_bytes=4 * (E + N3), fixed_bytes=fixed,
                                 live_row_bytes=4 * (E + N1 + N2))
    out = pl.pallas_call(
        functools.partial(_norm_decoder_kernel, eps=eps),
        out_shape=jax.ShapeDtypeStruct((m_pad, N3), jnp.float32),
        grid=(m_pad // tm,),
        in_specs=[pl.BlockSpec((tm, E), lambda i: (i, 0)),
                  _make_const_spec((1, E)), _make_const_spec((1, E)),
                  _make_const_spec((E, N1)), _make_const_spec((1, N1)),
                  _make_const_spec((N1, N2)), _make_const_spec((1, N2)),
                  _make_const_spec((N2, N3)), _make_const_spec((1, N3))],
        out_specs=pl.BlockSpec((tm, N3), lambda i: (i, 0)),
        compiler_params=_cparams(vlim),
    )(_pad_rows(tok, m_pad), params["norm_g"], params["norm_b"],
      w1, params["dec1_b"], w2, params["dec2_b"], w3, params["head_b"])
    return _unpad_rows(out, M)


# ----------------------------------------------------------------------------- model glue (XLA)

def afno_filter(xn2d, p, B, h, w):
    """rfft2 -> fused complex block-diag MLP (Pallas) -> irfft2 (FFTs have no Pallas primitive)."""
    C = xn2d.shape[-1]
    xf = jnp.fft.rfft2(xn2d.reshape(B, h, w, C), axes=(1, 2), norm="ortho")
    wf = xf.shape[2]
    M = B * h * wf
    yr, yi = spectral_mlp2(jnp.real(xf).reshape(M, C), jnp.imag(xf).reshape(M, C), p)
    yc = (yr + 1j * yi).reshape(B, h, wf, C)
    out = jnp.fft.irfft2(yc, s=(h, w), axes=(1, 2), norm="ortho")
    return out.reshape(B * h * w, C)


def fourier_block(tok2, p, B, h, w):
    xn = layernorm(tok2, p["n1_g"], p["n1_b"])            # norm1 (feeds the FFT)
    filt = afno_filter(xn, p, B, h, w)                    # spectral filter
    return block_mlp(tok2, filt, p)                       # fused add + norm2 + fc1 + GELU + fc2 + add


def _pixel_shuffle2x(y):
    """(B, H, W, 4*C) with lanes ordered (ki, kj, c) -> (B, 2H, 2W, C)."""
    B, H, W, C4 = y.shape
    C = C4 // 4
    y = y.reshape(B, H, W, 2, 2, C)
    y = jnp.transpose(y, (0, 1, 3, 2, 4, 5))
    return y.reshape(B, 2 * H, 2 * W, C)


def afno_forward(x, params, cfg):
    """Full AFNO forward. x: (B, in_channels, H, W) float32 (NCHW)."""
    B, Cdata, H, W = x.shape
    P = cfg["patch_size"]
    h, w = H // P, W // P
    E = cfg["embed_dim"]
    Cout = cfg["out_channels"]

    # --- grid channels (torch.linspace over each full spatial dim), concat, permute to NCHW ---
    gy = jnp.broadcast_to(jnp.linspace(0.0, 1.0, H).reshape(1, H, 1, 1), (B, H, W, 1))
    gx = jnp.broadcast_to(jnp.linspace(0.0, 1.0, W).reshape(1, 1, W, 1), (B, H, W, 1))
    # NOTE: PyTorch does a *raw* reshape of the NCHW tensor to (B,H,W,C); jnp.reshape matches it.
    x_cat = jnp.concatenate([gy, gx, x.reshape(B, H, W, Cdata)], axis=-1)
    x_nchw = jnp.transpose(x_cat, (0, 3, 1, 2))
    Cin = x_nchw.shape[1]

    # --- patch embedding (conv k=P, s=P) as a Pallas matmul ---
    xp = x_nchw.reshape(B, Cin, h, P, w, P)
    xp = jnp.transpose(xp, (0, 2, 4, 1, 3, 5)).reshape(B * h * w, Cin * P * P)
    tok = matmul_bias(xp, params["patch_w"], params["patch_b"])                 # (B*h*w, E) f32

    tok = (tok.reshape(B, h * w, E) + params["pos_embed"]).reshape(B * h * w, E)

    # --- Fourier blocks ---
    for blk in params["blocks"]:
        tok = fourier_block(tok, blk, B, h, w)

    # --- fused final norm + decoder + head; then pixel-unshuffle the 8x8 lane blocks ---
    y = norm_decoder_head(tok, params)                                          # (B*h*w, 64*Cout)
    y = y.reshape(B, h, w, 64 * Cout)
    y = _pixel_shuffle2x(y)        # (B, 2h, 2w, 16*Cout)   == dec conv1 upsample
    y = _pixel_shuffle2x(y)        # (B, 4h, 4w,  4*Cout)   == dec conv2 upsample
    y = _pixel_shuffle2x(y)        # (B, 8h, 8w,    Cout)   == head upsample
    return jnp.transpose(y, (0, 3, 1, 2))


# ----------------------------------------------------------------------------- parameter init

def _block_diag(blocks):
    """(nb, bs, bs) -> (nb*bs, nb*bs) block-diagonal (init-time only)."""
    nb, bs, _ = blocks.shape
    out = jnp.zeros((nb * bs, nb * bs), jnp.float32)
    for k in range(nb):
        out = out.at[k * bs:(k + 1) * bs, k * bs:(k + 1) * bs].set(blocks[k])
    return out


def _convT_matmul_weight(wt):
    """torch ConvTranspose2d weight (Cin, Cout, 2, 2) -> (Cin, 4*Cout), position-major lanes."""
    Cin, Cout = wt.shape[:2]
    return jnp.transpose(wt, (0, 2, 3, 1)).reshape(Cin, 4 * Cout)


def init_params(key, cfg):
    H, W = cfg["img_size"]
    P = cfg["patch_size"]
    E = cfg["embed_dim"]
    Cin = cfg["in_channels"] + 2               # + grid channels (2D image)
    Cout = cfg["out_channels"]
    nb = cfg["num_blocks"]
    bs = E // nb
    hidden = int(E * cfg["mlp_ratio"])
    h, w = H // P, W // P

    keys = iter(jax.random.split(key, 64 + 16 * cfg["num_layers"]))
    nrm = lambda shape, s=0.02: (s * jax.random.normal(next(keys), shape)).astype(jnp.float32)
    bf16 = lambda a: a.astype(jnp.bfloat16)
    row = lambda a: jnp.asarray(a, jnp.float32).reshape(1, -1)

    # decoder / head ConvTranspose2d(k=2,s=2): pre-packed matmul weights, block-diagonal over the
    # pixel positions already produced by the previous stage (so the whole chain fuses per token).
    C1, C2 = Cout * 16, Cout * 4
    dec1_m = _convT_matmul_weight(nrm((E, C1, 2, 2)))                                  # (E, 4*C1)
    dec2_m = jnp.kron(jnp.eye(4, dtype=jnp.float32),
                      _convT_matmul_weight(nrm((C1, C2, 2, 2))))                        # (4C1,16C2)
    head_m = jnp.kron(jnp.eye(16, dtype=jnp.float32),
                      _convT_matmul_weight(nrm((C2, Cout, 2, 2))))                      # (16C2,64Co)

    params = {
        # patch-embed conv weight (E, Cin, P, P) stored matmul-ready (Cin*P*P, E) in bf16
        "patch_w": bf16(nrm((E, Cin, P, P)).reshape(E, Cin * P * P).T),
        "patch_b": row(jnp.zeros((E,))),
        "pos_embed": jnp.zeros((1, h * w, E), jnp.float32),
        "norm_g": row(jnp.ones((E,))),
        "norm_b": row(jnp.zeros((E,))),
        "dec1_w": bf16(dec1_m), "dec1_b": row(jnp.zeros((4 * C1,))),
        "dec2_w": bf16(dec2_m), "dec2_b": row(jnp.zeros((16 * C2,))),
        "head_w": bf16(head_m), "head_b": row(jnp.zeros((64 * Cout,))),
        "blocks": [],
    }

    for _ in range(cfg["num_layers"]):
        blk = {
            "n1_g": row(jnp.ones((E,))), "n1_b": row(jnp.zeros((E,))),
            "n2_g": row(jnp.ones((E,))), "n2_b": row(jnp.zeros((E,))),
            # spectral block-diagonal complex weights kept f32 (FFT dynamic range — accuracy)
            "w1r": _block_diag(nrm((nb, bs, bs))), "w1i": _block_diag(nrm((nb, bs, bs))),
            "w2r": _block_diag(nrm((nb, bs, bs))), "w2i": _block_diag(nrm((nb, bs, bs))),
            "b1r": row(nrm((E,))), "b1i": row(nrm((E,))),
            "b2r": row(nrm((E,))), "b2i": row(nrm((E,))),
            # token MLP weights stored bf16 once (no per-forward casts)
            "fc1_w": bf16(nrm((E, hidden))), "fc1_b": row(jnp.zeros((hidden,))),
            "fc2_w": bf16(nrm((hidden, E))), "fc2_b": row(jnp.zeros((E,))),
        }
        params["blocks"].append(blk)
    return params


# ----------------------------------------------------------------------------- main

if __name__ == "__main__":
    cfg = dict(
        img_size=(32, 32),
        patch_size=8,
        in_channels=2,
        out_channels=1,
        embed_dim=64,
        num_layers=2,
        mlp_ratio=4,
        num_blocks=4,
    )

    key = jax.random.PRNGKey(0)
    pkey, xkey = jax.random.split(key)
    params = init_params(pkey, cfg)

    # input: NCHW, (B=2, C=in_channels=2, 32, 32)
    x = jax.random.normal(xkey, (2, cfg["in_channels"], *cfg["img_size"]), dtype=jnp.float32)

    _single_buffer_ok()  # run the Buffered(1) capability probe eagerly, outside the jit trace

    fwd = jax.jit(functools.partial(afno_forward, cfg=cfg))
    y = jax.block_until_ready(fwd(x, params))

    assert y.shape == (2, cfg["out_channels"], *cfg["img_size"]), y.shape
    assert bool(jnp.all(jnp.isfinite(y)))
    print("KERNEL_OK")
</pallas_src>

<mosaic_0001>
module attributes {stable_mosaic.version = 11 : i64} {
  func.func @_k(%arg0: i32, %arg1: memref<8x128xf32, #tpu.memory_space<vmem>>, %arg2: memref<8x128xf32, #tpu.memory_space<vmem>>, %arg3: memref<8x128xf32, #tpu.memory_space<vmem>>) attributes {dimension_semantics = [#tpu.dimension_semantics<arbitrary>], iteration_bounds = array<i64: 2>, scalar_prefetch = 0 : i64, scratch_operands = 0 : i64, tpu.core_type = #tpu.core_type<tc>, window_params = [{transform_indices = @transform_0, window_bounds = array<i64: 8, 128>}, {pipeline_mode = #tpu.pipeline_mode<synchronous>, transform_indices = @transform_1, window_bounds = array<i64: 8, 128>}, {transform_indices = @transform_2, window_bounds = array<i64: 8, 128>}]} {
    %c0 = arith.constant 0 : index
    %c0_0 = arith.constant 0 : index
    %0 = vector.load %arg1[%c0, %c0_0] : memref<8x128xf32, #tpu.memory_space<vmem>>, vector<8x128xf32>
    %c0_1 = arith.constant 0 : index
    %c0_2 = arith.constant 0 : index
    %1 = vector.load %arg2[%c0_1, %c0_2] : memref<8x128xf32, #tpu.memory_space<vmem>>, vector<8x128xf32>
    %2 = arith.addf %0, %1 : vector<8x128xf32>
    %c0_3 = arith.constant 0 : index
    %c0_4 = arith.constant 0 : index
    %3 = vector.load %arg3[%c0_3, %c0_4] : memref<8x128xf32, #tpu.memory_space<vmem>>, vector<8x128xf32>
    tpu.vector_store %arg3[%c0_3, %c0_4], %2 {strides = array<i32>} : memref<8x128xf32, #tpu.memory_space<vmem>>, vector<8x128xf32>,
    return
  }
  func.func @transform_0(%arg0: i32) -> (i32, i32) {
    %c0_i32 = arith.constant 0 : i32
    %c0_i32_0 = arith.constant 0 : i32
    return %arg0, %c0_i32 : i32, i32
  }
  func.func @transform_1(%arg0: i32) -> (i32, i32) {
    %c0_i32 = arith.constant 0 : i32
    %c0_i32_0 = arith.constant 0 : i32
    %c0_i32_1 = arith.constant 0 : i32
    return %c0_i32, %c0_i32_0 : i32, i32
  }
  func.func @transform_2(%arg0: i32) -> (i32, i32) {
    %c0_i32 = arith.constant 0 : i32
    %c0_i32_0 = arith.constant 0 : i32
    return %arg0, %c0_i32 : i32, i32
  }
}

module attributes {stable_mosaic.version = 11 : i64} {
  func.func @_matmul_bias_kernel(%arg0: i32, %arg1: memref<8x256xf32, #tpu.memory_space<vmem>>, %arg2: memref<256x64xbf16, #tpu.memory_space<vmem>>, %arg3: memref<1x64xf32, #tpu.memory_space<vmem>>, %arg4: memref<8x64xf32, #tpu.memory_space<vmem>>) attributes {dimension_semantics = [#tpu.dimension_semantics<parallel>], iteration_bounds = array<i64: 4>, scalar_prefetch = 0 : i64, scratch_operands = 0 : i64, tpu.core_type = #tpu.core_type<tc>, window_params = [{transform_indices = @transform_0, window_bounds = array<i64: 8, 256>}, {pipeline_mode = #tpu.pipeline_mode<synchronous>, transform_indices = @transform_1, window_bounds = array<i64: 256, 64>}, {pipeline_mode = #tpu.pipeline_mode<synchronous>, transform_indices = @transform_2, window_bounds = array<i64: 1, 64>}, {transform_indices = @transform_3, window_bounds = array<i64: 8, 64>}]} {
    %c0 = arith.constant 0 : index
    %c0_0 = arith.constant 0 : index
    %0 = vector.load %arg1[%c0, %c0_0] : memref<8x256xf32, #tpu.memory_space<vmem>>, vector<8x256xf32>
    %1 = arith.truncf %0 : vector<8x256xf32> to vector<8x256xbf16>
    %c0_1 = arith.constant 0 : index
    %c0_2 = arith.constant 0 : index
    %2 = vector.load %arg2[%c0_1, %c0_2] : memref<256x64xbf16, #tpu.memory_space<vmem>>, vector<256x64xbf16>
    %cst = arith.constant dense<0.000000e+00> : vector<8x64xf32>
    %3 = tpu.matmul %1, %2, %cst {dimension_numbers = #tpu.dot_dimension_numbers<[1], [0], [0], [1], [0, 0, 1, 1], [], []>} : vector<8x256xbf16>, vector<256x64xbf16>, vector<8x64xf32> -> vector<8x64xf32>
    %c0_3 = arith.constant 0 : index
    %c0_4 = arith.constant 0 : index
    %4 = vector.load %arg3[%c0_3, %c0_4] : memref<1x64xf32, #tpu.memory_space<vmem>>, vector<1x64xf32>
    %5 = vector.broadcast %4 : vector<1x64xf32> to vector<8x64xf32>
    %6 = arith.addf %3, %5 : vector<8x64xf32>
    %c0_5 = arith.constant 0 : index
    %c0_6 = arith.constant 0 : index
    %7 = vector.load %arg4[%c0_5, %c0_6] : memref<8x64xf32, #tpu.memory_space<vmem>>, vector<8x64xf32>
    tpu.vector_store %arg4[%c0_5, %c0_6], %6 {strides = array<i32>} : memref<8x64xf32, #tpu.memory_space<vmem>>, vector<8x64xf32>,
    return
  }
  func.func @transform_0(%arg0: i32) -> (i32, i32) {
    %c0_i32 = arith.constant 0 : i32
    %c0_i32_0 = arith.constant 0 : i32
    return %arg0, %c0_i32 : i32, i32
  }
  func.func @transform_1(%arg0: i32) -> (i32, i32) {
    %c0_i32 = arith.constant 0 : i32
    %c0_i32_0 = arith.constant 0 : i32
    %c0_i32_1 = arith.constant 0 : i32
    return %c0_i32, %c0_i32_0 : i32, i32
  }
  func.func @transform_2(%arg0: i32) -> (i32, i32) {
    %c0_i32 = arith.constant 0 : i32
    %c0_i32_0 = arith.constant 0 : i32
    %c0_i32_1 = arith.constant 0 : i32
    return %c0_i32, %c0_i32_0 : i32, i32
  }
  func.func @transform_3(%arg0: i32) -> (i32, i32) {
    %c0_i32 = arith.constant 0 : i32
    %c0_i32_0 = arith.constant 0 : i32
    return %arg0, %c0_i32 : i32, i32
  }
}

module attributes {stable_mosaic.version = 11 : i64} {
  func.func @_layernorm_kernel(%arg0: i32, %arg1: memref<8x64xf32, #tpu.memory_space<vmem>>, %arg2: memref<1x64xf32, #tpu.memory_space<vmem>>, %arg3: memref<1x64xf32, #tpu.memory_space<vmem>>, %arg4: memref<8x64xf32, #tpu.memory_space<vmem>>) attributes {dimension_semantics = [#tpu.dimension_semantics<parallel>], iteration_bounds = array<i64: 4>, scalar_prefetch = 0 : i64, scratch_operands = 0 : i64, tpu.core_type = #tpu.core_type<tc>, window_params = [{transform_indices = @transform_0, window_bounds = array<i64: 8, 64>}, {pipeline_mode = #tpu.pipeline_mode<synchronous>, transform_indices = @transform_1, window_bounds = array<i64: 1, 64>}, {pipeline_mode = #tpu.pipeline_mode<synchronous>, transform_indices = @transform_2, window_bounds = array<i64: 1, 64>}, {transform_indices = @transform_3, window_bounds = array<i64: 8, 64>}]} {
    %c0 = arith.constant 0 : index
    %c0_0 = arith.constant 0 : index
    %0 = vector.load %arg1[%c0, %c0_0] : memref<8x64xf32, #tpu.memory_space<vmem>>, vector<8x64xf32>
    %cst = arith.constant dense<0.000000e+00> : vector<8xf32>
    %1 = vector.multi_reduction <add>, %0, %cst [1] : vector<8x64xf32> to vector<8xf32>
    %2 = vector.shape_cast %1 : vector<8xf32> to vector<8x1xf32>
    %cst_1 = arith.constant 6.400000e+01 : f32
    %3 = vector.broadcast %cst_1 : f32 to vector<8x1xf32>
    %4 = arith.divf %2, %3 : vector<8x1xf32>
    %5 = vector.broadcast %4 : vector<8x1xf32> to vector<8x64xf32>
    %6 = arith.subf %0, %5 : vector<8x64xf32>
    %7 = arith.mulf %6, %6 : vector<8x64xf32>
    %cst_2 = arith.constant dense<0.000000e+00> : vector<8xf32>
    %8 = vector.multi_reduction <add>, %7, %cst_2 [1] : vector<8x64xf32> to vector<8xf32>
    %9 = vector.shape_cast %8 : vector<8xf32> to vector<8x1xf32>
    %cst_3 = arith.constant 6.400000e+01 : f32
    %10 = vector.broadcast %cst_3 : f32 to vector<8x1xf32>
    %11 = arith.divf %9, %10 : vector<8x1xf32>
    %cst_4 = arith.constant 9.99999997E-7 : f32
    %12 = vector.broadcast %cst_4 : f32 to vector<8x1xf32>
    %13 = arith.addf %11, %12 : vector<8x1xf32>
    %14 = math.rsqrt %13 : vector<8x1xf32>
    %15 = vector.broadcast %14 : vector<8x1xf32> to vector<8x64xf32>
    %16 = arith.mulf %6, %15 : vector<8x64xf32>
    %c0_5 = arith.constant 0 : index
    %c0_6 = arith.constant 0 : index
    %17 = vector.load %arg2[%c0_5, %c0_6] : memref<1x64xf32, #tpu.memory_space<vmem>>, vector<1x64xf32>
    %18 = vector.broadcast %17 : vector<1x64xf32> to vector<8x64xf32>
    %19 = arith.mulf %16, %18 : vector<8x64xf32>
    %c0_7 = arith.constant 0 : index
    %c0_8 = arith.constant 0 : index
    %20 = vector.load %arg3[%c0_7, %c0_8] : memref<1x64xf32, #tpu.memory_space<vmem>>, vector<1x64xf32>
    %21 = vector.broadcast %20 : vector<1x64xf32> to vector<8x64xf32>
    %22 = arith.addf %19, %21 : vector<8x64xf32>
    %c0_9 = arith.constant 0 : index
    %c0_10 = arith.constant 0 : index
    %23 = vector.load %arg4[%c0_9, %c0_10] : memref<8x64xf32, #tpu.memory_space<vmem>>, vector<8x64xf32>
    tpu.vector_store %arg4[%c0_9, %c0_10], %22 {strides = array<i32>} : memref<8x64xf32, #tpu.memory_space<vmem>>, vector<8x64xf32>,
    return
  }
  func.func @transform_0(%arg0: i32) -> (i32, i32) {
    %c0_i32 = arith.constant 0 : i32
    %c0_i32_0 = arith.constant 0 : i32
    return %arg0, %c0_i32 : i32, i32
  }
  func.func @transform_1(%arg0: i32) -> (i32, i32) {
    %c0_i32 = arith.constant 0 : i32
    %c0_i32_0 = arith.constant 0 : i32
    %c0_i32_1 = arith.constant 0 : i32
    return %c0_i32, %c0_i32_0 : i32, i32
  }
  func.func @transform_2(%arg0: i32) -> (i32, i32) {
    %c0_i32 = arith.constant 0 : i32
    %c0_i32_0 = arith.constant 0 : i32
    %c0_i32_1 = arith.constant 0 : i32
    return %c0_i32, %c0_i32_0 : i32, i32
  }
  func.func @transform_3(%arg0: i32) -> (i32, i32) {
    %c0_i32 = arith.constant 0 : i32
    %c0_i32_0 = arith.constant 0 : i32
    return %arg0, %c0_i32 : i32, i32
  }
}

module attributes {stable_mosaic.version = 11 : i64} {
  func.func @_spectral_kernel(%arg0: i32, %arg1: memref<8x64xf32, #tpu.memory_space<vmem>>, %arg2: memref<8x64xf32, #tpu.memory_space<vmem>>, %arg3: memref<64x64xf32, #tpu.memory_space<vmem>>, %arg4: memref<64x64xf32, #tpu.memory_space<vmem>>, %arg5: memref<1x64xf32, #tpu.memory_space<vmem>>, %arg6: memref<1x64xf32, #tpu.memory_space<vmem>>, %arg7: memref<64x64xf32, #tpu.memory_space<vmem>>, %arg8: memref<64x64xf32, #tpu.memory_space<vmem>>, %arg9: memref<1x64xf32, #tpu.memory_space<vmem>>, %arg10: memref<1x64xf32, #tpu.memory_space<vmem>>, %arg11: memref<8x64xf32, #tpu.memory_space<vmem>>, %arg12: memref<8x64xf32, #tpu.memory_space<vmem>>) attributes {dimension_semantics = [#tpu.dimension_semantics<parallel>], iteration_bounds = array<i64: 3>, scalar_prefetch = 0 : i64, scratch_operands = 0 : i64, tpu.core_type = #tpu.core_type<tc>, window_params = [{transform_indices = @transform_0, window_bounds = array<i64: 8, 64>}, {transform_indices = @transform_1, window_bounds = array<i64: 8, 64>}, {pipeline_mode = #tpu.pipeline_mode<synchronous>, transform_indices = @transform_2, window_bounds = array<i64: 64, 64>}, {pipeline_mode = #tpu.pipeline_mode<synchronous>, transform_indices = @transform_3, window_bounds = array<i64: 64, 64>}, {pipeline_mode = #tpu.pipeline_mode<synchronous>, transform_indices = @transform_4, window_bounds = array<i64: 1, 64>}, {pipeline_mode = #tpu.pipeline_mode<synchronous>, transform_indices = @transform_5, window_bounds = array<i64: 1, 64>}, {pipeline_mode = #tpu.pipeline_mode<synchronous>, transform_indices = @transform_6, window_bounds = array<i64: 64, 64>}, {pipeline_mode = #tpu.pipeline_mode<synchronous>, transform_indices = @transform_7, window_bounds = array<i64: 64, 64>}, {pipeline_mode = #tpu.pipeline_mode<synchronous>, transform_indices = @transform_8, window_bounds = array<i64: 1, 64>}, {pipeline_mode = #tpu.pipeline_mode<synchronous>, transform_indices = @transform_9, window_bounds = array<i64: 1, 64>}, {transform_indices = @transform_10, window_bounds = array<i64: 8, 64>}, {transform_indices = @transform_11, window_bounds = array<i64: 8, 64>}]} {
    %c0 = arith.constant 0 : index
    %c0_0 = arith.constant 0 : index
    %0 = vector.load %arg1[%c0, %c0_0] : memref<8x64xf32, #tpu.memory_space<vmem>>, vector<8x64xf32>
    %c0_1 = arith.constant 0 : index
    %c0_2 = arith.constant 0 : index
    %1 = vector.load %arg2[%c0_1, %c0_2] : memref<8x64xf32, #tpu.memory_space<vmem>>, vector<8x64xf32>
    %c0_3 = arith.constant 0 : index
    %c0_4 = arith.constant 0 : index
    %2 = vector.load %arg3[%c0_3, %c0_4] : memref<64x64xf32, #tpu.memory_space<vmem>>, vector<64x64xf32>
    %cst = arith.constant dense<0.000000e+00> : vector<8x64xf32>
    %3 = tpu.matmul %0, %2, %cst {dimension_numbers = #tpu.dot_dimension_numbers<[1], [0], [0], [1], [0, 0, 1, 1], [], []>} : vector<8x64xf32>, vector<64x64xf32>, vector<8x64xf32> -> vector<8x64xf32>
    %c0_5 = arith.constant 0 : index
    %c0_6 = arith.constant 0 : index
    %4 = vector.load %arg4[%c0_5, %c0_6] : memref<64x64xf32, #tpu.memory_space<vmem>>, vector<64x64xf32>
    %cst_7 = arith.constant dense<0.000000e+00> : vector<8x64xf32>
    %5 = tpu.matmul %1, %4, %cst_7 {dimension_numbers = #tpu.dot_dimension_numbers<[1], [0], [0], [1], [0, 0, 1, 1], [], []>} : vector<8x64xf32>, vector<64x64xf32>, vector<8x64xf32> -> vector<8x64xf32>
    %6 = arith.subf %3, %5 : vector<8x64xf32>
    %c0_8 = arith.constant 0 : index
    %c0_9 = arith.constant 0 : index
    %7 = vector.load %arg5[%c0_8, %c0_9] : memref<1x64xf32, #tpu.memory_space<vmem>>, vector<1x64xf32>
    %8 = vector.broadcast %7 : vector<1x64xf32> to vector<8x64xf32>
    %9 = arith.addf %6, %8 : vector<8x64xf32>
    %c0_10 = arith.constant 0 : index
    %c0_11 = arith.constant 0 : index
    %10 = vector.load %arg4[%c0_10, %c0_11] : memref<64x64xf32, #tpu.memory_space<vmem>>, vector<64x64xf32>
    %cst_12 = arith.constant dense<0.000000e+00> : vector<8x64xf32>
    %11 = tpu.matmul %0, %10, %cst_12 {dimension_numbers = #tpu.dot_dimension_numbers<[1], [0], [0], [1], [0, 0, 1, 1], [], []>} : vector<8x64xf32>, vector<64x64xf32>, vector<8x64xf32> -> vector<8x64xf32>
    %c0_13 = arith.constant 0 : index
    %c0_14 = arith.constant 0 : index
    %12 = vector.load %arg3[%c0_13, %c0_14] : memref<64x64xf32, #tpu.memory_space<vmem>>, vector<64x64xf32>
    %cst_15 = arith.constant dense<0.000000e+00> : vector<8x64xf32>
    %13 = tpu.matmul %1, %12, %cst_15 {dimension_numbers = #tpu.dot_dimension_numbers<[1], [0], [0], [1], [0, 0, 1, 1], [], []>} : vector<8x64xf32>, vector<64x64xf32>, vector<8x64xf32> -> vector<8x64xf32>
    %14 = arith.addf %11, %13 : vector<8x64xf32>
    %c0_16 = arith.constant 0 : index
    %c0_17 = arith.constant 0 : index
    %15 = vector.load %arg6[%c0_16, %c0_17] : memref<1x64xf32, #tpu.memory_space<vmem>>, vector<1x64xf32>
    %16 = vector.broadcast %15 : vector<1x64xf32> to vector<8x64xf32>
    %17 = arith.addf %14, %16 : vector<8x64xf32>
    %cst_18 = arith.constant 0.000000e+00 : f32
    %18 = vector.broadcast %cst_18 : f32 to vector<8x64xf32>
    %19 = arith.maximumf %9, %18 : vector<8x64xf32>
    %cst_19 = arith.constant 0.000000e+00 : f32
    %20 = vector.broadcast %cst_19 : f32 to vector<8x64xf32>
    %21 = arith.maximumf %17, %20 : vector<8x64xf32>
    %c0_20 = arith.constant 0 : index
    %c0_21 = arith.constant 0 : index
    %22 = vector.load %arg7[%c0_20, %c0_21] : memref<64x64xf32, #tpu.memory_space<vmem>>, vector<64x64xf32>
    %cst_22 = arith.constant dense<0.000000e+00> : vector<8x64xf32>
    %23 = tpu.matmul %19, %22, %cst_22 {dimension_numbers = #tpu.dot_dimension_numbers<[1], [0], [0], [1], [0, 0, 1, 1], [], []>} : vector<8x64xf32>, vector<64x64xf32>, vector<8x64xf32> -> vector<8x64xf32>
    %c0_23 = arith.constant 0 : index
    %c0_24 = arith.constant 0 : index
    %24 = vector.load %arg8[%c0_23, %c0_24] : memref<64x64xf32, #tpu.memory_space<vmem>>, vector<64x64xf32>
    %cst_25 = arith.constant dense<0.000000e+00> : vector<8x64xf32>
    %25 = tpu.matmul %21, %24, %cst_25 {dimension_numbers = #tpu.dot_dimension_numbers<[1], [0], [0], [1], [0, 0, 1, 1], [], []>} : vector<8x64xf32>, vector<64x64xf32>, vector<8x64xf32> -> vector<8x64xf32>
    %26 = arith.subf %23, %25 : vector<8x64xf32>
    %c0_26 = arith.constant 0 : index
    %c0_27 = arith.constant 0 : index
    %27 = vector.load %arg9[%c0_26, %c0_27] : memref<1x64xf32, #tpu.memory_space<vmem>>, vector<1x64xf32>
    %28 = vector.broadcast %27 : vector<1x64xf32> to vector<8x64xf32>
    %29 = arith.addf %26, %28 : vector<8x64xf32>
    %c0_28 = arith.constant 0 : index
    %c0_29 = arith.constant 0 : index
    %30 = vector.load %arg11[%c0_28, %c0_29] : memref<8x64xf32, #tpu.memory_space<vmem>>, vector<8x64xf32>
    tpu.vector_store %arg11[%c0_28, %c0_29], %29 {strides = array<i32>} : memref<8x64xf32, #tpu.memory_space<vmem>>, vector<8x64xf32>,
    %c0_30 = arith.constant 0 : index
    %c0_31 = arith.constant 0 : index
    %31 = vector.load %arg8[%c0_30, %c0_31] : memref<64x64xf32, #tpu.memory_space<vmem>>, vector<64x64xf32>
    %cst_32 = arith.constant dense<0.000000e+00> : vector<8x64xf32>
    %32 = tpu.matmul %19, %31, %cst_32 {dimension_numbers = #tpu.dot_dimension_numbers<[1], [0], [0], [1], [0, 0, 1, 1], [], []>} : vector<8x64xf32>, vector<64x64xf32>, vector<8x64xf32> -> vector<8x64xf32>
    %c0_33 = arith.constant 0 : index
    %c0_34 = arith.constant 0 : index
    %33 = vector.load %arg7[%c0_33, %c0_34] : memref<64x64xf32, #tpu.memory_space<vmem>>, vector<64x64xf32>
    %cst_35 = arith.constant dense<0.000000e+00> : vector<8x64xf32>
    %34 = tpu.matmul %21, %33, %cst_35 {dimension_numbers = #tpu.dot_dimension_numbers<[1], [0], [0], [1], [0, 0, 1, 1], [], []>} : vector<8x64xf32>, vector<64x64xf32>, vector<8x64xf32> -> vector<8x64xf32>
    %35 = arith.addf %32, %34 : vector<8x64xf32>
    %c0_36 = arith.constant 0 : index
    %c0_37 = arith.constant 0 : index
    %36 = vector.load %arg10[%c0_36, %c0_37] : memref<1x64xf32, #tpu.memory_space<vmem>>, vector<1x64xf32>
    %37 = vector.broadcast %36 : vector<1x64xf32> to vector<8x64xf32>
    %38 = arith.addf %35, %37 : vector<8x64xf32>
    %c0_38 = arith.constant 0 : index
    %c0_39 = arith.constant 0 : index
    %39 = vector.load %arg12[%c0_38, %c0_39] : memref<8x64xf32, #tpu.memory_space<vmem>>, vector<8x64xf32>
    tpu.vector_store %arg12[%c0_38, %c0_39], %38 {strides = array<i32>} : memref<8x64xf32, #tpu.memory_space<vmem>>, vector<8x64xf32>,
    return
  }
  func.func @transform_0(%arg0: i32) -> (i32, i32) {
    %c0_i32 = arith.constant 0 : i32
    %c0_i32_0 = arith.constant 0 : i32
    return %arg0, %c0_i32 : i32, i32
  }
  func.func @transform_1(%arg0: i32) -> (i32, i32) {
    %c0_i32 = arith.constant 0 : i32
    %c0_i32_0 = arith.constant 0 : i32
    return %arg0, %c0_i32 : i32, i32
  }
  func.func @transform_2(%arg0: i32) -> (i32, i32) {
    %c0_i32 = arith.constant 0 : i32
    %c0_i32_0 = arith.constant 0 : i32
    %c0_i32_1 = arith.constant 0 : i32
    return %c0_i32, %c0_i32_0 : i32, i32
  }
  func.func @transform_3(%arg0: i32) -> (i32, i32) {
    %c0_i32 = arith.constant 0 : i32
    %c0_i32_0 = arith.constant 0 : i32
    %c0_i32_1 = arith.constant 0 : i32
    return %c0_i32, %c0_i32_0 : i32, i32
  }
  func.func @transform_4(%arg0: i32) -> (i32, i32) {
    %c0_i32 = arith.constant 0 : i32
    %c0_i32_0 = arith.constant 0 : i32
    %c0_i32_1 = arith.constant 0 : i32
    return %c0_i32, %c0_i32_0 : i32, i32
  }
  func.func @transform_5(%arg0: i32) -> (i32, i32) {
    %c0_i32 = arith.constant 0 : i32
    %c0_i32_0 = arith.constant 0 : i32
    %c0_i32_1 = arith.constant 0 : i32
    return %c0_i32, %c0_i32_0 : i32, i32
  }
  func.func @transform_6(%arg0: i32) -> (i32, i32) {
    %c0_i32 = arith.constant 0 : i32
    %c0_i32_0 = arith.constant 0 : i32
    %c0_i32_1 = arith.constant 0 : i32
    return %c0_i32, %c0_i32_0 : i32, i32
  }
  func.func @transform_7(%arg0: i32) -> (i32, i32) {
    %c0_i32 = arith.constant 0 : i32
    %c0_i32_0 = arith.constant 0 : i32
    %c0_i32_1 = arith.constant 0 : i32
    return %c0_i32, %c0_i32_0 : i32, i32
  }
  func.func @transform_8(%arg0: i32) -> (i32, i32) {
    %c0_i32 = arith.constant 0 : i32
    %c0_i32_0 = arith.constant 0 : i32
    %c0_i32_1 = arith.constant 0 : i32
    return %c0_i32, %c0_i32_0 : i32, i32
  }
  func.func @transform_9(%arg0: i32) -> (i32, i32) {
    %c0_i32 = arith.constant 0 : i32
    %c0_i32_0 = arith.constant 0 : i32
    %c0_i32_1 = arith.constant 0 : i32
    return %c0_i32, %c0_i32_0 : i32, i32
  }
  func.func @transform_10(%arg0: i32) -> (i32, i32) {
    %c0_i32 = arith.constant 0 : i32
    %c0_i32_0 = arith.constant 0 : i32
    return %arg0, %c0_i32 : i32, i32
  }
  func.func @transform_11(%arg0: i32) -> (i32, i32) {
    %c0_i32 = arith.constant 0 : i32
    %c0_i32_0 = arith.constant 0 : i32
    return %arg0, %c0_i32 : i32, i32
  }
}

module attributes {stable_mosaic.version = 11 : i64} {
  func.func @_norm_decoder_kernel(%arg0: i32, %arg1: memref<8x64xf32, #tpu.memory_space<vmem>>, %arg2: memref<1x64xf32, #tpu.memory_space<vmem>>, %arg3: memref<1x64xf32, #tpu.memory_space<vmem>>, %arg4: memref<64x64xbf16, #tpu.memory_space<vmem>>, %arg5: memref<1x64xf32, #tpu.memory_space<vmem>>, %arg6: memref<64x64xbf16, #tpu.memory_space<vmem>>, %arg7: memref<1x64xf32, #tpu.memory_space<vmem>>, %arg8: memref<64x64xbf16, #tpu.memory_space<vmem>>, %arg9: memref<1x64xf32, #tpu.memory_space<vmem>>, %arg10: memref<8x64xf32, #tpu.memory_space<vmem>>) attributes {dimension_semantics = [#tpu.dimension_semantics<parallel>], iteration_bounds = array<i64: 4>, scalar_prefetch = 0 : i64, scratch_operands = 0 : i64, tpu.core_type = #tpu.core_type<tc>, window_params = [{transform_indices = @transform_0, window_bounds = array<i64: 8, 64>}, {pipeline_mode = #tpu.pipeline_mode<synchronous>, transform_indices = @transform_1, window_bounds = array<i64: 1, 64>}, {pipeline_mode = #tpu.pipeline_mode<synchronous>, transform_indices = @transform_2, window_bounds = array<i64: 1, 64>}, {pipeline_mode = #tpu.pipeline_mode<synchronous>, transform_indices = @transform_3, window_bounds = array<i64: 64, 64>}, {pipeline_mode = #tpu.pipeline_mode<synchronous>, transform_indices = @transform_4, window_bounds = array<i64: 1, 64>}, {pipeline_mode = #tpu.pipeline_mode<synchronous>, transform_indices = @transform_5, window_bounds = array<i64: 64, 64>}, {pipeline_mode = #tpu.pipeline_mode<synchronous>, transform_indices = @transform_6, window_bounds = array<i64: 1, 64>}, {pipeline_mode = #tpu.pipeline_mode<synchronous>, transform_indices = @transform_7, window_bounds = array<i64: 64, 64>}, {pipeline_mode = #tpu.pipeline_mode<synchronous>, transform_indices = @transform_8, window_bounds = array<i64: 1, 64>}, {transform_indices = @transform_9, window_bounds = array<i64: 8, 64>}]} {
    %c0 = arith.constant 0 : index
    %c0_0 = arith.constant 0 : index
    %0 = vector.load %arg1[%c0, %c0_0] : memref<8x64xf32, #tpu.memory_space<vmem>>, vector<8x64xf32>
    %cst = arith.constant dense<0.000000e+00> : vector<8xf32>
    %1 = vector.multi_reduction <add>, %0, %cst [1] : vector<8x64xf32> to vector<8xf32>
    %2 = vector.shape_cast %1 : vector<8xf32> to vector<8x1xf32>
    %cst_1 = arith.constant 6.400000e+01 : f32
    %3 = vector.broadcast %cst_1 : f32 to vector<8x1xf32>
    %4 = arith.divf %2, %3 : vector<8x1xf32>
    %5 = vector.broadcast %4 : vector<8x1xf32> to vector<8x64xf32>
    %6 = arith.subf %0, %5 : vector<8x64xf32>
    %7 = arith.mulf %6, %6 : vector<8x64xf32>
    %cst_2 = arith.constant dense<0.000000e+00> : vector<8xf32>
    %8 = vector.multi_reduction <add>, %7, %cst_2 [1] : vector<8x64xf32> to vector<8xf32>
    %9 = vector.shape_cast %8 : vector<8xf32> to vector<8x1xf32>
    %cst_3 = arith.constant 6.400000e+01 : f32
    %10 = vector.broadcast %cst_3 : f32 to vector<8x1xf32>
    %11 = arith.divf %9, %10 : vector<8x1xf32>
    %cst_4 = arith.constant 9.99999997E-7 : f32
    %12 = vector.broadcast %cst_4 : f32 to vector<8x1xf32>
    %13 = arith.addf %11, %12 : vector<8x1xf32>
    %14 = math.rsqrt %13 : vector<8x1xf32>
    %15 = vector.broadcast %14 : vector<8x1xf32> to vector<8x64xf32>
    %16 = arith.mulf %6, %15 : vector<8x64xf32>
    %c0_5 = arith.constant 0 : index
    %c0_6 = arith.constant 0 : index
    %17 = vector.load %arg2[%c0_5, %c0_6] : memref<1x64xf32, #tpu.memory_space<vmem>>, vector<1x64xf32>
    %18 = vector.broadcast %17 : vector<1x64xf32> to vector<8x64xf32>
    %19 = arith.mulf %16, %18 : vector<8x64xf32>
    %c0_7 = arith.constant 0 : index
    %c0_8 = arith.constant 0 : index
    %20 = vector.load %arg3[%c0_7, %c0_8] : memref<1x64xf32, #tpu.memory_space<vmem>>, vector<1x64xf32>
    %21 = vector.broadcast %20 : vector<1x64xf32> to vector<8x64xf32>
    %22 = arith.addf %19, %21 : vector<8x64xf32>
    %23 = arith.truncf %22 : vector<8x64xf32> to vector<8x64xbf16>
    %c0_9 = arith.constant 0 : index
    %c0_10 = arith.constant 0 : index
    %24 = vector.load %arg4[%c0_9, %c0_10] : memref<64x64xbf16, #tpu.memory_space<vmem>>, vector<64x64xbf16>
    %cst_11 = arith.constant dense<0.000000e+00> : vector<8x64xf32>
    %25 = tpu.matmul %23, %24, %cst_11 {dimension_numbers = #tpu.dot_dimension_numbers<[1], [0], [0], [1], [0, 0, 1, 1], [], []>} : vector<8x64xbf16>, vector<64x64xbf16>, vector<8x64xf32> -> vector<8x64xf32>
    %c0_12 = arith.constant 0 : index
    %c0_13 = arith.constant 0 : index
    %26 = vector.load %arg5[%c0_12, %c0_13] : memref<1x64xf32, #tpu.memory_space<vmem>>, vector<1x64xf32>
    %27 = vector.broadcast %26 : vector<1x64xf32> to vector<8x64xf32>
    %28 = arith.addf %25, %27 : vector<8x64xf32>
    %29 = math.tanh %28 : vector<8x64xf32>
    %30 = arith.truncf %29 : vector<8x64xf32> to vector<8x64xbf16>
    %c0_14 = arith.constant 0 : index
    %c0_15 = arith.constant 0 : index
    %31 = vector.load %arg6[%c0_14, %c0_15] : memref<64x64xbf16, #tpu.memory_space<vmem>>, vector<64x64xbf16>
    %cst_16 = arith.constant dense<0.000000e+00> : vector<8x64xf32>
    %32 = tpu.matmul %30, %31, %cst_16 {dimension_numbers = #tpu.dot_dimension_numbers<[1], [0], [0], [1], [0, 0, 1, 1], [], []>} : vector<8x64xbf16>, vector<64x64xbf16>, vector<8x64xf32> -> vector<8x64xf32>
    %c0_17 = arith.constant 0 : index
    %c0_18 = arith.constant 0 : index
    %33 = vector.load %arg7[%c0_17, %c0_18] : memref<1x64xf32, #tpu.memory_space<vmem>>, vector<1x64xf32>
    %34 = vector.broadcast %33 : vector<1x64xf32> to vector<8x64xf32>
    %35 = arith.addf %32, %34 : vector<8x64xf32>
    %36 = math.tanh %35 : vector<8x64xf32>
    %37 = arith.truncf %36 : vector<8x64xf32> to vector<8x64xbf16>
    %c0_19 = arith.constant 0 : index
    %c0_20 = arith.constant 0 : index
    %38 = vector.load %arg8[%c0_19, %c0_20] : memref<64x64xbf16, #tpu.memory_space<vmem>>, vector<64x64xbf16>
    %cst_21 = arith.constant dense<0.000000e+00> : vector<8x64xf32>
    %39 = tpu.matmul %37, %38, %cst_21 {dimension_numbers = #tpu.dot_dimension_numbers<[1], [0], [0], [1], [0, 0, 1, 1], [], []>} : vector<8x64xbf16>, vector<64x64xbf16>, vector<8x64xf32> -> vector<8x64xf32>
    %c0_22 = arith.constant 0 : index
    %c0_23 = arith.constant 0 : index
    %40 = vector.load %arg9[%c0_22, %c0_23] : memref<1x64xf32, #tpu.memory_space<vmem>>, vector<1x64xf32>
    %41 = vector.broadcast %40 : vector<1x64xf32> to vector<8x64xf32>
    %42 = arith.addf %39, %41 : vector<8x64xf32>
    %c0_24 = arith.constant 0 : index
    %c0_25 = arith.constant 0 : index
    %43 = vector.load %arg10[%c0_24, %c0_25] : memref<8x64xf32, #tpu.memory_space<vmem>>, vector<8x64xf32>
    tpu.vector_store %arg10[%c0_24, %c0_25], %42 {strides = array<i32>} : memref<8x64xf32, #tpu.memory_space<vmem>>, vector<8x64xf32>,
    return
  }
  func.func @transform_0(%arg0: i32) -> (i32, i32) {
    %c0_i32 = arith.constant 0 : i32
    %c0_i32_0 = arith.constant 0 : i32
    return %arg0, %c0_i32 : i32, i32
  }
  func.func @transform_1(%arg0: i32) -> (i32, i32) {
    %c0_i32 = arith.constant 0 : i32
    %c0_i32_0 = arith.constant 0 : i32
    %c0_i32_1 = arith.constant 0 : i32
    return %c0_i32, %c0_i32_0 : i32, i32
  }
  func.func @transform_2(%arg0: i32) -> (i32, i32) {
    %c0_i32 = arith.constant 0 : i32
    %c0_i32_0 = arith.constant 0 : i32
    %c0_i32_1 = arith.constant 0 : i32
    return %c0_i32, %c0_i32_0 : i32, i32
  }
  func.func @transform_3(%arg0: i32) -> (i32, i32) {
    %c0_i32 = arith.constant 0 : i32
    %c0_i32_0 = arith.constant 0 : i32
    %c0_i32_1 = arith.constant 0 : i32
    return %c0_i32, %c0_i32_0 : i32, i32
  }
  func.func @transform_4(%arg0: i32) -> (i32, i32) {
    %c0_i32 = arith.constant 0 : i32
    %c0_i32_0 = arith.constant 0 : i32
    %c0_i32_1 = arith.constant 0 : i32
    return %c0_i32, %c0_i32_0 : i32, i32
  }
  func.func @transform_5(%arg0: i32) -> (i32, i32) {
    %c0_i32 = arith.constant 0 : i32
    %c0_i32_0 = arith.constant 0 : i32
    %c0_i32_1 = arith.constant 0 : i32
    return %c0_i32, %c0_i32_0 : i32, i32
  }
  func.func @transform_6(%arg0: i32) -> (i32, i32) {
    %c0_i32 = arith.constant 0 : i32
    %c0_i32_0 = arith.constant 0 : i32
    %c0_i32_1 = arith.constant 0 : i32
    return %c0_i32, %c0_i32_0 : i32, i32
  }
  func.func @transform_7(%arg0: i32) -> (i32, i32) {
    %c0_i32 = arith.constant 0 : i32
    %c0_i32_0 = arith.constant 0 : i32
    %c0_i32_1 = arith.constant 0 : i32
    return %c0_i32, %c0_i32_0 : i32, i32
  }
  func.func @transform_8(%arg0: i32) -> (i32, i32) {
    %c0_i32 = arith.constant 0 : i32
    %c0_i32_0 = arith.constant 0 : i32
    %c0_i32_1 = arith.constant 0 : i32
    return %c0_i32, %c0_i32_0 : i32, i32
  }
  func.func @transform_9(%arg0: i32) -> (i32, i32) {
    %c0_i32 = arith.constant 0 : i32
    %c0_i32_0 = arith.constant 0 : i32
    return %arg0, %c0_i32 : i32, i32
  }
}

module attributes {stable_mosaic.version = 11 : i64} {
  func.func @_block_mlp_kernel(%arg0: i32, %arg1: memref<8x64xf32, #tpu.memory_space<vmem>>, %arg2: memref<8x64xf32, #tpu.memory_space<vmem>>, %arg3: memref<1x64xf32, #tpu.memory_space<vmem>>, %arg4: memref<1x64xf32, #tpu.memory_space<vmem>>, %arg5: memref<64x256xbf16, #tpu.memory_space<vmem>>, %arg6: memref<1x256xf32, #tpu.memory_space<vmem>>, %arg7: memref<256x64xbf16, #tpu.memory_space<vmem>>, %arg8: memref<1x64xf32, #tpu.memory_space<vmem>>, %arg9: memref<8x64xf32, #tpu.memory_space<vmem>>) attributes {dimension_semantics = [#tpu.dimension_semantics<parallel>], iteration_bounds = array<i64: 4>, scalar_prefetch = 0 : i64, scratch_operands = 0 : i64, tpu.core_type = #tpu.core_type<tc>, window_params = [{transform_indices = @transform_0, window_bounds = array<i64: 8, 64>}, {transform_indices = @transform_1, window_bounds = array<i64: 8, 64>}, {pipeline_mode = #tpu.pipeline_mode<synchronous>, transform_indices = @transform_2, window_bounds = array<i64: 1, 64>}, {pipeline_mode = #tpu.pipeline_mode<synchronous>, transform_indices = @transform_3, window_bounds = array<i64: 1, 64>}, {pipeline_mode = #tpu.pipeline_mode<synchronous>, transform_indices = @transform_4, window_bounds = array<i64: 64, 256>}, {pipeline_mode = #tpu.pipeline_mode<synchronous>, transform_indices = @transform_5, window_bounds = array<i64: 1, 256>}, {pipeline_mode = #tpu.pipeline_mode<synchronous>, transform_indices = @transform_6, window_bounds = array<i64: 256, 64>}, {pipeline_mode = #tpu.pipeline_mode<synchronous>, transform_indices = @transform_7, window_bounds = array<i64: 1, 64>}, {transform_indices = @transform_8, window_bounds = array<i64: 8, 64>}]} {
    %c0 = arith.constant 0 : index
    %c0_0 = arith.constant 0 : index
    %0 = vector.load %arg1[%c0, %c0_0] : memref<8x64xf32, #tpu.memory_space<vmem>>, vector<8x64xf32>
    %c0_1 = arith.constant 0 : index
    %c0_2 = arith.constant 0 : index
    %1 = vector.load %arg2[%c0_1, %c0_2] : memref<8x64xf32, #tpu.memory_space<vmem>>, vector<8x64xf32>
    %2 = arith.addf %0, %1 : vector<8x64xf32>
    %cst = arith.constant dense<0.000000e+00> : vector<8xf32>
    %3 = vector.multi_reduction <add>, %2, %cst [1] : vector<8x64xf32> to vector<8xf32>
    %4 = vector.shape_cast %3 : vector<8xf32> to vector<8x1xf32>
    %cst_3 = arith.constant 6.400000e+01 : f32
    %5 = vector.broadcast %cst_3 : f32 to vector<8x1xf32>
    %6 = arith.divf %4, %5 : vector<8x1xf32>
    %7 = vector.broadcast %6 : vector<8x1xf32> to vector<8x64xf32>
    %8 = arith.subf %2, %7 : vector<8x64xf32>
    %9 = arith.mulf %8, %8 : vector<8x64xf32>
    %cst_4 = arith.constant dense<0.000000e+00> : vector<8xf32>
    %10 = vector.multi_reduction <add>, %9, %cst_4 [1] : vector<8x64xf32> to vector<8xf32>
    %11 = vector.shape_cast %10 : vector<8xf32> to vector<8x1xf32>
    %cst_5 = arith.constant 6.400000e+01 : f32
    %12 = vector.broadcast %cst_5 : f32 to vector<8x1xf32>
    %13 = arith.divf %11, %12 : vector<8x1xf32>
    %cst_6 = arith.constant 9.99999997E-7 : f32
    %14 = vector.broadcast %cst_6 : f32 to vector<8x1xf32>
    %15 = arith.addf %13, %14 : vector<8x1xf32>
    %16 = math.rsqrt %15 : vector<8x1xf32>
    %17 = vector.broadcast %16 : vector<8x1xf32> to vector<8x64xf32>
    %18 = arith.mulf %8, %17 : vector<8x64xf32>
    %c0_7 = arith.constant 0 : index
    %c0_8 = arith.constant 0 : index
    %19 = vector.load %arg3[%c0_7, %c0_8] : memref<1x64xf32, #tpu.memory_space<vmem>>, vector<1x64xf32>
    %20 = vector.broadcast %19 : vector<1x64xf32> to vector<8x64xf32>
    %21 = arith.mulf %18, %20 : vector<8x64xf32>
    %c0_9 = arith.constant 0 : index
    %c0_10 = arith.constant 0 : index
    %22 = vector.load %arg4[%c0_9, %c0_10] : memref<1x64xf32, #tpu.memory_space<vmem>>, vector<1x64xf32>
    %23 = vector.broadcast %22 : vector<1x64xf32> to vector<8x64xf32>
    %24 = arith.addf %21, %23 : vector<8x64xf32>
    %25 = arith.truncf %24 : vector<8x64xf32> to vector<8x64xbf16>
    %c0_11 = arith.constant 0 : index
    %c0_12 = arith.constant 0 : index
    %26 = vector.load %arg5[%c0_11, %c0_12] : memref<64x256xbf16, #tpu.memory_space<vmem>>, vector<64x256xbf16>
    %cst_13 = arith.constant dense<0.000000e+00> : vector<8x256xf32>
    %27 = tpu.matmul %25, %26, %cst_13 {dimension_numbers = #tpu.dot_dimension_numbers<[1], [0], [0], [1], [0, 0, 1, 1], [], []>} : vector<8x64xbf16>, vector<64x256xbf16>, vector<8x256xf32> -> vector<8x256xf32>
    %c0_14 = arith.constant 0 : index
    %c0_15 = arith.constant 0 : index
    %28 = vector.load %arg6[%c0_14, %c0_15] : memref<1x256xf32, #tpu.memory_space<vmem>>, vector<1x256xf32>
    %29 = vector.broadcast %28 : vector<1x256xf32> to vector<8x256xf32>
    %30 = arith.addf %27, %29 : vector<8x256xf32>
    %cst_16 = arith.constant 5.000000e-01 : f32
    %31 = vector.broadcast %cst_16 : f32 to vector<8x256xf32>
    %32 = arith.mulf %31, %30 : vector<8x256xf32>
    %cst_17 = arith.constant 4.471500e-02 : f32
    %33 = vector.broadcast %cst_17 : f32 to vector<8x256xf32>
    %34 = arith.mulf %33, %30 : vector<8x256xf32>
    %35 = arith.mulf %34, %30 : vector<8x256xf32>
    %36 = arith.mulf %35, %30 : vector<8x256xf32>
    %37 = arith.addf %30, %36 : vector<8x256xf32>
    %cst_18 = arith.constant 0.797884583 : f32
    %38 = vector.broadcast %cst_18 : f32 to vector<8x256xf32>
    %39 = arith.mulf %38, %37 : vector<8x256xf32>
    %40 = math.tanh %39 : vector<8x256xf32>
    %cst_19 = arith.constant 1.000000e+00 : f32
    %41 = vector.broadcast %cst_19 : f32 to vector<8x256xf32>
    %42 = arith.addf %41, %40 : vector<8x256xf32>
    %43 = arith.mulf %32, %42 : vector<8x256xf32>
    %44 = arith.truncf %43 : vector<8x256xf32> to vector<8x256xbf16>
    %c0_20 = arith.constant 0 : index
    %c0_21 = arith.constant 0 : index
    %45 = vector.load %arg7[%c0_20, %c0_21] : memref<256x64xbf16, #tpu.memory_space<vmem>>, vector<256x64xbf16>
    %cst_22 = arith.constant dense<0.000000e+00> : vector<8x64xf32>
    %46 = tpu.matmul %44, %45, %cst_22 {dimension_numbers = #tpu.dot_dimension_numbers<[1], [0], [0], [1], [0, 0, 1, 1], [], []>} : vector<8x256xbf16>, vector<256x64xbf16>, vector<8x64xf32> -> vector<8x64xf32>
    %c0_23 = arith.constant 0 : index
    %c0_24 = arith.constant 0 : index
    %47 = vector.load %arg8[%c0_23, %c0_24] : memref<1x64xf32, #tpu.memory_space<vmem>>, vector<1x64xf32>
    %48 = vector.broadcast %47 : vector<1x64xf32> to vector<8x64xf32>
    %49 = arith.addf %46, %48 : vector<8x64xf32>
    %50 = arith.addf %2, %49 : vector<8x64xf32>
    %c0_25 = arith.constant 0 : index
    %c0_26 = arith.constant 0 : index
    %51 = vector.load %arg9[%c0_25, %c0_26] : memref<8x64xf32, #tpu.memory_space<vmem>>, vector<8x64xf32>
    tpu.vector_store %arg9[%c0_25, %c0_26], %50 {strides = array<i32>} : memref<8x64xf32, #tpu.memory_space<vmem>>, vector<8x64xf32>,
    return
  }
  func.func @transform_0(%arg0: i32) -> (i32, i32) {
    %c0_i32 = arith.constant 0 : i32
    %c0_i32_0 = arith.constant 0 : i32
    return %arg0, %c0_i32 : i32, i32
  }
  func.func @transform_1(%arg0: i32) -> (i32, i32) {
    %c0_i32 = arith.constant 0 : i32
    %c0_i32_0 = arith.constant 0 : i32
    return %arg0, %c0_i32 : i32, i32
  }
  func.func @transform_2(%arg0: i32) -> (i32, i32) {
    %c0_i32 = arith.constant 0 : i32
    %c0_i32_0 = arith.constant 0 : i32
    %c0_i32_1 = arith.constant 0 : i32
    return %c0_i32, %c0_i32_0 : i32, i32
  }
  func.func @transform_3(%arg0: i32) -> (i32, i32) {
    %c0_i32 = arith.constant 0 : i32
    %c0_i32_0 = arith.constant 0 : i32
    %c0_i32_1 = arith.constant 0 : i32
    return %c0_i32, %c0_i32_0 : i32, i32
  }
  func.func @transform_4(%arg0: i32) -> (i32, i32) {
    %c0_i32 = arith.constant 0 : i32
    %c0_i32_0 = arith.constant 0 : i32
    %c0_i32_1 = arith.constant 0 : i32
    return %c0_i32, %c0_i32_0 : i32, i32
  }
  func.func @transform_5(%arg0: i32) -> (i32, i32) {
    %c0_i32 = arith.constant 0 : i32
    %c0_i32_0 = arith.constant 0 : i32
    %c0_i32_1 = arith.constant 0 : i32
    return %c0_i32, %c0_i32_0 : i32, i32
  }
  func.func @transform_6(%arg0: i32) -> (i32, i32) {
    %c0_i32 = arith.constant 0 : i32
    %c0_i32_0 = arith.constant 0 : i32
    %c0_i32_1 = arith.constant 0 : i32
    return %c0_i32, %c0_i32_0 : i32, i32
  }
  func.func @transform_7(%arg0: i32) -> (i32, i32) {
    %c0_i32 = arith.constant 0 : i32
    %c0_i32_0 = arith.constant 0 : i32
    %c0_i32_1 = arith.constant 0 : i32
    return %c0_i32, %c0_i32_0 : i32, i32
  }
  func.func @transform_8(%arg0: i32) -> (i32, i32) {
    %c0_i32 = arith.constant 0 : i32
    %c0_i32_0 = arith.constant 0 : i32
    return %arg0, %c0_i32 : i32, i32
  }
}

</mosaic_0001>

<llo_original>
// kernel: tpu_custom_call.1
$region0: #{tpu_custom_call.1}
  #allocation0 [shape = 'u32[]', space=smem, size = 0x4, offset = 0x4, fixed_abs, tag = 'smem constant byte address 0x4 - core index']
  #allocation1 [shape = 'u32[144,128]{1,0:T(1,128)}', space=vmem, size = 0x12000, scoped, tag = 'internal scratch']
  %s0 = inlined_call_operand.hbm [shape: f32[16,128], index: 0, kind: input, shape index: {}]
  %s1 = inlined_call_operand.hbm [shape: f32[8,128], index: 1, kind: input, shape index: {}]
  %s2 = inlined_call_operand.hbm [shape: f32[16,128], index: 2, kind: output, shape index: {}]
  %s3 = sld [smem:[#allocation0]]
  $region49: #{tpu_custom_call.1} parent=0
    _
  %s5 = ssub.s32 1, %s3
  %s6 = scalar_select 0, %s5, %s3
  $region1: #{tpu_custom_call.1} parent=0
    #allocation2 [shape = 'u8[8192]{0}', space=vmem, size = 0x2000, scoped, tag = 'input window, operand 0']
    #allocation3 [shape = 's32[2]{0}', space=sflag, size = 0x8, scoped, tag = 'scoped memory for tpu_custom_call.1']
    #allocation4 [shape = 's32[2]{0}', space=sflag, size = 0x8, scoped, tag = 'scoped memory for tpu_custom_call.1']
    #allocation5 [shape = 'u8[4096]{0}', space=vmem, size = 0x1000, scoped, tag = 'input window, operand 1, single buffered']
    #allocation6 [shape = 's32[1]{0}', space=sflag, size = 0x4, scoped, tag = 'scoped memory for tpu_custom_call.1']
    #allocation7 [shape = 'u8[8192]{0}', space=vmem, size = 0x2000, scoped, tag = 'output window, operand 0']
    %7 = vsyncpa [#allocation3], 0
    %s8 = scalar_lea.sflag [#allocation3], 1
    %9 = vsyncpa %s8, 0
    %10 = vsyncpa [#allocation6], 0
    %11 = vsyncpa [#allocation4], 0
    %s12 = scalar_lea.sflag [#allocation4], 1
    %13 = vsyncpa %s12, 0
    loop: start=0, step=1, limit=4
    $region2: #{tpu_custom_call.1} parent=1 // loop_pre_header
      _
    $region3: #{tpu_custom_call.1} parent=1 // loop_header
      %s15 = sphi 0, %s19
      %p16 = scmp.ge.s32.totalorder %s15, 4
      %s25 = sphi 0, %s27
      %s28 = sphi 0, %s25
      %s29 = sphi 0, %s28
      %s45 = sphi 0, %s29
      %s49 = sphi 0, %s49
      %s51 = sphi 0, %s49
      %s52 = sphi 0, %s51
      %s66 = sphi 0, %s52
      %s72 = sphi 0, %s74
      %s75 = sphi 0, %s72
      %s76 = sphi 0, %s75
      %s92 = sphi 0, %s76
    $region4: #{tpu_custom_call.1} parent=1 // loop_header_branch
      %18 = sbr.rel (%p16) target = $region8
    $region5: #{tpu_custom_call.1} parent=1 // loop_body
      %s20 = ssub.s32 %s15, 1
      %s21 = ssub.s32 %s15, 2
      %s22 = sadd.s32 %s15, 1
      %s23 = ssub.s32 %s15, %s22
      %p24 = scmp.eq.s32.totalorder %s23, 0
      %s26 = sadd.s32 %s25, 1
      %s27 = scalar_select %p24, %s25, %s26
      %p30 = pneg %p24
      %p31 = scmp.eq.s32.totalorder %s15, 1
      %p32 = por %p30, %p31
      %p33 = scmp.ne.s32.totalorder %s25, %s28
      %p34 = scmp.eq.s32.totalorder %s15, 0
      %p35 = por %p33, %p34
      %p36 = scmp.ne.s32.totalorder %s25, %s28
      %p37 = scmp.eq.s32.totalorder %s20, 1
      %p38 = por %p36, %p37
      %p39 = scmp.ne.s32.totalorder %s28, %s29
      %p40 = scmp.eq.s32.totalorder %s20, 0
      %p41 = por %p39, %p40
      %p42 = scmp.ne.s32.totalorder %s28, %s29
      %p43 = scmp.eq.s32.totalorder %s21, 1
      %p44 = por %p42, %p43
      %p46 = scmp.ne.s32.totalorder %s29, %s45
      %p47 = scmp.eq.s32.totalorder %s21, 0
      %p48 = por %p46, %p47
      %s50 = sadd.s32 %s49, 1
      %p53 = scmp.eq.s32.totalorder %s15, 1
      %p54 = scmp.ne.s32.totalorder %s49, %s51
      %p55 = scmp.eq.s32.totalorder %s15, 0
      %p56 = por %p54, %p55
      %p57 = scmp.ne.s32.totalorder %s49, %s51
      %p58 = scmp.eq.s32.totalorder %s20, 1
      %p59 = por %p57, %p58
      %p60 = scmp.ne.s32.totalorder %s51, %s52
      %p61 = scmp.eq.s32.totalorder %s20, 0
      %p62 = por %p60, %p61
      %p63 = scmp.ne.s32.totalorder %s51, %s52
      %p64 = scmp.eq.s32.totalorder %s21, 1
      %p65 = por %p63, %p64
      %p67 = scmp.ne.s32.totalorder %s52, %s66
      %p68 = scmp.eq.s32.totalorder %s21, 0
      %p69 = por %p67, %p68
      %s70 = ssub.s32 %s15, %s22
      %p71 = scmp.eq.s32.totalorder %s70, 0
      %s73 = sadd.s32 %s72, 1
      %s74 = scalar_select %p71, %s72, %s73
      %p77 = pneg %p71
      %p78 = scmp.eq.s32.totalorder %s15, 1
      %p79 = por %p77, %p78
      %p80 = scmp.ne.s32.totalorder %s72, %s75
      %p81 = scmp.eq.s32.totalorder %s15, 0
      %p82 = por %p80, %p81
      %p83 = scmp.ne.s32.totalorder %s72, %s75
      %p84 = scmp.eq.s32.totalorder %s20, 1
      %p85 = por %p83, %p84
      %p86 = scmp.ne.s32.totalorder %s75, %s76
      %p87 = scmp.eq.s32.totalorder %s20, 0
      %p88 = por %p86, %p87
      %p89 = scmp.ne.s32.totalorder %s75, %s76
      %p90 = scmp.eq.s32.totalorder %s21, 1
      %p91 = por %p89, %p90
      %p93 = scmp.ne.s32.totalorder %s76, %s92
      %p94 = scmp.eq.s32.totalorder %s21, 0
      %p95 = por %p93, %p94
      %p96 = scmp.le.s32.totalorder 1, %s15
      %p97 = scmp.lt.s32.totalorder %s15, 3
      %p98 = pnand %p96, %p97
      %p99 = pneg %p98
      // Predicated region
      $region9: #{tpu_custom_call.1} parent=5 // pred_check
        _
      $region10: #{tpu_custom_call.1} parent=5 // pred_check_branch
        %101 = sbr.rel (%p98) target = $region12
      $region11: #{tpu_custom_call.1} parent=5 // pred_region
        %s102 = ssub.s32 %s15, 1
        // Predicated region
        $region13: #{tpu_custom_call.1} parent=11 // pred_check
          %p103 = pneg %p62
        $region14: #{tpu_custom_call.1} parent=11 // pred_check_branch
          %105 = sbr.rel (%p103) target = $region16
        $region15: #{tpu_custom_call.1} parent=11 // pred_region
          %s107 = ssub.s32 128, 128
          %108 = vsyncadd [#allocation6], %s107
          %s110 = sshll.u32 [#allocation5], 4
          %s111 = int_to_ptr.vmem [resolvable:$true] %s110
          %113 = dma.hbm_to_vmem [thread:$0]  %s1, 128, %s111, [#allocation6]
        $region16: #{tpu_custom_call.1} parent=11 // pred_fallthru
          _
      $region12: #{tpu_custom_call.1} parent=5 // pred_fallthru
        _
      %p114 = scmp.lt.s32.totalorder %s15, 2
      // Predicated region
      $region17: #{tpu_custom_call.1} parent=5 // pred_check
        %p115 = pneg %p114
      $region18: #{tpu_custom_call.1} parent=5 // pred_check_branch
        %117 = sbr.rel (%p115) target = $region20
      $region19: #{tpu_custom_call.1} parent=5 // pred_region
        // Predicated region
        $region21: #{tpu_custom_call.1} parent=19 // pred_check
          %p118 = pneg %p35
        $region22: #{tpu_custom_call.1} parent=19 // pred_check_branch
          %120 = sbr.rel (%p118) target = $region24
        $region23: #{tpu_custom_call.1} parent=19 // pred_region
          %s121 = sand.u32 %s25, 1
          %s122 = scalar_lea.sflag [#allocation3], %s121
          %s123 = sand.u32 %s25, 1
          %s124 = smul.addr %s123, 8
          %s125 = scalar_lea.vmem [#allocation2], %s124
          %s127 = ssub.s32 128, 128
          %128 = vsyncadd %s122, %s127
          %s129 = smul.addr %s15, 128
          %s130 = scalar_lea.hbm %s0, %s129
          %s132 = sshll.u32 %s125, 4
          %s133 = int_to_ptr.vmem [resolvable:$true] %s132
          %135 = dma.hbm_to_vmem [thread:$0]  %s130, 128, %s133, %s122
        $region24: #{tpu_custom_call.1} parent=19 // pred_fallthru
          _
      $region20: #{tpu_custom_call.1} parent=5 // pred_fallthru
        _
      %p136 = scmp.le.s32.totalorder 1, %s15
      %p137 = scmp.lt.s32.totalorder %s15, 3
      %p138 = pnand %p136, %p137
      %p139 = pneg %p138
      // Predicated region
      $region25: #{tpu_custom_call.1} parent=5 // pred_check
        _
      $region26: #{tpu_custom_call.1} parent=5 // pred_check_branch
        %141 = sbr.rel (%p138) target = $region28
      $region27: #{tpu_custom_call.1} parent=5 // pred_region
        %s142 = ssub.s32 %s15, 1
        %s143 = sand.u32 %s28, 1
        %s144 = scalar_lea.sflag [#allocation3], %s143
        %s145 = sand.u32 %s28, 1
        %s146 = smul.addr %s145, 8
        %s147 = scalar_lea.vmem [#allocation2], %s146
        // Predicated region
        $region29: #{tpu_custom_call.1} parent=27 // pred_check
          %p148 = pneg %p41
        $region30: #{tpu_custom_call.1} parent=27 // pred_check_branch
          %150 = sbr.rel (%p148) target = $region32
        $region31: #{tpu_custom_call.1} parent=27 // pred_region
          %151 = dma.done %s144, 128
        $region32: #{tpu_custom_call.1} parent=27 // pred_fallthru
          _
        // Predicated region
        $region33: #{tpu_custom_call.1} parent=27 // pred_check
          %p152 = pneg %p62
        $region34: #{tpu_custom_call.1} parent=27 // pred_check_branch
          %154 = sbr.rel (%p152) target = $region36
        $region35: #{tpu_custom_call.1} parent=27 // pred_region
          %155 = dma.done [#allocation6], 128
        $region36: #{tpu_custom_call.1} parent=27 // pred_fallthru
          _
        %s156 = sand.u32 %s28, 1
        %s157 = scalar_lea.sflag [#allocation3], %s156
        %s158 = sand.u32 %s28, 1
        %s159 = smul.addr %s158, 8
        %s160 = scalar_lea.vmem [#allocation2], %s159
        %p161 = pneg %p41
        %p162 = pneg %p38
        %p163 = pneg %p62
        %p164 = pneg %p59
        %p165 = pneg %p88
        %p166 = pneg %p85
        %s167 = sand.u32 %s75, 1
        %s168 = scalar_lea.sflag [#allocation4], %s167
        %s169 = sand.u32 %s75, 1
        %s170 = smul.addr %s169, 8
        %s171 = scalar_lea.vmem [#allocation7], %s170
        %v172 = vld [vmem:[%s147] sm:$0xff]
        %v173 = vld [vmem:[#allocation5] sm:$0xff]
        %v174 = vadd.f32 %v172, %v173
        %175 = vst [vmem:[%s171] sm:$0xff] %v174
        %s176 = sand.u32 %s75, 1
        %s177 = scalar_lea.sflag [#allocation4], %s176
        %s178 = sand.u32 %s75, 1
        %s179 = smul.addr %s178, 8
        %s180 = scalar_lea.vmem [#allocation7], %s179
        // Predicated region
        $region37: #{tpu_custom_call.1} parent=27 // pred_check
          %p181 = pneg %p85
        $region38: #{tpu_custom_call.1} parent=27 // pred_check_branch
          %183 = sbr.rel (%p181) target = $region40
        $region39: #{tpu_custom_call.1} parent=27 // pred_region
          %s185 = ssub.s32 128, 128
          %186 = vsyncadd %s177, %s185
          %s187 = smul.addr %s20, 128
          %s188 = scalar_lea.hbm %s2, %s187
          %s190 = sshll.u32 %s180, 4
          %s191 = int_to_ptr.vmem [resolvable:$true] %s190
          %193 = dma.vmem_to_hbm [thread:$0]  %s191, 128, %s188, %s177
        $region40: #{tpu_custom_call.1} parent=27 // pred_fallthru
          _
      $region28: #{tpu_custom_call.1} parent=5 // pred_fallthru
        _
      %p194 = scmp.le.s32.totalorder 2, %s15
      // Predicated region
      $region41: #{tpu_custom_call.1} parent=5 // pred_check
        %p195 = pneg %p194
      $region42: #{tpu_custom_call.1} parent=5 // pred_check_branch
        %197 = sbr.rel (%p195) target = $region44
      $region43: #{tpu_custom_call.1} parent=5 // pred_region
        %s198 = ssub.s32 %s15, 2
        // Predicated region
        $region45: #{tpu_custom_call.1} parent=43 // pred_check
          %p199 = pneg %p91
        $region46: #{tpu_custom_call.1} parent=43 // pred_check_branch
          %201 = sbr.rel (%p199) target = $region48
        $region47: #{tpu_custom_call.1} parent=43 // pred_region
          %s202 = sand.u32 %s76, 1
          %s203 = scalar_lea.sflag [#allocation4], %s202
          %s204 = sand.u32 %s76, 1
          %s205 = smul.addr %s204, 8
          %s206 = scalar_lea.vmem [#allocation7], %s205
          %207 = dma.done %s203, 128
        $region48: #{tpu_custom_call.1} parent=43 // pred_fallthru
          _
      $region44: #{tpu_custom_call.1} parent=5 // pred_fallthru
        _
    $region6: #{tpu_custom_call.1} parent=1 // loop_footer
      %s19 = sadd.s32 1, %s15
    $region7: #{tpu_custom_call.1} parent=1 // loop_footer_branch
      %14 = sbr.rel target = $region3
    $region8: #{tpu_custom_call.1} parent=1 // loop_exit
      _
    %208 = vsyncpa [#allocation3], 1
    %s209 = scalar_lea.sflag [#allocation3], 1
    %210 = vsyncpa %s209, 1
    %211 = vsyncpa [#allocation6], 1
    %212 = vsyncpa [#allocation4], 1
    %s213 = scalar_lea.sflag [#allocation4], 1
    %214 = vsyncpa %s213, 1

// kernel: afno_forward.8
$region0: #{afno_forward.8}
  #allocation0 [shape = 'u32[]', space=smem, size = 0x4, offset = 0x4, fixed_abs, tag = 'smem constant byte address 0x4 - core index']
  #allocation1 [shape = 'u32[144,128]{1,0:T(1,128)}', space=vmem, size = 0x12000, scoped, tag = 'internal scratch']
  %s0 = inlined_call_operand.vmem [shape: f32[32,256], index: 0, kind: input, shape index: {}]
  %s1 = inlined_call_operand.vmem [shape: bf16[256,64], index: 1, kind: input, shape index: {}]
  %s2 = inlined_call_operand.vmem [shape: f32[1,64], index: 2, kind: input, shape index: {}]
  %s3 = inlined_call_operand.vmem [shape: f32[32,64], index: 3, kind: output, shape index: {}]
  %s4 = sld [smem:[#allocation0]]
  $region45: #{afno_forward.8} parent=0
    _
  %s6 = ssub.s32 1, %s4
  %s7 = scalar_select 0, %s6, %s4
  loop: start=0, step=1, limit=6
  $region2: #{afno_forward.8} parent=0 // loop_pre_header
    _
  $region3: #{afno_forward.8} parent=0 // loop_header
    %s9 = sphi 0, %s13
    %p10 = scmp.ge.s32.totalorder %s9, 6
    %s19 = sphi 0, %s21
    %s22 = sphi 0, %s19
    %s23 = sphi 0, %s22
    %s39 = sphi 0, %s23
    %s43 = sphi 0, %s43
    %s45 = sphi 0, %s43
    %s46 = sphi 0, %s45
    %s60 = sphi 0, %s46
    %s64 = sphi 0, %s64
    %s66 = sphi 0, %s64
    %s67 = sphi 0, %s66
    %s81 = sphi 0, %s67
    %s87 = sphi 0, %s89
    %s90 = sphi 0, %s87
    %s91 = sphi 0, %s90
    %s107 = sphi 0, %s91
  $region4: #{afno_forward.8} parent=0 // loop_header_branch
    %12 = sbr.rel (%p10) target = $region8
  $region5: #{afno_forward.8} parent=0 // loop_body
    %s14 = ssub.s32 %s9, 1
    %s15 = ssub.s32 %s9, 2
    %s16 = sadd.s32 %s9, 1
    %s17 = ssub.s32 %s9, %s16
    %p18 = scmp.eq.s32.totalorder %s17, 0
    %s20 = sadd.s32 %s19, 1
    %s21 = scalar_select %p18, %s19, %s20
    %p24 = pneg %p18
    %p25 = scmp.eq.s32.totalorder %s9, 3
    %p26 = por %p24, %p25
    %p27 = scmp.ne.s32.totalorder %s19, %s22
    %p28 = scmp.eq.s32.totalorder %s9, 0
    %p29 = por %p27, %p28
    %p30 = scmp.ne.s32.totalorder %s19, %s22
    %p31 = scmp.eq.s32.totalorder %s14, 3
    %p32 = por %p30, %p31
    %p33 = scmp.ne.s32.totalorder %s22, %s23
    %p34 = scmp.eq.s32.totalorder %s14, 0
    %p35 = por %p33, %p34
    %p36 = scmp.ne.s32.totalorder %s22, %s23
    %p37 = scmp.eq.s32.totalorder %s15, 3
    %p38 = por %p36, %p37
    %p40 = scmp.ne.s32.totalorder %s23, %s39
    %p41 = scmp.eq.s32.totalorder %s15, 0
    %p42 = por %p40, %p41
    %s44 = sadd.s32 %s43, 1
    %p47 = scmp.eq.s32.totalorder %s9, 3
    %p48 = scmp.ne.s32.totalorder %s43, %s45
    %p49 = scmp.eq.s32.totalorder %s9, 0
    %p50 = por %p48, %p49
    %p51 = scmp.ne.s32.totalorder %s43, %s45
    %p52 = scmp.eq.s32.totalorder %s14, 3
    %p53 = por %p51, %p52
    %p54 = scmp.ne.s32.totalorder %s45, %s46
    %p55 = scmp.eq.s32.totalorder %s14, 0
    %p56 = por %p54, %p55
    %p57 = scmp.ne.s32.totalorder %s45, %s46
    %p58 = scmp.eq.s32.totalorder %s15, 3
    %p59 = por %p57, %p58
    %p61 = scmp.ne.s32.totalorder %s46, %s60
    %p62 = scmp.eq.s32.totalorder %s15, 0
    %p63 = por %p61, %p62
    %s65 = sadd.s32 %s64, 1
    %p68 = scmp.eq.s32.totalorder %s9, 3
    %p69 = scmp.ne.s32.totalorder %s64, %s66
    %p70 = scmp.eq.s32.totalorder %s9, 0
    %p71 = por %p69, %p70
    %p72 = scmp.ne.s32.totalorder %s64, %s66
    %p73 = scmp.eq.s32.totalorder %s14, 3
    %p74 = por %p72, %p73
    %p75 = scmp.ne.s32.totalorder %s66, %s67
    %p76 = scmp.eq.s32.totalorder %s14, 0
    %p77 = por %p75, %p76
    %p78 = scmp.ne.s32.totalorder %s66, %s67
    %p79 = scmp.eq.s32.totalorder %s15, 3
    %p80 = por %p78, %p79
    %p82 = scmp.ne.s32.totalorder %s67, %s81
    %p83 = scmp.eq.s32.totalorder %s15, 0
    %p84 = por %p82, %p83
    %s85 = ssub.s32 %s9, %s16
    %p86 = scmp.eq.s32.totalorder %s85, 0
    %s88 = sadd.s32 %s87, 1
    %s89 = scalar_select %p86, %s87, %s88
    %p92 = pneg %p86
    %p93 = scmp.eq.s32.totalorder %s9, 3
    %p94 = por %p92, %p93
    %p95 = scmp.ne.s32.totalorder %s87, %s90
    %p96 = scmp.eq.s32.totalorder %s9, 0
    %p97 = por %p95, %p96
    %p98 = scmp.ne.s32.totalorder %s87, %s90
    %p99 = scmp.eq.s32.totalorder %s14, 3
    %p100 = por %p98, %p99
    %p101 = scmp.ne.s32.totalorder %s90, %s91
    %p102 = scmp.eq.s32.totalorder %s14, 0
    %p103 = por %p101, %p102
    %p104 = scmp.ne.s32.totalorder %s90, %s91
    %p105 = scmp.eq.s32.totalorder %s15, 3
    %p106 = por %p104, %p105
    %p108 = scmp.ne.s32.totalorder %s91, %s107
    %p109 = scmp.eq.s32.totalorder %s15, 0
    %p110 = por %p108, %p109
    %p111 = scmp.le.s32.totalorder 1, %s9
    %p112 = scmp.lt.s32.totalorder %s9, 5
    %p113 = pnand %p111, %p112
    %p114 = pneg %p113
    // Predicated region
    $region9: #{afno_forward.8} parent=5 // pred_check
      _
    $region10: #{afno_forward.8} parent=5 // pred_check_branch
      %116 = sbr.rel (%p113) target = $region12
    $region11: #{afno_forward.8} parent=5 // pred_region
      %s117 = ssub.s32 %s9, 1
      // Predicated region
      $region13: #{afno_forward.8} parent=11 // pred_check
        %p118 = pneg %p56
      $region14: #{afno_forward.8} parent=11 // pred_check_branch
        %120 = sbr.rel (%p118) target = $region16
      $region15: #{afno_forward.8} parent=11 // pred_region
        _
      $region16: #{afno_forward.8} parent=11 // pred_fallthru
        _
      // Predicated region
      $region17: #{afno_forward.8} parent=11 // pred_check
        %p121 = pneg %p77
      $region18: #{afno_forward.8} parent=11 // pred_check_branch
        %123 = sbr.rel (%p121) target = $region20
      $region19: #{afno_forward.8} parent=11 // pred_region
        _
      $region20: #{afno_forward.8} parent=11 // pred_fallthru
        _
    $region12: #{afno_forward.8} parent=5 // pred_fallthru
      _
    %p124 = scmp.lt.s32.totalorder %s9, 4
    // Predicated region
    $region21: #{afno_forward.8} parent=5 // pred_check
      %p125 = pneg %p124
    $region22: #{afno_forward.8} parent=5 // pred_check_branch
      %127 = sbr.rel (%p125) target = $region24
    $region23: #{afno_forward.8} parent=5 // pred_region
      // Predicated region
      $region25: #{afno_forward.8} parent=23 // pred_check
        %p128 = pneg %p29
      $region26: #{afno_forward.8} parent=23 // pred_check_branch
        %130 = sbr.rel (%p128) target = $region28
      $region27: #{afno_forward.8} parent=23 // pred_region
        %p131 = scmp.lt.s32.totalorder %s9, 3
        %s132 = scalar_select %p131, %s9, 3
        %s133 = smul.addr %s132, 2
        %s134 = smul.addr %s133, 8
        %s135 = scalar_lea.vmem %s0, %s134
      $region28: #{afno_forward.8} parent=23 // pred_fallthru
        _
    $region24: #{afno_forward.8} parent=5 // pred_fallthru
      _
    %p136 = scmp.le.s32.totalorder 1, %s9
    %p137 = scmp.lt.s32.totalorder %s9, 5
    %p138 = pnand %p136, %p137
    %p139 = pneg %p138
    // Predicated region
    $region29: #{afno_forward.8} parent=5 // pred_check
      _
    $region30: #{afno_forward.8} parent=5 // pred_check_branch
      %141 = sbr.rel (%p138) target = $region32
    $region31: #{afno_forward.8} parent=5 // pred_region
      %s142 = ssub.s32 %s9, 1
      %p143 = scmp.lt.s32.totalorder %s14, 3
      %s144 = scalar_select %p143, %s14, 3
      %s145 = smul.addr %s144, 2
      %s146 = smul.addr %s145, 8
      %s147 = scalar_lea.vmem %s0, %s146
      %p148 = pneg %p35
      %p149 = pneg %p32
      %p150 = pneg %p56
      %p151 = pneg %p53
      %p152 = pneg %p77
      %p153 = pneg %p74
      %p154 = pneg %p103
      %p155 = pneg %p100
      %p156 = scmp.lt.s32.totalorder %s14, 3
      %s157 = scalar_select %p156, %s14, 3
      %s158 = smul.addr %s157, 8
      %s159 = scalar_lea.vmem %s3, %s158
      %p160 = scmp.lt.s32.totalorder %s14, 3
      %s161 = scalar_select %p160, %s14, 3
      %s162 = smul.addr %s161, 2
      %s163 = smul.addr %s162, 8
      %s164 = scalar_lea.vmem %s0, %s163
      %p165 = scmp.lt.s32.totalorder %s14, 3
      %s166 = scalar_select %p165, %s14, 3
      %s167 = smul.addr %s166, 8
      %s168 = scalar_lea.vmem %s3, %s167
      %v170 = vld [vmem:[%s164] sm:$0xff]
      %v171 = vld [vmem:[%s164 + $0x8] sm:$0xff]
      %v172 = vpack.c.bf16 %v170, %v170
      %v173 = vpack.c.bf16 %v171, %v171
      %v174 = vld [vmem:[%s1] sm:$0xf]
      %v175 = vld [vmem:[%s1 + $0x4] sm:$0xf]
      %v176 = vld [vmem:[%s1 + $0x8] sm:$0xf]
      %v177 = vld [vmem:[%s1 + $0xc] sm:$0xf]
      %v178 = vld [vmem:[%s1 + $0x10] sm:$0xf]
      %v179 = vld [vmem:[%s1 + $0x14] sm:$0xf]
      %v180 = vld [vmem:[%s1 + $0x18] sm:$0xf]
      %v181 = vld [vmem:[%s1 + $0x1c] sm:$0xf]
      %v182 = vld [vmem:[%s1 + $0x20] sm:$0xf]
      %v183 = vld [vmem:[%s1 + $0x24] sm:$0xf]
      %v184 = vld [vmem:[%s1 + $0x28] sm:$0xf]
      %v185 = vld [vmem:[%s1 + $0x2c] sm:$0xf]
      %v186 = vld [vmem:[%s1 + $0x30] sm:$0xf]
      %v187 = vld [vmem:[%s1 + $0x34] sm:$0xf]
      %v188 = vld [vmem:[%s1 + $0x38] sm:$0xf]
      %v189 = vld [vmem:[%s1 + $0x3c] sm:$0xf]
      %v190 = vld [vmem:[%s1 + $0x40] sm:$0xf]
      %v191 = vld [vmem:[%s1 + $0x44] sm:$0xf]
      %v192 = vld [vmem:[%s1 + $0x48] sm:$0xf]
      %v193 = vld [vmem:[%s1 + $0x4c] sm:$0xf]
      %v194 = vld [vmem:[%s1 + $0x50] sm:$0xf]
      %v195 = vld [vmem:[%s1 + $0x54] sm:$0xf]
      %v196 = vld [vmem:[%s1 + $0x58] sm:$0xf]
      %v197 = vld [vmem:[%s1 + $0x5c] sm:$0xf]
      %v198 = vld [vmem:[%s1 + $0x60] sm:$0xf]
      %v199 = vld [vmem:[%s1 + $0x64] sm:$0xf]
      %v200 = vld [vmem:[%s1 + $0x68] sm:$0xf]
      %v201 = vld [vmem:[%s1 + $0x6c] sm:$0xf]
      %v202 = vld [vmem:[%s1 + $0x70] sm:$0xf]
      %v203 = vld [vmem:[%s1 + $0x74] sm:$0xf]
      %v204 = vld [vmem:[%s1 + $0x78] sm:$0xf]
      %v205 = vld [vmem:[%s1 + $0x7c] sm:$0xf]
      %v206 = vld [vmem:[%s2] sm:$0x1]
      %v208 = vlaneseq
      %v209 = vshrl.u32 %v208, 7
      %v210 = vsub.s32 0, %v209
      %v211 = vrot.slane %v206, %v210
      %v245 = vunpack.c.l.b16 %v174
      %v246 = vunpack.c.l.b16 %v175
      %v247 = vunpack.c.l.b16 %v176
      %v248 = vunpack.c.l.b16 %v177
      %v249 = vunpack.c.l.b16 %v178
      %v250 = vunpack.c.l.b16 %v179
      %v251 = vunpack.c.l.b16 %v180
      %v252 = vunpack.c.l.b16 %v181
      %v253 = vunpack.c.l.b16 %v182
      %v254 = vunpack.c.l.b16 %v183
      %v255 = vunpack.c.l.b16 %v184
      %v256 = vunpack.c.l.b16 %v185
      %v257 = vunpack.c.l.b16 %v186
      %v258 = vunpack.c.l.b16 %v187
      %v259 = vunpack.c.l.b16 %v188
      %v260 = vunpack.c.l.b16 %v189
      %v261 = vunpack.c.l.b16 %v190
      %v262 = vunpack.c.l.b16 %v191
      %v263 = vunpack.c.l.b16 %v192
      %v264 = vunpack.c.l.b16 %v193
      %v265 = vunpack.c.l.b16 %v194
      %v266 = vunpack.c.l.b16 %v195
      %v267 = vunpack.c.l.b16 %v196
      %v268 = vunpack.c.l.b16 %v197
      %v269 = vunpack.c.l.b16 %v198
      %v270 = vunpack.c.l.b16 %v199
      %v271 = vunpack.c.l.b16 %v200
      %v272 = vunpack.c.l.b16 %v201
      %v273 = vunpack.c.l.b16 %v202
      %v274 = vunpack.c.l.b16 %v203
      %v275 = vunpack.c.l.b16 %v204
      %v276 = vunpack.c.l.b16 %v205
      %v277 = vpack.c.b16 %v246, %v245
      %v278 = vpack.c.b16 %v248, %v247
      %v279 = vpack.c.b16 %v250, %v249
      %v280 = vpack.c.b16 %v252, %v251
      %v281 = vpack.c.b16 %v254, %v253
      %v282 = vpack.c.b16 %v256, %v255
      %v283 = vpack.c.b16 %v258, %v257
      %v284 = vpack.c.b16 %v260, %v259
      %v285 = vpack.c.b16 %v262, %v261
      %v286 = vpack.c.b16 %v264, %v263
      %v287 = vpack.c.b16 %v266, %v265
      %v288 = vpack.c.b16 %v268, %v267
      %v289 = vpack.c.b16 %v270, %v269
      %v290 = vpack.c.b16 %v272, %v271
      %v291 = vpack.c.b16 %v274, %v273
      %v292 = vpack.c.b16 %v276, %v275
      %309 = vmatprep.subr.bf16.mxu0 0
      %310 = vmatpush1.bf16.msra.mxu0 %v277
      %311 = vmatprep.subr.bf16.mxu0 0
      %312 = vmatpush1.bf16.msra.mxu0 %v278
      %313 = vmatprep.subr.bf16.mxu0 0
      %314 = vmatpush1.bf16.msra.mxu0 %v279
      %315 = vmatprep.subr.bf16.mxu0 0
      %316 = vmatpush1.bf16.msra.mxu0 %v280
      %317 = vmatprep.subr.bf16.mxu0 0
      %318 = vmatpush1.bf16.msra.mxu0 %v281
      %319 = vmatprep.subr.bf16.mxu0 0
      %320 = vmatpush1.bf16.msra.mxu0 %v282
      %321 = vmatprep.subr.bf16.mxu0 0
      %322 = vmatpush1.bf16.msra.mxu0 %v283
      %323 = vmatprep.subr.bf16.mxu0 0
      %324 = vmatpush1.bf16.msra.mxu0 %v284
      %325 = vmatprep.subr.bf16.mxu0 0
      %326 = vmatpush1.bf16.msra.mxu0 %v285
      %327 = vmatprep.subr.bf16.mxu0 0
      %328 = vmatpush1.bf16.msra.mxu0 %v286
      %329 = vmatprep.subr.bf16.mxu0 0
      %330 = vmatpush1.bf16.msra.mxu0 %v287
      %331 = vmatprep.subr.bf16.mxu0 0
      %332 = vmatpush1.bf16.msra.mxu0 %v288
      %333 = vmatprep.subr.bf16.mxu0 0
      %334 = vmatpush1.bf16.msra.mxu0 %v289
      %335 = vmatprep.subr.bf16.mxu0 0
      %336 = vmatpush1.bf16.msra.mxu0 %v290
      %337 = vmatprep.subr.bf16.mxu0 0
      %338 = vmatpush1.bf16.msra.mxu0 %v291
      %339 = vmatprep.subr.bf16.mxu0 0
      %340 = vmatpush1.bf16.msra.mxu0 %v292
      %341 = vmatprep.mubr.bf16.mxu0 %v173
      %342 = vmatmul.mubr.bf16.gmra.mrb[0].mxu0 %v172
      %v343 = vpop.f32.mrb[0].mxu0
      %v344 = vadd.f32 %v211, %v343
      %v345 = vpop.f32.mrb[0].mxu0
      %v346 = vpop.f32.mrb[0].mxu0
      %v347 = vpop.f32.mrb[0].mxu0
      %348 = vdwg.mxu0
      %vm349 = vcmask 523264
      %350 = vst.msk [vmem:[%s168] sm:$0xff] %vm349, %v344
      %p351 = scmp.lt.s32.totalorder %s14, 3
      %s352 = scalar_select %p351, %s14, 3
      %s353 = smul.addr %s352, 8
      %s354 = scalar_lea.vmem %s3, %s353
      // Predicated region
      $region33: #{afno_forward.8} parent=31 // pred_check
        %p355 = pneg %p100
      $region34: #{afno_forward.8} parent=31 // pred_check_branch
        %357 = sbr.rel (%p355) target = $region36
      $region35: #{afno_forward.8} parent=31 // pred_region
        _
      $region36: #{afno_forward.8} parent=31 // pred_fallthru
        _
    $region32: #{afno_forward.8} parent=5 // pred_fallthru
      _
    %p358 = scmp.le.s32.totalorder 2, %s9
    // Predicated region
    $region37: #{afno_forward.8} parent=5 // pred_check
      %p359 = pneg %p358
    $region38: #{afno_forward.8} parent=5 // pred_check_branch
      %361 = sbr.rel (%p359) target = $region40
    $region39: #{afno_forward.8} parent=5 // pred_region
      %s362 = ssub.s32 %s9, 2
      // Predicated region
      $region41: #{afno_forward.8} parent=39 // pred_check
        %p363 = pneg %p106
      $region42: #{afno_forward.8} parent=39 // pred_check_branch
        %365 = sbr.rel (%p363) target = $region44
      $region43: #{afno_forward.8} parent=39 // pred_region
        %p366 = scmp.lt.s32.totalorder %s15, 3
        %s367 = scalar_select %p366, %s15, 3
        %s368 = smul.addr %s367, 8
        %s369 = scalar_lea.vmem %s3, %s368
      $region44: #{afno_forward.8} parent=39 // pred_fallthru
        _
    $region40: #{afno_forward.8} parent=5 // pred_fallthru
      _
  $region6: #{afno_forward.8} parent=0 // loop_footer
    %s13 = sadd.s32 1, %s9
  $region7: #{afno_forward.8} parent=0 // loop_footer_branch
    %8 = sbr.rel target = $region3
  $region8: #{afno_forward.8} parent=0 // loop_exit
    _

// kernel: afno_forward.9
$region0: #{afno_forward.9}
  #allocation0 [shape = 'u32[]', space=smem, size = 0x4, offset = 0x4, fixed_abs, tag = 'smem constant byte address 0x4 - core index']
  #allocation1 [shape = 'u32[144,128]{1,0:T(1,128)}', space=vmem, size = 0x12000, scoped, tag = 'internal scratch']
  %s0 = inlined_call_operand.vmem [shape: f32[32,64], index: 0, kind: input, shape index: {}]
  %s1 = inlined_call_operand.vmem [shape: f32[1,64], index: 1, kind: input, shape index: {}]
  %s2 = inlined_call_operand.vmem [shape: f32[1,64], index: 2, kind: input, shape index: {}]
  %s3 = inlined_call_operand.vmem [shape: f32[32,64], index: 3, kind: output, shape index: {}]
  %s4 = sld [smem:[#allocation0]]
  $region45: #{afno_forward.9} parent=0
    _
  %s6 = ssub.s32 1, %s4
  %s7 = scalar_select 0, %s6, %s4
  loop: start=0, step=1, limit=6
  $region2: #{afno_forward.9} parent=0 // loop_pre_header
    _
  $region3: #{afno_forward.9} parent=0 // loop_header
    %s9 = sphi 0, %s13
    %p10 = scmp.ge.s32.totalorder %s9, 6
    %s19 = sphi 0, %s21
    %s22 = sphi 0, %s19
    %s23 = sphi 0, %s22
    %s39 = sphi 0, %s23
    %s43 = sphi 0, %s43
    %s45 = sphi 0, %s43
    %s46 = sphi 0, %s45
    %s60 = sphi 0, %s46
    %s64 = sphi 0, %s64
    %s66 = sphi 0, %s64
    %s67 = sphi 0, %s66
    %s81 = sphi 0, %s67
    %s87 = sphi 0, %s89
    %s90 = sphi 0, %s87
    %s91 = sphi 0, %s90
    %s107 = sphi 0, %s91
  $region4: #{afno_forward.9} parent=0 // loop_header_branch
    %12 = sbr.rel (%p10) target = $region8
  $region5: #{afno_forward.9} parent=0 // loop_body
    %s14 = ssub.s32 %s9, 1
    %s15 = ssub.s32 %s9, 2
    %s16 = sadd.s32 %s9, 1
    %s17 = ssub.s32 %s9, %s16
    %p18 = scmp.eq.s32.totalorder %s17, 0
    %s20 = sadd.s32 %s19, 1
    %s21 = scalar_select %p18, %s19, %s20
    %p24 = pneg %p18
    %p25 = scmp.eq.s32.totalorder %s9, 3
    %p26 = por %p24, %p25
    %p27 = scmp.ne.s32.totalorder %s19, %s22
    %p28 = scmp.eq.s32.totalorder %s9, 0
    %p29 = por %p27, %p28
    %p30 = scmp.ne.s32.totalorder %s19, %s22
    %p31 = scmp.eq.s32.totalorder %s14, 3
    %p32 = por %p30, %p31
    %p33 = scmp.ne.s32.totalorder %s22, %s23
    %p34 = scmp.eq.s32.totalorder %s14, 0
    %p35 = por %p33, %p34
    %p36 = scmp.ne.s32.totalorder %s22, %s23
    %p37 = scmp.eq.s32.totalorder %s15, 3
    %p38 = por %p36, %p37
    %p40 = scmp.ne.s32.totalorder %s23, %s39
    %p41 = scmp.eq.s32.totalorder %s15, 0
    %p42 = por %p40, %p41
    %s44 = sadd.s32 %s43, 1
    %p47 = scmp.eq.s32.totalorder %s9, 3
    %p48 = scmp.ne.s32.totalorder %s43, %s45
    %p49 = scmp.eq.s32.totalorder %s9, 0
    %p50 = por %p48, %p49
    %p51 = scmp.ne.s32.totalorder %s43, %s45
    %p52 = scmp.eq.s32.totalorder %s14, 3
    %p53 = por %p51, %p52
    %p54 = scmp.ne.s32.totalorder %s45, %s46
    %p55 = scmp.eq.s32.totalorder %s14, 0
    %p56 = por %p54, %p55
    %p57 = scmp.ne.s32.totalorder %s45, %s46
    %p58 = scmp.eq.s32.totalorder %s15, 3
    %p59 = por %p57, %p58
    %p61 = scmp.ne.s32.totalorder %s46, %s60
    %p62 = scmp.eq.s32.totalorder %s15, 0
    %p63 = por %p61, %p62
    %s65 = sadd.s32 %s64, 1
    %p68 = scmp.eq.s32.totalorder %s9, 3
    %p69 = scmp.ne.s32.totalorder %s64, %s66
    %p70 = scmp.eq.s32.totalorder %s9, 0
    %p71 = por %p69, %p70
    %p72 = scmp.ne.s32.totalorder %s64, %s66
    %p73 = scmp.eq.s32.totalorder %s14, 3
    %p74 = por %p72, %p73
    %p75 = scmp.ne.s32.totalorder %s66, %s67
    %p76 = scmp.eq.s32.totalorder %s14, 0
    %p77 = por %p75, %p76
    %p78 = scmp.ne.s32.totalorder %s66, %s67
    %p79 = scmp.eq.s32.totalorder %s15, 3
    %p80 = por %p78, %p79
    %p82 = scmp.ne.s32.totalorder %s67, %s81
    %p83 = scmp.eq.s32.totalorder %s15, 0
    %p84 = por %p82, %p83
    %s85 = ssub.s32 %s9, %s16
    %p86 = scmp.eq.s32.totalorder %s85, 0
    %s88 = sadd.s32 %s87, 1
    %s89 = scalar_select %p86, %s87, %s88
    %p92 = pneg %p86
    %p93 = scmp.eq.s32.totalorder %s9, 3
    %p94 = por %p92, %p93
    %p95 = scmp.ne.s32.totalorder %s87, %s90
    %p96 = scmp.eq.s32.totalorder %s9, 0
    %p97 = por %p95, %p96
    %p98 = scmp.ne.s32.totalorder %s87, %s90
    %p99 = scmp.eq.s32.totalorder %s14, 3
    %p100 = por %p98, %p99
    %p101 = scmp.ne.s32.totalorder %s90, %s91
    %p102 = scmp.eq.s32.totalorder %s14, 0
    %p103 = por %p101, %p102
    %p104 = scmp.ne.s32.totalorder %s90, %s91
    %p105 = scmp.eq.s32.totalorder %s15, 3
    %p106 = por %p104, %p105
    %p108 = scmp.ne.s32.totalorder %s91, %s107
    %p109 = scmp.eq.s32.totalorder %s15, 0
    %p110 = por %p108, %p109
    %p111 = scmp.le.s32.totalorder 1, %s9
    %p112 = scmp.lt.s32.totalorder %s9, 5
    %p113 = pnand %p111, %p112
    %p114 = pneg %p113
    // Predicated region
    $region9: #{afno_forward.9} parent=5 // pred_check
      _
    $region10: #{afno_forward.9} parent=5 // pred_check_branch
      %116 = sbr.rel (%p113) target = $region12
    $region11: #{afno_forward.9} parent=5 // pred_region
      %s117 = ssub.s32 %s9, 1
      // Predicated region
      $region13: #{afno_forward.9} parent=11 // pred_check
        %p118 = pneg %p56
      $region14: #{afno_forward.9} parent=11 // pred_check_branch
        %120 = sbr.rel (%p118) target = $region16
      $region15: #{afno_forward.9} parent=11 // pred_region
        _
      $region16: #{afno_forward.9} parent=11 // pred_fallthru
        _
      // Predicated region
      $region17: #{afno_forward.9} parent=11 // pred_check
        %p121 = pneg %p77
      $region18: #{afno_forward.9} parent=11 // pred_check_branch
        %123 = sbr.rel (%p121) target = $region20
      $region19: #{afno_forward.9} parent=11 // pred_region
        _
      $region20: #{afno_forward.9} parent=11 // pred_fallthru
        _
    $region12: #{afno_forward.9} parent=5 // pred_fallthru
      _
    %p124 = scmp.lt.s32.totalorder %s9, 4
    // Predicated region
    $region21: #{afno_forward.9} parent=5 // pred_check
      %p125 = pneg %p124
    $region22: #{afno_forward.9} parent=5 // pred_check_branch
      %127 = sbr.rel (%p125) target = $region24
    $region23: #{afno_forward.9} parent=5 // pred_region
      // Predicated region
      $region25: #{afno_forward.9} parent=23 // pred_check
        %p128 = pneg %p29
      $region26: #{afno_forward.9} parent=23 // pred_check_branch
        %130 = sbr.rel (%p128) target = $region28
      $region27: #{afno_forward.9} parent=23 // pred_region
        %p131 = scmp.lt.s32.totalorder %s9, 3
        %s132 = scalar_select %p131, %s9, 3
        %s133 = smul.addr %s132, 8
        %s134 = scalar_lea.vmem %s0, %s133
      $region28: #{afno_forward.9} parent=23 // pred_fallthru
        _
    $region24: #{afno_forward.9} parent=5 // pred_fallthru
      _
    %p135 = scmp.le.s32.totalorder 1, %s9
    %p136 = scmp.lt.s32.totalorder %s9, 5
    %p137 = pnand %p135, %p136
    %p138 = pneg %p137
    // Predicated region
    $region29: #{afno_forward.9} parent=5 // pred_check
      _
    $region30: #{afno_forward.9} parent=5 // pred_check_branch
      %140 = sbr.rel (%p137) target = $region32
    $region31: #{afno_forward.9} parent=5 // pred_region
      %s141 = ssub.s32 %s9, 1
      %p142 = scmp.lt.s32.totalorder %s14, 3
      %s143 = scalar_select %p142, %s14, 3
      %s144 = smul.addr %s143, 8
      %s145 = scalar_lea.vmem %s0, %s144
      %p146 = pneg %p35
      %p147 = pneg %p32
      %p148 = pneg %p56
      %p149 = pneg %p53
      %p150 = pneg %p77
      %p151 = pneg %p74
      %p152 = pneg %p103
      %p153 = pneg %p100
      %p154 = scmp.lt.s32.totalorder %s14, 3
      %s155 = scalar_select %p154, %s14, 3
      %s156 = smul.addr %s155, 8
      %s157 = scalar_lea.vmem %s3, %s156
      %p158 = scmp.lt.s32.totalorder %s14, 3
      %s159 = scalar_select %p158, %s14, 3
      %s160 = smul.addr %s159, 8
      %s161 = scalar_lea.vmem %s0, %s160
      %p162 = scmp.lt.s32.totalorder %s14, 3
      %s163 = scalar_select %p162, %s14, 3
      %s164 = smul.addr %s163, 8
      %s165 = scalar_lea.vmem %s3, %s164
      %v166 = vld [vmem:[%s161] sm:$0xff]
      %vm167 = vcmask 523264
      %v168 = vsel %vm167, %v166, 0.0
      %169 = vadd.xlane.f32.xlu0 %v168
      %v170 = vpop.xlane.xlu0 %169
      %v171 = vrcp.pop 64.0
      %v172 = vmul.f32 %v170, %v171
      %v173 = vsub.f32 %v166, %v172
      %v174 = vmul.f32 %v173, %v173
      %v175 = vsel %vm167, %v174, 0.0
      %176 = vadd.xlane.f32.xlu0 %v175
      %v177 = vpop.xlane.xlu0 %176
      %v178 = vmul.f32 %v177, %v171
      %v179 = vadd.f32 %v178, 1e-06
      %v180 = vrsqrt.pop %v179
      %v181 = vmul.f32 %v173, %v180
      %v182 = vld [vmem:[%s1] sm:$0x1]
      %v184 = vlaneseq
      %v185 = vshrl.u32 %v184, 7
      %v186 = vsub.s32 0, %v185
      %v187 = vrot.slane %v182, %v186
      %v189 = vmul.f32 %v181, %v187
      %v190 = vld [vmem:[%s2] sm:$0x1]
      %v192 = vlaneseq
      %v193 = vshrl.u32 %v192, 7
      %v194 = vsub.s32 0, %v193
      %v195 = vrot.slane %v190, %v194
      %v197 = vadd.f32 %v189, %v195
      %198 = vst.msk [vmem:[%s165] sm:$0xff] %vm167, %v197
      %p199 = scmp.lt.s32.totalorder %s14, 3
      %s200 = scalar_select %p199, %s14, 3
      %s201 = smul.addr %s200, 8
      %s202 = scalar_lea.vmem %s3, %s201
      // Predicated region
      $region33: #{afno_forward.9} parent=31 // pred_check
        %p203 = pneg %p100
      $region34: #{afno_forward.9} parent=31 // pred_check_branch
        %205 = sbr.rel (%p203) target = $region36
      $region35: #{afno_forward.9} parent=31 // pred_region
        _
      $region36: #{afno_forward.9} parent=31 // pred_fallthru
        _
    $region32: #{afno_forward.9} parent=5 // pred_fallthru
      _
    %p206 = scmp.le.s32.totalorder 2, %s9
    // Predicated region
    $region37: #{afno_forward.9} parent=5 // pred_check
      %p207 = pneg %p206
    $region38: #{afno_forward.9} parent=5 // pred_check_branch
      %209 = sbr.rel (%p207) target = $region40
    $region39: #{afno_forward.9} parent=5 // pred_region
      %s210 = ssub.s32 %s9, 2
      // Predicated region
      $region41: #{afno_forward.9} parent=39 // pred_check
        %p211 = pneg %p106
      $region42: #{afno_forward.9} parent=39 // pred_check_branch
        %213 = sbr.rel (%p211) target = $region44
      $region43: #{afno_forward.9} parent=39 // pred_region
        %p214 = scmp.lt.s32.totalorder %s15, 3
        %s215 = scalar_select %p214, %s15, 3
        %s216 = smul.addr %s215, 8
        %s217 = scalar_lea.vmem %s3, %s216
      $region44: #{afno_forward.9} parent=39 // pred_fallthru
        _
    $region40: #{afno_forward.9} parent=5 // pred_fallthru
      _
  $region6: #{afno_forward.9} parent=0 // loop_footer
    %s13 = sadd.s32 1, %s9
  $region7: #{afno_forward.9} parent=0 // loop_footer_branch
    %8 = sbr.rel target = $region3
  $region8: #{afno_forward.9} parent=0 // loop_exit
    _

// kernel: afno_forward.10
$region0: #{afno_forward.10}
  #allocation0 [shape = 'u32[]', space=smem, size = 0x4, offset = 0x4, fixed_abs, tag = 'smem constant byte address 0x4 - core index']
  #allocation1 [shape = 'u32[144,128]{1,0:T(1,128)}', space=vmem, size = 0x12000, scoped, tag = 'internal scratch']
  %s0 = inlined_call_operand.vmem [shape: f32[24,64], index: 0, kind: input, shape index: {}]
  %s1 = inlined_call_operand.vmem [shape: f32[24,64], index: 1, kind: input, shape index: {}]
  %s2 = inlined_call_operand.vmem [shape: f32[64,64], index: 2, kind: input, shape index: {}]
  %s3 = inlined_call_operand.vmem [shape: f32[64,64], index: 3, kind: input, shape index: {}]
  %s4 = inlined_call_operand.vmem [shape: f32[1,64], index: 4, kind: input, shape index: {}]
  %s5 = inlined_call_operand.vmem [shape: f32[1,64], index: 5, kind: input, shape index: {}]
  %s6 = inlined_call_operand.vmem [shape: f32[64,64], index: 6, kind: input, shape index: {}]
  %s7 = inlined_call_operand.vmem [shape: f32[64,64], index: 7, kind: input, shape index: {}]
  %s8 = inlined_call_operand.vmem [shape: f32[1,64], index: 8, kind: input, shape index: {}]
  %s9 = inlined_call_operand.vmem [shape: f32[1,64], index: 9, kind: input, shape index: {}]
  %s10 = inlined_call_operand.vmem [shape: f32[24,64], index: 10, kind: output, shape index: {0}]
  %s11 = inlined_call_operand.vmem [shape: f32[24,64], index: 11, kind: output, shape index: {1}]
  %12 = xla_tuple %s10, %s11
  %s13 = sld [smem:[#allocation0]]
  $region81: #{afno_forward.10} parent=0
    _
  %s15 = ssub.s32 1, %s13
  %s16 = scalar_select 0, %s15, %s13
  loop: start=0, step=1, limit=5
  $region2: #{afno_forward.10} parent=0 // loop_pre_header
    _
  $region3: #{afno_forward.10} parent=0 // loop_header
    %s18 = sphi 0, %s22
    %p19 = scmp.ge.s32.totalorder %s18, 5
    %s28 = sphi 0, %s30
    %s31 = sphi 0, %s28
    %s32 = sphi 0, %s31
    %s48 = sphi 0, %s32
    %s54 = sphi 0, %s56
    %s57 = sphi 0, %s54
    %s58 = sphi 0, %s57
    %s74 = sphi 0, %s58
    %s78 = sphi 0, %s78
    %s80 = sphi 0, %s78
    %s81 = sphi 0, %s80
    %s95 = sphi 0, %s81
    %s99 = sphi 0, %s99
    %s101 = sphi 0, %s99
    %s102 = sphi 0, %s101
    %s116 = sphi 0, %s102
    %s120 = sphi 0, %s120
    %s122 = sphi 0, %s120
    %s123 = sphi 0, %s122
    %s137 = sphi 0, %s123
    %s141 = sphi 0, %s141
    %s143 = sphi 0, %s141
    %s144 = sphi 0, %s143
    %s158 = sphi 0, %s144
    %s162 = sphi 0, %s162
    %s164 = sphi 0, %s162
    %s165 = sphi 0, %s164
    %s179 = sphi 0, %s165
    %s183 = sphi 0, %s183
    %s185 = sphi 0, %s183
    %s186 = sphi 0, %s185
    %s200 = sphi 0, %s186
    %s204 = sphi 0, %s204
    %s206 = sphi 0, %s204
    %s207 = sphi 0, %s206
    %s221 = sphi 0, %s207
    %s225 = sphi 0, %s225
    %s227 = sphi 0, %s225
    %s228 = sphi 0, %s227
    %s242 = sphi 0, %s228
    %s248 = sphi 0, %s250
    %s251 = sphi 0, %s248
    %s252 = sphi 0, %s251
    %s268 = sphi 0, %s252
    %s274 = sphi 0, %s276
    %s277 = sphi 0, %s274
    %s278 = sphi 0, %s277
    %s294 = sphi 0, %s278
  $region4: #{afno_forward.10} parent=0 // loop_header_branch
    %21 = sbr.rel (%p19) target = $region8
  $region5: #{afno_forward.10} parent=0 // loop_body
    %s23 = ssub.s32 %s18, 1
    %s24 = ssub.s32 %s18, 2
    %s25 = sadd.s32 %s18, 1
    %s26 = ssub.s32 %s18, %s25
    %p27 = scmp.eq.s32.totalorder %s26, 0
    %s29 = sadd.s32 %s28, 1
    %s30 = scalar_select %p27, %s28, %s29
    %p33 = pneg %p27
    %p34 = scmp.eq.s32.totalorder %s18, 2
    %p35 = por %p33, %p34
    %p36 = scmp.ne.s32.totalorder %s28, %s31
    %p37 = scmp.eq.s32.totalorder %s18, 0
    %p38 = por %p36, %p37
    %p39 = scmp.ne.s32.totalorder %s28, %s31
    %p40 = scmp.eq.s32.totalorder %s23, 2
    %p41 = por %p39, %p40
    %p42 = scmp.ne.s32.totalorder %s31, %s32
    %p43 = scmp.eq.s32.totalorder %s23, 0
    %p44 = por %p42, %p43
    %p45 = scmp.ne.s32.totalorder %s31, %s32
    %p46 = scmp.eq.s32.totalorder %s24, 2
    %p47 = por %p45, %p46
    %p49 = scmp.ne.s32.totalorder %s32, %s48
    %p50 = scmp.eq.s32.totalorder %s24, 0
    %p51 = por %p49, %p50
    %s52 = ssub.s32 %s18, %s25
    %p53 = scmp.eq.s32.totalorder %s52, 0
    %s55 = sadd.s32 %s54, 1
    %s56 = scalar_select %p53, %s54, %s55
    %p59 = pneg %p53
    %p60 = scmp.eq.s32.totalorder %s18, 2
    %p61 = por %p59, %p60
    %p62 = scmp.ne.s32.totalorder %s54, %s57
    %p63 = scmp.eq.s32.totalorder %s18, 0
    %p64 = por %p62, %p63
    %p65 = scmp.ne.s32.totalorder %s54, %s57
    %p66 = scmp.eq.s32.totalorder %s23, 2
    %p67 = por %p65, %p66
    %p68 = scmp.ne.s32.totalorder %s57, %s58
    %p69 = scmp.eq.s32.totalorder %s23, 0
    %p70 = por %p68, %p69
    %p71 = scmp.ne.s32.totalorder %s57, %s58
    %p72 = scmp.eq.s32.totalorder %s24, 2
    %p73 = por %p71, %p72
    %p75 = scmp.ne.s32.totalorder %s58, %s74
    %p76 = scmp.eq.s32.totalorder %s24, 0
    %p77 = por %p75, %p76
    %s79 = sadd.s32 %s78, 1
    %p82 = scmp.eq.s32.totalorder %s18, 2
    %p83 = scmp.ne.s32.totalorder %s78, %s80
    %p84 = scmp.eq.s32.totalorder %s18, 0
    %p85 = por %p83, %p84
    %p86 = scmp.ne.s32.totalorder %s78, %s80
    %p87 = scmp.eq.s32.totalorder %s23, 2
    %p88 = por %p86, %p87
    %p89 = scmp.ne.s32.totalorder %s80, %s81
    %p90 = scmp.eq.s32.totalorder %s23, 0
    %p91 = por %p89, %p90
    %p92 = scmp.ne.s32.totalorder %s80, %s81
    %p93 = scmp.eq.s32.totalorder %s24, 2
    %p94 = por %p92, %p93
    %p96 = scmp.ne.s32.totalorder %s81, %s95
    %p97 = scmp.eq.s32.totalorder %s24, 0
    %p98 = por %p96, %p97
    %s100 = sadd.s32 %s99, 1
    %p103 = scmp.eq.s32.totalorder %s18, 2
    %p104 = scmp.ne.s32.totalorder %s99, %s101
    %p105 = scmp.eq.s32.totalorder %s18, 0
    %p106 = por %p104, %p105
    %p107 = scmp.ne.s32.totalorder %s99, %s101
    %p108 = scmp.eq.s32.totalorder %s23, 2
    %p109 = por %p107, %p108
    %p110 = scmp.ne.s32.totalorder %s101, %s102
    %p111 = scmp.eq.s32.totalorder %s23, 0
    %p112 = por %p110, %p111
    %p113 = scmp.ne.s32.totalorder %s101, %s102
    %p114 = scmp.eq.s32.totalorder %s24, 2
    %p115 = por %p113, %p114
    %p117 = scmp.ne.s32.totalorder %s102, %s116
    %p118 = scmp.eq.s32.totalorder %s24, 0
    %p119 = por %p117, %p118
    %s121 = sadd.s32 %s120, 1
    %p124 = scmp.eq.s32.totalorder %s18, 2
    %p125 = scmp.ne.s32.totalorder %s120, %s122
    %p126 = scmp.eq.s32.totalorder %s18, 0
    %p127 = por %p125, %p126
    %p128 = scmp.ne.s32.totalorder %s120, %s122
    %p129 = scmp.eq.s32.totalorder %s23, 2
    %p130 = por %p128, %p129
    %p131 = scmp.ne.s32.totalorder %s122, %s123
    %p132 = scmp.eq.s32.totalorder %s23, 0
    %p133 = por %p131, %p132
    %p134 = scmp.ne.s32.totalorder %s122, %s123
    %p135 = scmp.eq.s32.totalorder %s24, 2
    %p136 = por %p134, %p135
    %p138 = scmp.ne.s32.totalorder %s123, %s137
    %p139 = scmp.eq.s32.totalorder %s24, 0
    %p140 = por %p138, %p139
    %s142 = sadd.s32 %s141, 1
    %p145 = scmp.eq.s32.totalorder %s18, 2
    %p146 = scmp.ne.s32.totalorder %s141, %s143
    %p147 = scmp.eq.s32.totalorder %s18, 0
    %p148 = por %p146, %p147
    %p149 = scmp.ne.s32.totalorder %s141, %s143
    %p150 = scmp.eq.s32.totalorder %s23, 2
    %p151 = por %p149, %p150
    %p152 = scmp.ne.s32.totalorder %s143, %s144
    %p153 = scmp.eq.s32.totalorder %s23, 0
    %p154 = por %p152, %p153
    %p155 = scmp.ne.s32.totalorder %s143, %s144
    %p156 = scmp.eq.s32.totalorder %s24, 2
    %p157 = por %p155, %p156
    %p159 = scmp.ne.s32.totalorder %s144, %s158
    %p160 = scmp.eq.s32.totalorder %s24, 0
    %p161 = por %p159, %p160
    %s163 = sadd.s32 %s162, 1
    %p166 = scmp.eq.s32.totalorder %s18, 2
    %p167 = scmp.ne.s32.totalorder %s162, %s164
    %p168 = scmp.eq.s32.totalorder %s18, 0
    %p169 = por %p167, %p168
    %p170 = scmp.ne.s32.totalorder %s162, %s164
    %p171 = scmp.eq.s32.totalorder %s23, 2
    %p172 = por %p170, %p171
    %p173 = scmp.ne.s32.totalorder %s164, %s165
    %p174 = scmp.eq.s32.totalorder %s23, 0
    %p175 = por %p173, %p174
    %p176 = scmp.ne.s32.totalorder %s164, %s165
    %p177 = scmp.eq.s32.totalorder %s24, 2
    %p178 = por %p176, %p177
    %p180 = scmp.ne.s32.totalorder %s165, %s179
    %p181 = scmp.eq.s32.totalorder %s24, 0
    %p182 = por %p180, %p181
    %s184 = sadd.s32 %s183, 1
    %p187 = scmp.eq.s32.totalorder %s18, 2
    %p188 = scmp.ne.s32.totalorder %s183, %s185
    %p189 = scmp.eq.s32.totalorder %s18, 0
    %p190 = por %p188, %p189
    %p191 = scmp.ne.s32.totalorder %s183, %s185
    %p192 = scmp.eq.s32.totalorder %s23, 2
    %p193 = por %p191, %p192
    %p194 = scmp.ne.s32.totalorder %s185, %s186
    %p195 = scmp.eq.s32.totalorder %s23, 0
    %p196 = por %p194, %p195
    %p197 = scmp.ne.s32.totalorder %s185, %s186
    %p198 = scmp.eq.s32.totalorder %s24, 2
    %p199 = por %p197, %p198
    %p201 = scmp.ne.s32.totalorder %s186, %s200
    %p202 = scmp.eq.s32.totalorder %s24, 0
    %p203 = por %p201, %p202
    %s205 = sadd.s32 %s204, 1
    %p208 = scmp.eq.s32.totalorder %s18, 2
    %p209 = scmp.ne.s32.totalorder %s204, %s206
    %p210 = scmp.eq.s32.totalorder %s18, 0
    %p211 = por %p209, %p210
    %p212 = scmp.ne.s32.totalorder %s204, %s206
    %p213 = scmp.eq.s32.totalorder %s23, 2
    %p214 = por %p212, %p213
    %p215 = scmp.ne.s32.totalorder %s206, %s207
    %p216 = scmp.eq.s32.totalorder %s23, 0
    %p217 = por %p215, %p216
    %p218 = scmp.ne.s32.totalorder %s206, %s207
    %p219 = scmp.eq.s32.totalorder %s24, 2
    %p220 = por %p218, %p219
    %p222 = scmp.ne.s32.totalorder %s207, %s221
    %p223 = scmp.eq.s32.totalorder %s24, 0
    %p224 = por %p222, %p223
    %s226 = sadd.s32 %s225, 1
    %p229 = scmp.eq.s32.totalorder %s18, 2
    %p230 = scmp.ne.s32.totalorder %s225, %s227
    %p231 = scmp.eq.s32.totalorder %s18, 0
    %p232 = por %p230, %p231
    %p233 = scmp.ne.s32.totalorder %s225, %s227
    %p234 = scmp.eq.s32.totalorder %s23, 2
    %p235 = por %p233, %p234
    %p236 = scmp.ne.s32.totalorder %s227, %s228
    %p237 = scmp.eq.s32.totalorder %s23, 0
    %p238 = por %p236, %p237
    %p239 = scmp.ne.s32.totalorder %s227, %s228
    %p240 = scmp.eq.s32.totalorder %s24, 2
    %p241 = por %p239, %p240
    %p243 = scmp.ne.s32.totalorder %s228, %s242
    %p244 = scmp.eq.s32.totalorder %s24, 0
    %p245 = por %p243, %p244
    %s246 = ssub.s32 %s18, %s25
    %p247 = scmp.eq.s32.totalorder %s246, 0
    %s249 = sadd.s32 %s248, 1
    %s250 = scalar_select %p247, %s248, %s249
    %p253 = pneg %p247
    %p254 = scmp.eq.s32.totalorder %s18, 2
    %p255 = por %p253, %p254
    %p256 = scmp.ne.s32.totalorder %s248, %s251
    %p257 = scmp.eq.s32.totalorder %s18, 0
    %p258 = por %p256, %p257
    %p259 = scmp.ne.s32.totalorder %s248, %s251
    %p260 = scmp.eq.s32.totalorder %s23, 2
    %p261 = por %p259, %p260
    %p262 = scmp.ne.s32.totalorder %s251, %s252
    %p263 = scmp.eq.s32.totalorder %s23, 0
    %p264 = por %p262, %p263
    %p265 = scmp.ne.s32.totalorder %s251, %s252
    %p266 = scmp.eq.s32.totalorder %s24, 2
    %p267 = por %p265, %p266
    %p269 = scmp.ne.s32.totalorder %s252, %s268
    %p270 = scmp.eq.s32.totalorder %s24, 0
    %p271 = por %p269, %p270
    %s272 = ssub.s32 %s18, %s25
    %p273 = scmp.eq.s32.totalorder %s272, 0
    %s275 = sadd.s32 %s274, 1
    %s276 = scalar_select %p273, %s274, %s275
    %p279 = pneg %p273
    %p280 = scmp.eq.s32.totalorder %s18, 2
    %p281 = por %p279, %p280
    %p282 = scmp.ne.s32.totalorder %s274, %s277
    %p283 = scmp.eq.s32.totalorder %s18, 0
    %p284 = por %p282, %p283
    %p285 = scmp.ne.s32.totalorder %s274, %s277
    %p286 = scmp.eq.s32.totalorder %s23, 2
    %p287 = por %p285, %p286
    %p288 = scmp.ne.s32.totalorder %s277, %s278
    %p289 = scmp.eq.s32.totalorder %s23, 0
    %p290 = por %p288, %p289
    %p291 = scmp.ne.s32.totalorder %s277, %s278
    %p292 = scmp.eq.s32.totalorder %s24, 2
    %p293 = por %p291, %p292
    %p295 = scmp.ne.s32.totalorder %s278, %s294
    %p296 = scmp.eq.s32.totalorder %s24, 0
    %p297 = por %p295, %p296
    %p298 = scmp.le.s32.totalorder 1, %s18
    %p299 = scmp.lt.s32.totalorder %s18, 4
    %p300 = pnand %p298, %p299
    %p301 = pneg %p300
    // Predicated region
    $region9: #{afno_forward.10} parent=5 // pred_check
      _
    $region10: #{afno_forward.10} parent=5 // pred_check_branch
      %303 = sbr.rel (%p300) target = $region12
    $region11: #{afno_forward.10} parent=5 // pred_region
      %s304 = ssub.s32 %s18, 1
      // Predicated region
      $region13: #{afno_forward.10} parent=11 // pred_check
        %p305 = pneg %p91
      $region14: #{afno_forward.10} parent=11 // pred_check_branch
        %307 = sbr.rel (%p305) target = $region16
      $region15: #{afno_forward.10} parent=11 // pred_region
        _
      $region16: #{afno_forward.10} parent=11 // pred_fallthru
        _
      // Predicated region
      $region17: #{afno_forward.10} parent=11 // pred_check
        %p308 = pneg %p112
      $region18: #{afno_forward.10} parent=11 // pred_check_branch
        %310 = sbr.rel (%p308) target = $region20
      $region19: #{afno_forward.10} parent=11 // pred_region
        _
      $region20: #{afno_forward.10} parent=11 // pred_fallthru
        _
      // Predicated region
      $region21: #{afno_forward.10} parent=11 // pred_check
        %p311 = pneg %p133
      $region22: #{afno_forward.10} parent=11 // pred_check_branch
        %313 = sbr.rel (%p311) target = $region24
      $region23: #{afno_forward.10} parent=11 // pred_region
        _
      $region24: #{afno_forward.10} parent=11 // pred_fallthru
        _
      // Predicated region
      $region25: #{afno_forward.10} parent=11 // pred_check
        %p314 = pneg %p154
      $region26: #{afno_forward.10} parent=11 // pred_check_branch
        %316 = sbr.rel (%p314) target = $region28
      $region27: #{afno_forward.10} parent=11 // pred_region
        _
      $region28: #{afno_forward.10} parent=11 // pred_fallthru
        _
      // Predicated region
      $region29: #{afno_forward.10} parent=11 // pred_check
        %p317 = pneg %p175
      $region30: #{afno_forward.10} parent=11 // pred_check_branch
        %319 = sbr.rel (%p317) target = $region32
      $region31: #{afno_forward.10} parent=11 // pred_region
        _
      $region32: #{afno_forward.10} parent=11 // pred_fallthru
        _
      // Predicated region
      $region33: #{afno_forward.10} parent=11 // pred_check
        %p320 = pneg %p196
      $region34: #{afno_forward.10} parent=11 // pred_check_branch
        %322 = sbr.rel (%p320) target = $region36
      $region35: #{afno_forward.10} parent=11 // pred_region
        _
      $region36: #{afno_forward.10} parent=11 // pred_fallthru
        _
      // Predicated region
      $region37: #{afno_forward.10} parent=11 // pred_check
        %p323 = pneg %p217
      $region38: #{afno_forward.10} parent=11 // pred_check_branch
        %325 = sbr.rel (%p323) target = $region40
      $region39: #{afno_forward.10} parent=11 // pred_region
        _
      $region40: #{afno_forward.10} parent=11 // pred_fallthru
        _
      // Predicated region
      $region41: #{afno_forward.10} parent=11 // pred_check
        %p326 = pneg %p238
      $region42: #{afno_forward.10} parent=11 // pred_check_branch
        %328 = sbr.rel (%p326) target = $region44
      $region43: #{afno_forward.10} parent=11 // pred_region
        _
      $region44: #{afno_forward.10} parent=11 // pred_fallthru
        _
    $region12: #{afno_forward.10} parent=5 // pred_fallthru
      _
    %p329 = scmp.lt.s32.totalorder %s18, 3
    // Predicated region
    $region45: #{afno_forward.10} parent=5 // pred_check
      %p330 = pneg %p329
    $region46: #{afno_forward.10} parent=5 // pred_check_branch
      %332 = sbr.rel (%p330) target = $region48
    $region47: #{afno_forward.10} parent=5 // pred_region
      // Predicated region
      $region49: #{afno_forward.10} parent=47 // pred_check
        %p333 = pneg %p38
      $region50: #{afno_forward.10} parent=47 // pred_check_branch
        %335 = sbr.rel (%p333) target = $region52
      $region51: #{afno_forward.10} parent=47 // pred_region
        %p336 = scmp.lt.s32.totalorder %s18, 2
        %s337 = scalar_select %p336, %s18, 2
        %s338 = smul.addr %s337, 8
        %s339 = scalar_lea.vmem %s0, %s338
      $region52: #{afno_forward.10} parent=47 // pred_fallthru
        _
      // Predicated region
      $region53: #{afno_forward.10} parent=47 // pred_check
        %p340 = pneg %p64
      $region54: #{afno_forward.10} parent=47 // pred_check_branch
        %342 = sbr.rel (%p340) target = $region56
      $region55: #{afno_forward.10} parent=47 // pred_region
        %p343 = scmp.lt.s32.totalorder %s18, 2
        %s344 = scalar_select %p343, %s18, 2
        %s345 = smul.addr %s344, 8
        %s346 = scalar_lea.vmem %s1, %s345
      $region56: #{afno_forward.10} parent=47 // pred_fallthru
        _
    $region48: #{afno_forward.10} parent=5 // pred_fallthru
      _
    %p347 = scmp.le.s32.totalorder 1, %s18
    %p348 = scmp.lt.s32.totalorder %s18, 4
    %p349 = pnand %p347, %p348
    %p350 = pneg %p349
    // Predicated region
    $region57: #{afno_forward.10} parent=5 // pred_check
      _
    $region58: #{afno_forward.10} parent=5 // pred_check_branch
      %352 = sbr.rel (%p349) target = $region60
    $region59: #{afno_forward.10} parent=5 // pred_region
      %s353 = ssub.s32 %s18, 1
      %p354 = scmp.lt.s32.totalorder %s23, 2
      %s355 = scalar_select %p354, %s23, 2
      %s356 = smul.addr %s355, 8
      %s357 = scalar_lea.vmem %s0, %s356
      %p358 = pneg %p44
      %p359 = pneg %p41
      %p360 = scmp.lt.s32.totalorder %s23, 2
      %s361 = scalar_select %p360, %s23, 2
      %s362 = smul.addr %s361, 8
      %s363 = scalar_lea.vmem %s1, %s362
      %p364 = pneg %p70
      %p365 = pneg %p67
      %p366 = pneg %p91
      %p367 = pneg %p88
      %p368 = pneg %p112
      %p369 = pneg %p109
      %p370 = pneg %p133
      %p371 = pneg %p130
      %p372 = pneg %p154
      %p373 = pneg %p151
      %p374 = pneg %p175
      %p375 = pneg %p172
      %p376 = pneg %p196
      %p377 = pneg %p193
      %p378 = pneg %p217
      %p379 = pneg %p214
      %p380 = pneg %p238
      %p381 = pneg %p235
      %p382 = pneg %p264
      %p383 = pneg %p261
      %p384 = scmp.lt.s32.totalorder %s23, 2
      %s385 = scalar_select %p384, %s23, 2
      %s386 = smul.addr %s385, 8
      %s387 = scalar_lea.vmem %s10, %s386
      %p388 = pneg %p290
      %p389 = pneg %p287
      %p390 = scmp.lt.s32.totalorder %s23, 2
      %s391 = scalar_select %p390, %s23, 2
      %s392 = smul.addr %s391, 8
      %s393 = scalar_lea.vmem %s11, %s392
      %p394 = scmp.lt.s32.totalorder %s23, 2
      %s395 = scalar_select %p394, %s23, 2
      %s396 = smul.addr %s395, 8
      %s397 = scalar_lea.vmem %s0, %s396
      %p398 = scmp.lt.s32.totalorder %s23, 2
      %s399 = scalar_select %p398, %s23, 2
      %s400 = smul.addr %s399, 8
      %s401 = scalar_lea.vmem %s1, %s400
      %p402 = scmp.lt.s32.totalorder %s23, 2
      %s403 = scalar_select %p402, %s23, 2
      %s404 = smul.addr %s403, 8
      %s405 = scalar_lea.vmem %s10, %s404
      %p406 = scmp.lt.s32.totalorder %s23, 2
      %s407 = scalar_select %p406, %s23, 2
      %s408 = smul.addr %s407, 8
      %s409 = scalar_lea.vmem %s11, %s408
      %v410 = vld [vmem:[%s397] sm:$0xff]
      %v411 = vld [vmem:[%s401] sm:$0xff]
      %v412 = vld [vmem:[%s2] sm:$0xff]
      %v413 = vld [vmem:[%s2 + $0x8] sm:$0xff]
      %v414 = vld [vmem:[%s2 + $0x10] sm:$0xff]
      %v415 = vld [vmem:[%s2 + $0x18] sm:$0xff]
      %v416 = vld [vmem:[%s2 + $0x20] sm:$0xff]
      %v417 = vld [vmem:[%s2 + $0x28] sm:$0xff]
      %v418 = vld [vmem:[%s2 + $0x30] sm:$0xff]
      %v419 = vld [vmem:[%s2 + $0x38] sm:$0xff]
      %vm420 = vcmask 523264
      %v422 = vsel %vm420, %v410, 0
      %424 = vmatprep.subr.mxu0 0.0
      %425 = vmatpush1.msra.mxu0 %v412
      %426 = vmatprep.subr.mxu0 0.0
      %427 = vmatpush1.msra.mxu0 %v413
      %428 = vmatprep.subr.mxu0 0.0
      %429 = vmatpush1.msra.mxu0 %v414
      %430 = vmatprep.subr.mxu0 0.0
      %431 = vmatpush1.msra.mxu0 %v415
      %432 = vmatprep.subr.mxu0 0.0
      %433 = vmatpush1.msra.mxu0 %v416
      %434 = vmatprep.subr.mxu0 0.0
      %435 = vmatpush1.msra.mxu0 %v417
      %436 = vmatprep.subr.mxu0 0.0
      %437 = vmatpush1.msra.mxu0 %v418
      %438 = vmatprep.subr.mxu0 0.0
      %439 = vmatpush1.msra.mxu0 %v419
      %440 = vmatprep.subr.mxu0 0.0
      %441 = vmatpush1.msra.mxu0 0.0
      %442 = vmatprep.subr.mxu0 0.0
      %443 = vmatpush1.msra.mxu0 0.0
      %444 = vmatprep.subr.mxu0 0.0
      %445 = vmatpush1.msra.mxu0 0.0
      %446 = vmatprep.subr.mxu0 0.0
      %447 = vmatpush1.msra.mxu0 0.0
      %448 = vmatprep.subr.mxu0 0.0
      %449 = vmatpush1.msra.mxu0 0.0
      %450 = vmatprep.subr.mxu0 0.0
      %451 = vmatpush1.msra.mxu0 0.0
      %452 = vmatprep.subr.mxu0 0.0
      %453 = vmatpush1.msra.mxu0 0.0
      %454 = vmatprep.subr.mxu0 0.0
      %455 = vmatpush1.msra.mxu0 0.0
      %456 = vmatprep.subr.mxu0 0.0
      %457 = vmatpush1.msra.mxu0 0.0
      %458 = vmatprep.subr.mxu0 0.0
      %459 = vmatpush1.msra.mxu0 0.0
      %460 = vmatprep.subr.mxu0 0.0
      %461 = vmatpush1.msra.mxu0 0.0
      %462 = vmatprep.subr.mxu0 0.0
      %463 = vmatpush1.msra.mxu0 0.0
      %464 = vmatprep.subr.mxu0 0.0
      %465 = vmatpush1.msra.mxu0 0.0
      %466 = vmatprep.subr.mxu0 0.0
      %467 = vmatpush1.msra.mxu0 0.0
      %468 = vmatprep.subr.mxu0 0.0
      %469 = vmatpush1.msra.mxu0 0.0
      %470 = vmatprep.subr.mxu0 0.0
      %471 = vmatpush1.msra.mxu0 0.0
      %472 = vmatprep.subr.mxu0 0.0
      %473 = vmatpush1.msra.mxu0 0.0
      %474 = vmatprep.subr.mxu0 0.0
      %475 = vmatpush1.msra.mxu0 0.0
      %476 = vmatprep.subr.mxu0 0.0
      %477 = vmatpush1.msra.mxu0 0.0
      %478 = vmatprep.subr.mxu0 0.0
      %479 = vmatpush1.msra.mxu0 0.0
      %480 = vmatprep.subr.mxu0 0.0
      %481 = vmatpush1.msra.mxu0 0.0
      %482 = vmatprep.subr.mxu0 0.0
      %483 = vmatpush1.msra.mxu0 0.0
      %484 = vmatprep.subr.mxu0 0.0
      %485 = vmatpush1.msra.mxu0 0.0
      %486 = vmatprep.subr.mxu0 0.0
      %487 = vmatpush1.msra.mxu0 0.0
      %488 = vmatprep.mubr.f32.mxu0 0.0
      %489 = vmatmul.mubr.f32.gmra.mrb[0].mxu0 %v422
      %v490 = vpop.f32.mrb[0].mxu0
      %v491 = vadd.f32 0.0, %v490
      %v492 = vpop.f32.mrb[0].mxu0
      %493 = vdwg.mxu0
      %v494 = vld [vmem:[%s3] sm:$0xff]
      %v495 = vld [vmem:[%s3 + $0x8] sm:$0xff]
      %v496 = vld [vmem:[%s3 + $0x10] sm:$0xff]
      %v497 = vld [vmem:[%s3 + $0x18] sm:$0xff]
      %v498 = vld [vmem:[%s3 + $0x20] sm:$0xff]
      %v499 = vld [vmem:[%s3 + $0x28] sm:$0xff]
      %v500 = vld [vmem:[%s3 + $0x30] sm:$0xff]
      %v501 = vld [vmem:[%s3 + $0x38] sm:$0xff]
      %v503 = vsel %vm420, %v411, 0
      %505 = vmatprep.subr.mxu0 0.0
      %506 = vmatpush1.msra.mxu0 %v494
      %507 = vmatprep.subr.mxu0 0.0
      %508 = vmatpush1.msra.mxu0 %v495
      %509 = vmatprep.subr.mxu0 0.0
      %510 = vmatpush1.msra.mxu0 %v496
      %511 = vmatprep.subr.mxu0 0.0
      %512 = vmatpush1.msra.mxu0 %v497
      %513 = vmatprep.subr.mxu0 0.0
      %514 = vmatpush1.msra.mxu0 %v498
      %515 = vmatprep.subr.mxu0 0.0
      %516 = vmatpush1.msra.mxu0 %v499
      %517 = vmatprep.subr.mxu0 0.0
      %518 = vmatpush1.msra.mxu0 %v500
      %519 = vmatprep.subr.mxu0 0.0
      %520 = vmatpush1.msra.mxu0 %v501
      %521 = vmatprep.subr.mxu0 0.0
      %522 = vmatpush1.msra.mxu0 0.0
      %523 = vmatprep.subr.mxu0 0.0
      %524 = vmatpush1.msra.mxu0 0.0
      %525 = vmatprep.subr.mxu0 0.0
      %526 = vmatpush1.msra.mxu0 0.0
      %527 = vmatprep.subr.mxu0 0.0
      %528 = vmatpush1.msra.mxu0 0.0
      %529 = vmatprep.subr.mxu0 0.0
      %530 = vmatpush1.msra.mxu0 0.0
      %531 = vmatprep.subr.mxu0 0.0
      %532 = vmatpush1.msra.mxu0 0.0
      %533 = vmatprep.subr.mxu0 0.0
      %534 = vmatpush1.msra.mxu0 0.0
      %535 = vmatprep.subr.mxu0 0.0
      %536 = vmatpush1.msra.mxu0 0.0
      %537 = vmatprep.subr.mxu0 0.0
      %538 = vmatpush1.msra.mxu0 0.0
      %539 = vmatprep.subr.mxu0 0.0
      %540 = vmatpush1.msra.mxu0 0.0
      %541 = vmatprep.subr.mxu0 0.0
      %542 = vmatpush1.msra.mxu0 0.0
      %543 = vmatprep.subr.mxu0 0.0
      %544 = vmatpush1.msra.mxu0 0.0
      %545 = vmatprep.subr.mxu0 0.0
      %546 = vmatpush1.msra.mxu0 0.0
      %547 = vmatprep.subr.mxu0 0.0
      %548 = vmatpush1.msra.mxu0 0.0
      %549 = vmatprep.subr.mxu0 0.0
      %550 = vmatpush1.msra.mxu0 0.0
      %551 = vmatprep.subr.mxu0 0.0
      %552 = vmatpush1.msra.mxu0 0.0
      %553 = vmatprep.subr.mxu0 0.0
      %554 = vmatpush1.msra.mxu0 0.0
      %555 = vmatprep.subr.mxu0 0.0
      %556 = vmatpush1.msra.mxu0 0.0
      %557 = vmatprep.subr.mxu0 0.0
      %558 = vmatpush1.msra.mxu0 0.0
      %559 = vmatprep.subr.mxu0 0.0
      %560 = vmatpush1.msra.mxu0 0.0
      %561 = vmatprep.subr.mxu0 0.0
      %562 = vmatpush1.msra.mxu0 0.0
      %563 = vmatprep.subr.mxu0 0.0
      %564 = vmatpush1.msra.mxu0 0.0
      %565 = vmatprep.subr.mxu0 0.0
      %566 = vmatpush1.msra.mxu0 0.0
      %567 = vmatprep.subr.mxu0 0.0
      %568 = vmatpush1.msra.mxu0 0.0
      %569 = vmatprep.mubr.f32.mxu0 0.0
      %570 = vmatmul.mubr.f32.gmra.mrb[0].mxu0 %v503
      %v571 = vpop.f32.mrb[0].mxu0
      %v572 = vadd.f32 0.0, %v571
      %v573 = vpop.f32.mrb[0].mxu0
      %574 = vdwg.mxu0
      %v575 = vsub.f32 %v491, %v572
      %v576 = vld [vmem:[%s4] sm:$0x1]
      %v578 = vlaneseq
      %v579 = vshrl.u32 %v578, 7
      %v580 = vsub.s32 0, %v579
      %v581 = vrot.slane %v576, %v580
      %v583 = vadd.f32 %v575, %v581
      %584 = vmatprep.subr.mxu0 0.0
      %585 = vmatpush1.msra.mxu0 %v412
      %586 = vmatprep.subr.mxu0 0.0
      %587 = vmatpush1.msra.mxu0 %v413
      %588 = vmatprep.subr.mxu0 0.0
      %589 = vmatpush1.msra.mxu0 %v414
      %590 = vmatprep.subr.mxu0 0.0
      %591 = vmatpush1.msra.mxu0 %v415
      %592 = vmatprep.subr.mxu0 0.0
      %593 = vmatpush1.msra.mxu0 %v416
      %594 = vmatprep.subr.mxu0 0.0
      %595 = vmatpush1.msra.mxu0 %v417
      %596 = vmatprep.subr.mxu0 0.0
      %597 = vmatpush1.msra.mxu0 %v418
      %598 = vmatprep.subr.mxu0 0.0
      %599 = vmatpush1.msra.mxu0 %v419
      %600 = vmatprep.subr.mxu0 0.0
      %601 = vmatpush1.msra.mxu0 0.0
      %602 = vmatprep.subr.mxu0 0.0
      %603 = vmatpush1.msra.mxu0 0.0
      %604 = vmatprep.subr.mxu0 0.0
      %605 = vmatpush1.msra.mxu0 0.0
      %606 = vmatprep.subr.mxu0 0.0
      %607 = vmatpush1.msra.mxu0 0.0
      %608 = vmatprep.subr.mxu0 0.0
      %609 = vmatpush1.msra.mxu0 0.0
      %610 = vmatprep.subr.mxu0 0.0
      %611 = vmatpush1.msra.mxu0 0.0
      %612 = vmatprep.subr.mxu0 0.0
      %613 = vmatpush1.msra.mxu0 0.0
      %614 = vmatprep.subr.mxu0 0.0
      %615 = vmatpush1.msra.mxu0 0.0
      %616 = vmatprep.subr.mxu0 0.0
      %617 = vmatpush1.msra.mxu0 0.0
      %618 = vmatprep.subr.mxu0 0.0
      %619 = vmatpush1.msra.mxu0 0.0
      %620 = vmatprep.subr.mxu0 0.0
      %621 = vmatpush1.msra.mxu0 0.0
      %622 = vmatprep.subr.mxu0 0.0
      %623 = vmatpush1.msra.mxu0 0.0
      %624 = vmatprep.subr.mxu0 0.0
      %625 = vmatpush1.msra.mxu0 0.0
      %626 = vmatprep.subr.mxu0 0.0
      %627 = vmatpush1.msra.mxu0 0.0
      %628 = vmatprep.subr.mxu0 0.0
      %629 = vmatpush1.msra.mxu0 0.0
      %630 = vmatprep.subr.mxu0 0.0
      %631 = vmatpush1.msra.mxu0 0.0
      %632 = vmatprep.subr.mxu0 0.0
      %633 = vmatpush1.msra.mxu0 0.0
      %634 = vmatprep.subr.mxu0 0.0
      %635 = vmatpush1.msra.mxu0 0.0
      %636 = vmatprep.subr.mxu0 0.0
      %637 = vmatpush1.msra.mxu0 0.0
      %638 = vmatprep.subr.mxu0 0.0
      %639 = vmatpush1.msra.mxu0 0.0
      %640 = vmatprep.subr.mxu0 0.0
      %641 = vmatpush1.msra.mxu0 0.0
      %642 = vmatprep.subr.mxu0 0.0
      %643 = vmatpush1.msra.mxu0 0.0
      %644 = vmatprep.subr.mxu0 0.0
      %645 = vmatpush1.msra.mxu0 0.0
      %646 = vmatprep.subr.mxu0 0.0
      %647 = vmatpush1.msra.mxu0 0.0
      %648 = vmatprep.mubr.f32.mxu0 0.0
      %649 = vmatmul.mubr.f32.gmra.mrb[0].mxu0 %v503
      %v650 = vpop.f32.mrb[0].mxu0
      %v651 = vadd.f32 0.0, %v650
      %v652 = vpop.f32.mrb[0].mxu0
      %653 = vdwg.mxu0
      %654 = vmatprep.subr.mxu0 0.0
      %655 = vmatpush1.msra.mxu0 %v494
      %656 = vmatprep.subr.mxu0 0.0
      %657 = vmatpush1.msra.mxu0 %v495
      %658 = vmatprep.subr.mxu0 0.0
      %659 = vmatpush1.msra.mxu0 %v496
      %660 = vmatprep.subr.mxu0 0.0
      %661 = vmatpush1.msra.mxu0 %v497
      %662 = vmatprep.subr.mxu0 0.0
      %663 = vmatpush1.msra.mxu0 %v498
      %664 = vmatprep.subr.mxu0 0.0
      %665 = vmatpush1.msra.mxu0 %v499
      %666 = vmatprep.subr.mxu0 0.0
      %667 = vmatpush1.msra.mxu0 %v500
      %668 = vmatprep.subr.mxu0 0.0
      %669 = vmatpush1.msra.mxu0 %v501
      %670 = vmatprep.subr.mxu0 0.0
      %671 = vmatpush1.msra.mxu0 0.0
      %672 = vmatprep.subr.mxu0 0.0
      %673 = vmatpush1.msra.mxu0 0.0
      %674 = vmatprep.subr.mxu0 0.0
      %675 = vmatpush1.msra.mxu0 0.0
      %676 = vmatprep.subr.mxu0 0.0
      %677 = vmatpush1.msra.mxu0 0.0
      %678 = vmatprep.subr.mxu0 0.0
      %679 = vmatpush1.msra.mxu0 0.0
      %680 = vmatprep.subr.mxu0 0.0
      %681 = vmatpush1.msra.mxu0 0.0
      %682 = vmatprep.subr.mxu0 0.0
      %683 = vmatpush1.msra.mxu0 0.0
      %684 = vmatprep.subr.mxu0 0.0
      %685 = vmatpush1.msra.mxu0 0.0
      %686 = vmatprep.subr.mxu0 0.0
      %687 = vmatpush1.msra.mxu0 0.0
      %688 = vmatprep.subr.mxu0 0.0
      %689 = vmatpush1.msra.mxu0 0.0
      %690 = vmatprep.subr.mxu0 0.0
      %691 = vmatpush1.msra.mxu0 0.0
      %692 = vmatprep.subr.mxu0 0.0
      %693 = vmatpush1.msra.mxu0 0.0
      %694 = vmatprep.subr.mxu0 0.0
      %695 = vmatpush1.msra.mxu0 0.0
      %696 = vmatprep.subr.mxu0 0.0
      %697 = vmatpush1.msra.mxu0 0.0
      %698 = vmatprep.subr.mxu0 0.0
      %699 = vmatpush1.msra.mxu0 0.0
      %700 = vmatprep.subr.mxu0 0.0
      %701 = vmatpush1.msra.mxu0 0.0
      %702 = vmatprep.subr.mxu0 0.0
      %703 = vmatpush1.msra.mxu0 0.0
      %704 = vmatprep.subr.mxu0 0.0
      %705 = vmatpush1.msra.mxu0 0.0
      %706 = vmatprep.subr.mxu0 0.0
      %707 = vmatpush1.msra.mxu0 0.0
      %708 = vmatprep.subr.mxu0 0.0
      %709 = vmatpush1.msra.mxu0 0.0
      %710 = vmatprep.subr.mxu0 0.0
      %711 = vmatpush1.msra.mxu0 0.0
      %712 = vmatprep.subr.mxu0 0.0
      %713 = vmatpush1.msra.mxu0 0.0
      %714 = vmatprep.subr.mxu0 0.0
      %715 = vmatpush1.msra.mxu0 0.0
      %716 = vmatprep.subr.mxu0 0.0
      %717 = vmatpush1.msra.mxu0 0.0
      %718 = vmatprep.mubr.f32.mxu0 0.0
      %719 = vmatmul.mubr.f32.gmra.mrb[0].mxu0 %v422
      %v720 = vpop.f32.mrb[0].mxu0
      %v721 = vadd.f32 %v651, %v720
      %v722 = vpop.f32.mrb[0].mxu0
      %723 = vdwg.mxu0
      %v724 = vld [vmem:[%s5] sm:$0x1]
      %v726 = vlaneseq
      %v727 = vshrl.u32 %v726, 7
      %v728 = vsub.s32 0, %v727
      %v729 = vrot.slane %v724, %v728
      %v731 = vadd.f32 %v721, %v729
      %v732 = vmax.f32 %v583, 0.0
      %v733 = vmax.f32 %v731, 0.0
      %v734 = vld [vmem:[%s6] sm:$0xff]
      %v735 = vld [vmem:[%s6 + $0x8] sm:$0xff]
      %v736 = vld [vmem:[%s6 + $0x10] sm:$0xff]
      %v737 = vld [vmem:[%s6 + $0x18] sm:$0xff]
      %v738 = vld [vmem:[%s6 + $0x20] sm:$0xff]
      %v739 = vld [vmem:[%s6 + $0x28] sm:$0xff]
      %v740 = vld [vmem:[%s6 + $0x30] sm:$0xff]
      %v741 = vld [vmem:[%s6 + $0x38] sm:$0xff]
      %v743 = vsel %vm420, %v732, 0
      %745 = vmatprep.subr.mxu0 0.0
      %746 = vmatpush1.msra.mxu0 %v734
      %747 = vmatprep.subr.mxu0 0.0
      %748 = vmatpush1.msra.mxu0 %v735
      %749 = vmatprep.subr.mxu0 0.0
      %750 = vmatpush1.msra.mxu0 %v736
      %751 = vmatprep.subr.mxu0 0.0
      %752 = vmatpush1.msra.mxu0 %v737
      %753 = vmatprep.subr.mxu0 0.0
      %754 = vmatpush1.msra.mxu0 %v738
      %755 = vmatprep.subr.mxu0 0.0
      %756 = vmatpush1.msra.mxu0 %v739
      %757 = vmatprep.subr.mxu0 0.0
      %758 = vmatpush1.msra.mxu0 %v740
      %759 = vmatprep.subr.mxu0 0.0
      %760 = vmatpush1.msra.mxu0 %v741
      %761 = vmatprep.subr.mxu0 0.0
      %762 = vmatpush1.msra.mxu0 0.0
      %763 = vmatprep.subr.mxu0 0.0
      %764 = vmatpush1.msra.mxu0 0.0
      %765 = vmatprep.subr.mxu0 0.0
      %766 = vmatpush1.msra.mxu0 0.0
      %767 = vmatprep.subr.mxu0 0.0
      %768 = vmatpush1.msra.mxu0 0.0
      %769 = vmatprep.subr.mxu0 0.0
      %770 = vmatpush1.msra.mxu0 0.0
      %771 = vmatprep.subr.mxu0 0.0
      %772 = vmatpush1.msra.mxu0 0.0
      %773 = vmatprep.subr.mxu0 0.0
      %774 = vmatpush1.msra.mxu0 0.0
      %775 = vmatprep.subr.mxu0 0.0
      %776 = vmatpush1.msra.mxu0 0.0
      %777 = vmatprep.subr.mxu0 0.0
      %778 = vmatpush1.msra.mxu0 0.0
      %779 = vmatprep.subr.mxu0 0.0
      %780 = vmatpush1.msra.mxu0 0.0
      %781 = vmatprep.subr.mxu0 0.0
      %782 = vmatpush1.msra.mxu0 0.0
      %783 = vmatprep.subr.mxu0 0.0
      %784 = vmatpush1.msra.mxu0 0.0
      %785 = vmatprep.subr.mxu0 0.0
      %786 = vmatpush1.msra.mxu0 0.0
      %787 = vmatprep.subr.mxu0 0.0
      %788 = vmatpush1.msra.mxu0 0.0
      %789 = vmatprep.subr.mxu0 0.0
      %790 = vmatpush1.msra.mxu0 0.0
      %791 = vmatprep.subr.mxu0 0.0
      %792 = vmatpush1.msra.mxu0 0.0
      %793 = vmatprep.subr.mxu0 0.0
      %794 = vmatpush1.msra.mxu0 0.0
      %795 = vmatprep.subr.mxu0 0.0
      %796 = vmatpush1.msra.mxu0 0.0
      %797 = vmatprep.subr.mxu0 0.0
      %798 = vmatpush1.msra.mxu0 0.0
      %799 = vmatprep.subr.mxu0 0.0
      %800 = vmatpush1.msra.mxu0 0.0
      %801 = vmatprep.subr.mxu0 0.0
      %802 = vmatpush1.msra.mxu0 0.0
      %803 = vmatprep.subr.mxu0 0.0
      %804 = vmatpush1.msra.mxu0 0.0
      %805 = vmatprep.subr.mxu0 0.0
      %806 = vmatpush1.msra.mxu0 0.0
      %807 = vmatprep.subr.mxu0 0.0
      %808 = vmatpush1.msra.mxu0 0.0
      %809 = vmatprep.mubr.f32.mxu0 0.0
      %810 = vmatmul.mubr.f32.gmra.mrb[0].mxu0 %v743
      %v811 = vpop.f32.mrb[0].mxu0
      %v812 = vadd.f32 0.0, %v811
      %v813 = vpop.f32.mrb[0].mxu0
      %814 = vdwg.mxu0
      %v815 = vld [vmem:[%s7] sm:$0xff]
      %v816 = vld [vmem:[%s7 + $0x8] sm:$0xff]
      %v817 = vld [vmem:[%s7 + $0x10] sm:$0xff]
      %v818 = vld [vmem:[%s7 + $0x18] sm:$0xff]
      %v819 = vld [vmem:[%s7 + $0x20] sm:$0xff]
      %v820 = vld [vmem:[%s7 + $0x28] sm:$0xff]
      %v821 = vld [vmem:[%s7 + $0x30] sm:$0xff]
      %v822 = vld [vmem:[%s7 + $0x38] sm:$0xff]
      %v824 = vsel %vm420, %v733, 0
      %826 = vmatprep.subr.mxu0 0.0
      %827 = vmatpush1.msra.mxu0 %v815
      %828 = vmatprep.subr.mxu0 0.0
      %829 = vmatpush1.msra.mxu0 %v816
      %830 = vmatprep.subr.mxu0 0.0
      %831 = vmatpush1.msra.mxu0 %v817
      %832 = vmatprep.subr.mxu0 0.0
      %833 = vmatpush1.msra.mxu0 %v818
      %834 = vmatprep.subr.mxu0 0.0
      %835 = vmatpush1.msra.mxu0 %v819
      %836 = vmatprep.subr.mxu0 0.0
      %837 = vmatpush1.msra.mxu0 %v820
      %838 = vmatprep.subr.mxu0 0.0
      %839 = vmatpush1.msra.mxu0 %v821
      %840 = vmatprep.subr.mxu0 0.0
      %841 = vmatpush1.msra.mxu0 %v822
      %842 = vmatprep.subr.mxu0 0.0
      %843 = vmatpush1.msra.mxu0 0.0
      %844 = vmatprep.subr.mxu0 0.0
      %845 = vmatpush1.msra.mxu0 0.0
      %846 = vmatprep.subr.mxu0 0.0
      %847 = vmatpush1.msra.mxu0 0.0
      %848 = vmatprep.subr.mxu0 0.0
      %849 = vmatpush1.msra.mxu0 0.0
      %850 = vmatprep.subr.mxu0 0.0
      %851 = vmatpush1.msra.mxu0 0.0
      %852 = vmatprep.subr.mxu0 0.0
      %853 = vmatpush1.msra.mxu0 0.0
      %854 = vmatprep.subr.mxu0 0.0
      %855 = vmatpush1.msra.mxu0 0.0
      %856 = vmatprep.subr.mxu0 0.0
      %857 = vmatpush1.msra.mxu0 0.0
      %858 = vmatprep.subr.mxu0 0.0
      %859 = vmatpush1.msra.mxu0 0.0
      %860 = vmatprep.subr.mxu0 0.0
      %861 = vmatpush1.msra.mxu0 0.0
      %862 = vmatprep.subr.mxu0 0.0
      %863 = vmatpush1.msra.mxu0 0.0
      %864 = vmatprep.subr.mxu0 0.0
      %865 = vmatpush1.msra.mxu0 0.0
      %866 = vmatprep.subr.mxu0 0.0
      %867 = vmatpush1.msra.mxu0 0.0
      %868 = vmatprep.subr.mxu0 0.0
      %869 = vmatpush1.msra.mxu0 0.0
      %870 = vmatprep.subr.mxu0 0.0
      %871 = vmatpush1.msra.mxu0 0.0
      %872 = vmatprep.subr.mxu0 0.0
      %873 = vmatpush1.msra.mxu0 0.0
      %874 = vmatprep.subr.mxu0 0.0
      %875 = vmatpush1.msra.mxu0 0.0
      %876 = vmatprep.subr.mxu0 0.0
      %877 = vmatpush1.msra.mxu0 0.0
      %878 = vmatprep.subr.mxu0 0.0
      %879 = vmatpush1.msra.mxu0 0.0
      %880 = vmatprep.subr.mxu0 0.0
      %881 = vmatpush1.msra.mxu0 0.0
      %882 = vmatprep.subr.mxu0 0.0
      %883 = vmatpush1.msra.mxu0 0.0
      %884 = vmatprep.subr.mxu0 0.0
      %885 = vmatpush1.msra.mxu0 0.0
      %886 = vmatprep.subr.mxu0 0.0
      %887 = vmatpush1.msra.mxu0 0.0
      %888 = vmatprep.subr.mxu0 0.0
      %889 = vmatpush1.msra.mxu0 0.0
      %890 = vmatprep.mubr.f32.mxu0 0.0
      %891 = vmatmul.mubr.f32.gmra.mrb[0].mxu0 %v824
      %v892 = vpop.f32.mrb[0].mxu0
      %v893 = vadd.f32 0.0, %v892
      %v894 = vpop.f32.mrb[0].mxu0
      %895 = vdwg.mxu0
      %v896 = vsub.f32 %v812, %v893
      %v897 = vld [vmem:[%s8] sm:$0x1]
      %v899 = vlaneseq
      %v900 = vshrl.u32 %v899, 7
      %v901 = vsub.s32 0, %v900
      %v902 = vrot.slane %v897, %v901
      %v904 = vadd.f32 %v896, %v902
      %905 = vst.msk [vmem:[%s405] sm:$0xff] %vm420, %v904
      %v906 = vld [vmem:[%s7] sm:$0xff]
      %v907 = vld [vmem:[%s7 + $0x8] sm:$0xff]
      %v908 = vld [vmem:[%s7 + $0x10] sm:$0xff]
      %v909 = vld [vmem:[%s7 + $0x18] sm:$0xff]
      %v910 = vld [vmem:[%s7 + $0x20] sm:$0xff]
      %v911 = vld [vmem:[%s7 + $0x28] sm:$0xff]
      %v912 = vld [vmem:[%s7 + $0x30] sm:$0xff]
      %v913 = vld [vmem:[%s7 + $0x38] sm:$0xff]
      %v914 = vld [vmem:[%s6] sm:$0xff]
      %v915 = vld [vmem:[%s6 + $0x8] sm:$0xff]
      %v916 = vld [vmem:[%s6 + $0x10] sm:$0xff]
      %v917 = vld [vmem:[%s6 + $0x18] sm:$0xff]
      %v918 = vld [vmem:[%s6 + $0x20] sm:$0xff]
      %v919 = vld [vmem:[%s6 + $0x28] sm:$0xff]
      %v920 = vld [vmem:[%s6 + $0x30] sm:$0xff]
      %v921 = vld [vmem:[%s6 + $0x38] sm:$0xff]
      %922 = vmatprep.subr.mxu0 0.0
      %923 = vmatpush1.msra.mxu0 %v914
      %924 = vmatprep.subr.mxu0 0.0
      %925 = vmatpush1.msra.mxu0 %v915
      %926 = vmatprep.subr.mxu0 0.0
      %927 = vmatpush1.msra.mxu0 %v916
      %928 = vmatprep.subr.mxu0 0.0
      %929 = vmatpush1.msra.mxu0 %v917
      %930 = vmatprep.subr.mxu0 0.0
      %931 = vmatpush1.msra.mxu0 %v918
      %932 = vmatprep.subr.mxu0 0.0
      %933 = vmatpush1.msra.mxu0 %v919
      %934 = vmatprep.subr.mxu0 0.0
      %935 = vmatpush1.msra.mxu0 %v920
      %936 = vmatprep.subr.mxu0 0.0
      %937 = vmatpush1.msra.mxu0 %v921
      %938 = vmatprep.subr.mxu0 0.0
      %939 = vmatpush1.msra.mxu0 0.0
      %940 = vmatprep.subr.mxu0 0.0
      %941 = vmatpush1.msra.mxu0 0.0
      %942 = vmatprep.subr.mxu0 0.0
      %943 = vmatpush1.msra.mxu0 0.0
      %944 = vmatprep.subr.mxu0 0.0
      %945 = vmatpush1.msra.mxu0 0.0
      %946 = vmatprep.subr.mxu0 0.0
      %947 = vmatpush1.msra.mxu0 0.0
      %948 = vmatprep.subr.mxu0 0.0
      %949 = vmatpush1.msra.mxu0 0.0
      %950 = vmatprep.subr.mxu0 0.0
      %951 = vmatpush1.msra.mxu0 0.0
      %952 = vmatprep.subr.mxu0 0.0
      %953 = vmatpush1.msra.mxu0 0.0
      %954 = vmatprep.subr.mxu0 0.0
      %955 = vmatpush1.msra.mxu0 0.0
      %956 = vmatprep.subr.mxu0 0.0
      %957 = vmatpush1.msra.mxu0 0.0
      %958 = vmatprep.subr.mxu0 0.0
      %959 = vmatpush1.msra.mxu0 0.0
      %960 = vmatprep.subr.mxu0 0.0
      %961 = vmatpush1.msra.mxu0 0.0
      %962 = vmatprep.subr.mxu0 0.0
      %963 = vmatpush1.msra.mxu0 0.0
      %964 = vmatprep.subr.mxu0 0.0
      %965 = vmatpush1.msra.mxu0 0.0
      %966 = vmatprep.subr.mxu0 0.0
      %967 = vmatpush1.msra.mxu0 0.0
      %968 = vmatprep.subr.mxu0 0.0
      %969 = vmatpush1.msra.mxu0 0.0
      %970 = vmatprep.subr.mxu0 0.0
      %971 = vmatpush1.msra.mxu0 0.0
      %972 = vmatprep.subr.mxu0 0.0
      %973 = vmatpush1.msra.mxu0 0.0
      %974 = vmatprep.subr.mxu0 0.0
      %975 = vmatpush1.msra.mxu0 0.0
      %976 = vmatprep.subr.mxu0 0.0
      %977 = vmatpush1.msra.mxu0 0.0
      %978 = vmatprep.subr.mxu0 0.0
      %979 = vmatpush1.msra.mxu0 0.0
      %980 = vmatprep.subr.mxu0 0.0
      %981 = vmatpush1.msra.mxu0 0.0
      %982 = vmatprep.subr.mxu0 0.0
      %983 = vmatpush1.msra.mxu0 0.0
      %984 = vmatprep.subr.mxu0 0.0
      %985 = vmatpush1.msra.mxu0 0.0
      %986 = vmatprep.mubr.f32.mxu0 0.0
      %987 = vmatmul.mubr.f32.gmra.mrb[0].mxu0 %v824
      %v988 = vpop.f32.mrb[0].mxu0
      %v989 = vadd.f32 0.0, %v988
      %v990 = vpop.f32.mrb[0].mxu0
      %991 = vdwg.mxu0
      %992 = vmatprep.subr.mxu0 0.0
      %993 = vmatpush1.msra.mxu0 %v906
      %994 = vmatprep.subr.mxu0 0.0
      %995 = vmatpush1.msra.mxu0 %v907
      %996 = vmatprep.subr.mxu0 0.0
      %997 = vmatpush1.msra.mxu0 %v908
      %998 = vmatprep.subr.mxu0 0.0
      %999 = vmatpush1.msra.mxu0 %v909
      %1000 = vmatprep.subr.mxu0 0.0
      %1001 = vmatpush1.msra.mxu0 %v910
      %1002 = vmatprep.subr.mxu0 0.0
      %1003 = vmatpush1.msra.mxu0 %v911
      %1004 = vmatprep.subr.mxu0 0.0
      %1005 = vmatpush1.msra.mxu0 %v912
      %1006 = vmatprep.subr.mxu0 0.0
      %1007 = vmatpush1.msra.mxu0 %v913
      %1008 = vmatprep.subr.mxu0 0.0
      %1009 = vmatpush1.msra.mxu0 0.0
      %1010 = vmatprep.subr.mxu0 0.0
      %1011 = vmatpush1.msra.mxu0 0.0
      %1012 = vmatprep.subr.mxu0 0.0
      %1013 = vmatpush1.msra.mxu0 0.0
      %1014 = vmatprep.subr.mxu0 0.0
      %1015 = vmatpush1.msra.mxu0 0.0
      %1016 = vmatprep.subr.mxu0 0.0
      %1017 = vmatpush1.msra.mxu0 0.0
      %1018 = vmatprep.subr.mxu0 0.0
      %1019 = vmatpush1.msra.mxu0 0.0
      %1020 = vmatprep.subr.mxu0 0.0
      %1021 = vmatpush1.msra.mxu0 0.0
      %1022 = vmatprep.subr.mxu0 0.0
      %1023 = vmatpush1.msra.mxu0 0.0
      %1024 = vmatprep.subr.mxu0 0.0
      %1025 = vmatpush1.msra.mxu0 0.0
      %1026 = vmatprep.subr.mxu0 0.0
      %1027 = vmatpush1.msra.mxu0 0.0
      %1028 = vmatprep.subr.mxu0 0.0
      %1029 = vmatpush1.msra.mxu0 0.0
      %1030 = vmatprep.subr.mxu0 0.0
      %1031 = vmatpush1.msra.mxu0 0.0
      %1032 = vmatprep.subr.mxu0 0.0
      %1033 = vmatpush1.msra.mxu0 0.0
      %1034 = vmatprep.subr.mxu0 0.0
      %1035 = vmatpush1.msra.mxu0 0.0
      %1036 = vmatprep.subr.mxu0 0.0
      %1037 = vmatpush1.msra.mxu0 0.0
      %1038 = vmatprep.subr.mxu0 0.0
      %1039 = vmatpush1.msra.mxu0 0.0
      %1040 = vmatprep.subr.mxu0 0.0
      %1041 = vmatpush1.msra.mxu0 0.0
      %1042 = vmatprep.subr.mxu0 0.0
      %1043 = vmatpush1.msra.mxu0 0.0
      %1044 = vmatprep.subr.mxu0 0.0
      %1045 = vmatpush1.msra.mxu0 0.0
      %1046 = vmatprep.subr.mxu0 0.0
      %1047 = vmatpush1.msra.mxu0 0.0
      %1048 = vmatprep.subr.mxu0 0.0
      %1049 = vmatpush1.msra.mxu0 0.0
      %1050 = vmatprep.subr.mxu0 0.0
      %1051 = vmatpush1.msra.mxu0 0.0
      %1052 = vmatprep.subr.mxu0 0.0
      %1053 = vmatpush1.msra.mxu0 0.0
      %1054 = vmatprep.subr.mxu0 0.0
      %1055 = vmatpush1.msra.mxu0 0.0
      %1056 = vmatprep.mubr.f32.mxu0 0.0
      %1057 = vmatmul.mubr.f32.gmra.mrb[0].mxu0 %v743
      %v1058 = vpop.f32.mrb[0].mxu0
      %v1059 = vadd.f32 %v989, %v1058
      %v1060 = vpop.f32.mrb[0].mxu0
      %1061 = vdwg.mxu0
      %v1062 = vld [vmem:[%s9] sm:$0x1]
      %v1064 = vlaneseq
      %v1065 = vshrl.u32 %v1064, 7
      %v1066 = vsub.s32 0, %v1065
      %v1067 = vrot.slane %v1062, %v1066
      %v1069 = vadd.f32 %v1059, %v1067
      %1070 = vst.msk [vmem:[%s409] sm:$0xff] %vm420, %v1069
      %p1071 = scmp.lt.s32.totalorder %s23, 2
      %s1072 = scalar_select %p1071, %s23, 2
      %s1073 = smul.addr %s1072, 8
      %s1074 = scalar_lea.vmem %s10, %s1073
      %p1075 = scmp.lt.s32.totalorder %s23, 2
      %s1076 = scalar_select %p1075, %s23, 2
      %s1077 = smul.addr %s1076, 8
      %s1078 = scalar_lea.vmem %s11, %s1077
      // Predicated region
      $region61: #{afno_forward.10} parent=59 // pred_check
        %p1079 = pneg %p261
      $region62: #{afno_forward.10} parent=59 // pred_check_branch
        %1081 = sbr.rel (%p1079) target = $region64
      $region63: #{afno_forward.10} parent=59 // pred_region
        _
      $region64: #{afno_forward.10} parent=59 // pred_fallthru
        _
      // Predicated region
      $region65: #{afno_forward.10} parent=59 // pred_check
        %p1082 = pneg %p287
      $region66: #{afno_forward.10} parent=59 // pred_check_branch
        %1084 = sbr.rel (%p1082) target = $region68
      $region67: #{afno_forward.10} parent=59 // pred_region
        _
      $region68: #{afno_forward.10} parent=59 // pred_fallthru
        _
    $region60: #{afno_forward.10} parent=5 // pred_fallthru
      _
    %p1085 = scmp.le.s32.totalorder 2, %s18
    // Predicated region
    $region69: #{afno_forward.10} parent=5 // pred_check
      %p1086 = pneg %p1085
    $region70: #{afno_forward.10} parent=5 // pred_check_branch
      %1088 = sbr.rel (%p1086) target = $region72
    $region71: #{afno_forward.10} parent=5 // pred_region
      %s1089 = ssub.s32 %s18, 2
      // Predicated region
      $region73: #{afno_forward.10} parent=71 // pred_check
        %p1090 = pneg %p267
      $region74: #{afno_forward.10} parent=71 // pred_check_branch
        %1092 = sbr.rel (%p1090) target = $region76
      $region75: #{afno_forward.10} parent=71 // pred_region
        %p1093 = scmp.lt.s32.totalorder %s24, 2
        %s1094 = scalar_select %p1093, %s24, 2
        %s1095 = smul.addr %s1094, 8
        %s1096 = scalar_lea.vmem %s10, %s1095
      $region76: #{afno_forward.10} parent=71 // pred_fallthru
        _
      // Predicated region
      $region77: #{afno_forward.10} parent=71 // pred_check
        %p1097 = pneg %p293
      $region78: #{afno_forward.10} parent=71 // pred_check_branch
        %1099 = sbr.rel (%p1097) target = $region80
      $region79: #{afno_forward.10} parent=71 // pred_region
        %p1100 = scmp.lt.s32.totalorder %s24, 2
        %s1101 = scalar_select %p1100, %s24, 2
        %s1102 = smul.addr %s1101, 8
        %s1103 = scalar_lea.vmem %s11, %s1102
      $region80: #{afno_forward.10} parent=71 // pred_fallthru
        _
    $region72: #{afno_forward.10} parent=5 // pred_fallthru
      _
  $region6: #{afno_forward.10} parent=0 // loop_footer
    %s22 = sadd.s32 1, %s18
  $region7: #{afno_forward.10} parent=0 // loop_footer_branch
    %17 = sbr.rel target = $region3
  $region8: #{afno_forward.10} parent=0 // loop_exit
    _

// kernel: afno_forward.15
$region0: #{afno_forward.15}
  #allocation0 [shape = 'u32[]', space=smem, size = 0x4, offset = 0x4, fixed_abs, tag = 'smem constant byte address 0x4 - core index']
  #allocation1 [shape = 'u32[144,128]{1,0:T(1,128)}', space=vmem, size = 0x12000, scoped, tag = 'internal scratch']
  %s0 = inlined_call_operand.vmem [shape: f32[32,64], index: 0, kind: input, shape index: {}]
  %s1 = inlined_call_operand.vmem [shape: f32[1,64], index: 1, kind: input, shape index: {}]
  %s2 = inlined_call_operand.vmem [shape: f32[1,64], index: 2, kind: input, shape index: {}]
  %s3 = inlined_call_operand.vmem [shape: bf16[64,64], index: 3, kind: input, shape index: {}]
  %s4 = inlined_call_operand.vmem [shape: f32[1,64], index: 4, kind: input, shape index: {}]
  %s5 = inlined_call_operand.vmem [shape: bf16[64,64], index: 5, kind: input, shape index: {}]
  %s6 = inlined_call_operand.vmem [shape: f32[1,64], index: 6, kind: input, shape index: {}]
  %s7 = inlined_call_operand.vmem [shape: bf16[64,64], index: 7, kind: input, shape index: {}]
  %s8 = inlined_call_operand.vmem [shape: f32[1,64], index: 8, kind: input, shape index: {}]
  %s9 = inlined_call_operand.vmem [shape: f32[32,64], index: 9, kind: output, shape index: {}]
  %s10 = sld [smem:[#allocation0]]
  $region69: #{afno_forward.15} parent=0
    _
  %s12 = ssub.s32 1, %s10
  %s13 = scalar_select 0, %s12, %s10
  loop: start=0, step=1, limit=6
  $region2: #{afno_forward.15} parent=0 // loop_pre_header
    _
  $region3: #{afno_forward.15} parent=0 // loop_header
    %s15 = sphi 0, %s19
    %p16 = scmp.ge.s32.totalorder %s15, 6
    %s25 = sphi 0, %s27
    %s28 = sphi 0, %s25
    %s29 = sphi 0, %s28
    %s45 = sphi 0, %s29
    %s49 = sphi 0, %s49
    %s51 = sphi 0, %s49
    %s52 = sphi 0, %s51
    %s66 = sphi 0, %s52
    %s70 = sphi 0, %s70
    %s72 = sphi 0, %s70
    %s73 = sphi 0, %s72
    %s87 = sphi 0, %s73
    %s91 = sphi 0, %s91
    %s93 = sphi 0, %s91
    %s94 = sphi 0, %s93
    %s108 = sphi 0, %s94
    %s112 = sphi 0, %s112
    %s114 = sphi 0, %s112
    %s115 = sphi 0, %s114
    %s129 = sphi 0, %s115
    %s133 = sphi 0, %s133
    %s135 = sphi 0, %s133
    %s136 = sphi 0, %s135
    %s150 = sphi 0, %s136
    %s154 = sphi 0, %s154
    %s156 = sphi 0, %s154
    %s157 = sphi 0, %s156
    %s171 = sphi 0, %s157
    %s175 = sphi 0, %s175
    %s177 = sphi 0, %s175
    %s178 = sphi 0, %s177
    %s192 = sphi 0, %s178
    %s196 = sphi 0, %s196
    %s198 = sphi 0, %s196
    %s199 = sphi 0, %s198
    %s213 = sphi 0, %s199
    %s219 = sphi 0, %s221
    %s222 = sphi 0, %s219
    %s223 = sphi 0, %s222
    %s239 = sphi 0, %s223
  $region4: #{afno_forward.15} parent=0 // loop_header_branch
    %18 = sbr.rel (%p16) target = $region8
  $region5: #{afno_forward.15} parent=0 // loop_body
    %s20 = ssub.s32 %s15, 1
    %s21 = ssub.s32 %s15, 2
    %s22 = sadd.s32 %s15, 1
    %s23 = ssub.s32 %s15, %s22
    %p24 = scmp.eq.s32.totalorder %s23, 0
    %s26 = sadd.s32 %s25, 1
    %s27 = scalar_select %p24, %s25, %s26
    %p30 = pneg %p24
    %p31 = scmp.eq.s32.totalorder %s15, 3
    %p32 = por %p30, %p31
    %p33 = scmp.ne.s32.totalorder %s25, %s28
    %p34 = scmp.eq.s32.totalorder %s15, 0
    %p35 = por %p33, %p34
    %p36 = scmp.ne.s32.totalorder %s25, %s28
    %p37 = scmp.eq.s32.totalorder %s20, 3
    %p38 = por %p36, %p37
    %p39 = scmp.ne.s32.totalorder %s28, %s29
    %p40 = scmp.eq.s32.totalorder %s20, 0
    %p41 = por %p39, %p40
    %p42 = scmp.ne.s32.totalorder %s28, %s29
    %p43 = scmp.eq.s32.totalorder %s21, 3
    %p44 = por %p42, %p43
    %p46 = scmp.ne.s32.totalorder %s29, %s45
    %p47 = scmp.eq.s32.totalorder %s21, 0
    %p48 = por %p46, %p47
    %s50 = sadd.s32 %s49, 1
    %p53 = scmp.eq.s32.totalorder %s15, 3
    %p54 = scmp.ne.s32.totalorder %s49, %s51
    %p55 = scmp.eq.s32.totalorder %s15, 0
    %p56 = por %p54, %p55
    %p57 = scmp.ne.s32.totalorder %s49, %s51
    %p58 = scmp.eq.s32.totalorder %s20, 3
    %p59 = por %p57, %p58
    %p60 = scmp.ne.s32.totalorder %s51, %s52
    %p61 = scmp.eq.s32.totalorder %s20, 0
    %p62 = por %p60, %p61
    %p63 = scmp.ne.s32.totalorder %s51, %s52
    %p64 = scmp.eq.s32.totalorder %s21, 3
    %p65 = por %p63, %p64
    %p67 = scmp.ne.s32.totalorder %s52, %s66
    %p68 = scmp.eq.s32.totalorder %s21, 0
    %p69 = por %p67, %p68
    %s71 = sadd.s32 %s70, 1
    %p74 = scmp.eq.s32.totalorder %s15, 3
    %p75 = scmp.ne.s32.totalorder %s70, %s72
    %p76 = scmp.eq.s32.totalorder %s15, 0
    %p77 = por %p75, %p76
    %p78 = scmp.ne.s32.totalorder %s70, %s72
    %p79 = scmp.eq.s32.totalorder %s20, 3
    %p80 = por %p78, %p79
    %p81 = scmp.ne.s32.totalorder %s72, %s73
    %p82 = scmp.eq.s32.totalorder %s20, 0
    %p83 = por %p81, %p82
    %p84 = scmp.ne.s32.totalorder %s72, %s73
    %p85 = scmp.eq.s32.totalorder %s21, 3
    %p86 = por %p84, %p85
    %p88 = scmp.ne.s32.totalorder %s73, %s87
    %p89 = scmp.eq.s32.totalorder %s21, 0
    %p90 = por %p88, %p89
    %s92 = sadd.s32 %s91, 1
    %p95 = scmp.eq.s32.totalorder %s15, 3
    %p96 = scmp.ne.s32.totalorder %s91, %s93
    %p97 = scmp.eq.s32.totalorder %s15, 0
    %p98 = por %p96, %p97
    %p99 = scmp.ne.s32.totalorder %s91, %s93
    %p100 = scmp.eq.s32.totalorder %s20, 3
    %p101 = por %p99, %p100
    %p102 = scmp.ne.s32.totalorder %s93, %s94
    %p103 = scmp.eq.s32.totalorder %s20, 0
    %p104 = por %p102, %p103
    %p105 = scmp.ne.s32.totalorder %s93, %s94
    %p106 = scmp.eq.s32.totalorder %s21, 3
    %p107 = por %p105, %p106
    %p109 = scmp.ne.s32.totalorder %s94, %s108
    %p110 = scmp.eq.s32.totalorder %s21, 0
    %p111 = por %p109, %p110
    %s113 = sadd.s32 %s112, 1
    %p116 = scmp.eq.s32.totalorder %s15, 3
    %p117 = scmp.ne.s32.totalorder %s112, %s114
    %p118 = scmp.eq.s32.totalorder %s15, 0
    %p119 = por %p117, %p118
    %p120 = scmp.ne.s32.totalorder %s112, %s114
    %p121 = scmp.eq.s32.totalorder %s20, 3
    %p122 = por %p120, %p121
    %p123 = scmp.ne.s32.totalorder %s114, %s115
    %p124 = scmp.eq.s32.totalorder %s20, 0
    %p125 = por %p123, %p124
    %p126 = scmp.ne.s32.totalorder %s114, %s115
    %p127 = scmp.eq.s32.totalorder %s21, 3
    %p128 = por %p126, %p127
    %p130 = scmp.ne.s32.totalorder %s115, %s129
    %p131 = scmp.eq.s32.totalorder %s21, 0
    %p132 = por %p130, %p131
    %s134 = sadd.s32 %s133, 1
    %p137 = scmp.eq.s32.totalorder %s15, 3
    %p138 = scmp.ne.s32.totalorder %s133, %s135
    %p139 = scmp.eq.s32.totalorder %s15, 0
    %p140 = por %p138, %p139
    %p141 = scmp.ne.s32.totalorder %s133, %s135
    %p142 = scmp.eq.s32.totalorder %s20, 3
    %p143 = por %p141, %p142
    %p144 = scmp.ne.s32.totalorder %s135, %s136
    %p145 = scmp.eq.s32.totalorder %s20, 0
    %p146 = por %p144, %p145
    %p147 = scmp.ne.s32.totalorder %s135, %s136
    %p148 = scmp.eq.s32.totalorder %s21, 3
    %p149 = por %p147, %p148
    %p151 = scmp.ne.s32.totalorder %s136, %s150
    %p152 = scmp.eq.s32.totalorder %s21, 0
    %p153 = por %p151, %p152
    %s155 = sadd.s32 %s154, 1
    %p158 = scmp.eq.s32.totalorder %s15, 3
    %p159 = scmp.ne.s32.totalorder %s154, %s156
    %p160 = scmp.eq.s32.totalorder %s15, 0
    %p161 = por %p159, %p160
    %p162 = scmp.ne.s32.totalorder %s154, %s156
    %p163 = scmp.eq.s32.totalorder %s20, 3
    %p164 = por %p162, %p163
    %p165 = scmp.ne.s32.totalorder %s156, %s157
    %p166 = scmp.eq.s32.totalorder %s20, 0
    %p167 = por %p165, %p166
    %p168 = scmp.ne.s32.totalorder %s156, %s157
    %p169 = scmp.eq.s32.totalorder %s21, 3
    %p170 = por %p168, %p169
    %p172 = scmp.ne.s32.totalorder %s157, %s171
    %p173 = scmp.eq.s32.totalorder %s21, 0
    %p174 = por %p172, %p173
    %s176 = sadd.s32 %s175, 1
    %p179 = scmp.eq.s32.totalorder %s15, 3
    %p180 = scmp.ne.s32.totalorder %s175, %s177
    %p181 = scmp.eq.s32.totalorder %s15, 0
    %p182 = por %p180, %p181
    %p183 = scmp.ne.s32.totalorder %s175, %s177
    %p184 = scmp.eq.s32.totalorder %s20, 3
    %p185 = por %p183, %p184
    %p186 = scmp.ne.s32.totalorder %s177, %s178
    %p187 = scmp.eq.s32.totalorder %s20, 0
    %p188 = por %p186, %p187
    %p189 = scmp.ne.s32.totalorder %s177, %s178
    %p190 = scmp.eq.s32.totalorder %s21, 3
    %p191 = por %p189, %p190
    %p193 = scmp.ne.s32.totalorder %s178, %s192
    %p194 = scmp.eq.s32.totalorder %s21, 0
    %p195 = por %p193, %p194
    %s197 = sadd.s32 %s196, 1
    %p200 = scmp.eq.s32.totalorder %s15, 3
    %p201 = scmp.ne.s32.totalorder %s196, %s198
    %p202 = scmp.eq.s32.totalorder %s15, 0
    %p203 = por %p201, %p202
    %p204 = scmp.ne.s32.totalorder %s196, %s198
    %p205 = scmp.eq.s32.totalorder %s20, 3
    %p206 = por %p204, %p205
    %p207 = scmp.ne.s32.totalorder %s198, %s199
    %p208 = scmp.eq.s32.totalorder %s20, 0
    %p209 = por %p207, %p208
    %p210 = scmp.ne.s32.totalorder %s198, %s199
    %p211 = scmp.eq.s32.totalorder %s21, 3
    %p212 = por %p210, %p211
    %p214 = scmp.ne.s32.totalorder %s199, %s213
    %p215 = scmp.eq.s32.totalorder %s21, 0
    %p216 = por %p214, %p215
    %s217 = ssub.s32 %s15, %s22
    %p218 = scmp.eq.s32.totalorder %s217, 0
    %s220 = sadd.s32 %s219, 1
    %s221 = scalar_select %p218, %s219, %s220
    %p224 = pneg %p218
    %p225 = scmp.eq.s32.totalorder %s15, 3
    %p226 = por %p224, %p225
    %p227 = scmp.ne.s32.totalorder %s219, %s222
    %p228 = scmp.eq.s32.totalorder %s15, 0
    %p229 = por %p227, %p228
    %p230 = scmp.ne.s32.totalorder %s219, %s222
    %p231 = scmp.eq.s32.totalorder %s20, 3
    %p232 = por %p230, %p231
    %p233 = scmp.ne.s32.totalorder %s222, %s223
    %p234 = scmp.eq.s32.totalorder %s20, 0
    %p235 = por %p233, %p234
    %p236 = scmp.ne.s32.totalorder %s222, %s223
    %p237 = scmp.eq.s32.totalorder %s21, 3
    %p238 = por %p236, %p237
    %p240 = scmp.ne.s32.totalorder %s223, %s239
    %p241 = scmp.eq.s32.totalorder %s21, 0
    %p242 = por %p240, %p241
    %p243 = scmp.le.s32.totalorder 1, %s15
    %p244 = scmp.lt.s32.totalorder %s15, 5
    %p245 = pnand %p243, %p244
    %p246 = pneg %p245
    // Predicated region
    $region9: #{afno_forward.15} parent=5 // pred_check
      _
    $region10: #{afno_forward.15} parent=5 // pred_check_branch
      %248 = sbr.rel (%p245) target = $region12
    $region11: #{afno_forward.15} parent=5 // pred_region
      %s249 = ssub.s32 %s15, 1
      // Predicated region
      $region13: #{afno_forward.15} parent=11 // pred_check
        %p250 = pneg %p62
      $region14: #{afno_forward.15} parent=11 // pred_check_branch
        %252 = sbr.rel (%p250) target = $region16
      $region15: #{afno_forward.15} parent=11 // pred_region
        _
      $region16: #{afno_forward.15} parent=11 // pred_fallthru
        _
      // Predicated region
      $region17: #{afno_forward.15} parent=11 // pred_check
        %p253 = pneg %p83
      $region18: #{afno_forward.15} parent=11 // pred_check_branch
        %255 = sbr.rel (%p253) target = $region20
      $region19: #{afno_forward.15} parent=11 // pred_region
        _
      $region20: #{afno_forward.15} parent=11 // pred_fallthru
        _
      // Predicated region
      $region21: #{afno_forward.15} parent=11 // pred_check
        %p256 = pneg %p104
      $region22: #{afno_forward.15} parent=11 // pred_check_branch
        %258 = sbr.rel (%p256) target = $region24
      $region23: #{afno_forward.15} parent=11 // pred_region
        _
      $region24: #{afno_forward.15} parent=11 // pred_fallthru
        _
      // Predicated region
      $region25: #{afno_forward.15} parent=11 // pred_check
        %p259 = pneg %p125
      $region26: #{afno_forward.15} parent=11 // pred_check_branch
        %261 = sbr.rel (%p259) target = $region28
      $region27: #{afno_forward.15} parent=11 // pred_region
        _
      $region28: #{afno_forward.15} parent=11 // pred_fallthru
        _
      // Predicated region
      $region29: #{afno_forward.15} parent=11 // pred_check
        %p262 = pneg %p146
      $region30: #{afno_forward.15} parent=11 // pred_check_branch
        %264 = sbr.rel (%p262) target = $region32
      $region31: #{afno_forward.15} parent=11 // pred_region
        _
      $region32: #{afno_forward.15} parent=11 // pred_fallthru
        _
      // Predicated region
      $region33: #{afno_forward.15} parent=11 // pred_check
        %p265 = pneg %p167
      $region34: #{afno_forward.15} parent=11 // pred_check_branch
        %267 = sbr.rel (%p265) target = $region36
      $region35: #{afno_forward.15} parent=11 // pred_region
        _
      $region36: #{afno_forward.15} parent=11 // pred_fallthru
        _
      // Predicated region
      $region37: #{afno_forward.15} parent=11 // pred_check
        %p268 = pneg %p188
      $region38: #{afno_forward.15} parent=11 // pred_check_branch
        %270 = sbr.rel (%p268) target = $region40
      $region39: #{afno_forward.15} parent=11 // pred_region
        _
      $region40: #{afno_forward.15} parent=11 // pred_fallthru
        _
      // Predicated region
      $region41: #{afno_forward.15} parent=11 // pred_check
        %p271 = pneg %p209
      $region42: #{afno_forward.15} parent=11 // pred_check_branch
        %273 = sbr.rel (%p271) target = $region44
      $region43: #{afno_forward.15} parent=11 // pred_region
        _
      $region44: #{afno_forward.15} parent=11 // pred_fallthru
        _
    $region12: #{afno_forward.15} parent=5 // pred_fallthru
      _
    %p274 = scmp.lt.s32.totalorder %s15, 4
    // Predicated region
    $region45: #{afno_forward.15} parent=5 // pred_check
      %p275 = pneg %p274
    $region46: #{afno_forward.15} parent=5 // pred_check_branch
      %277 = sbr.rel (%p275) target = $region48
    $region47: #{afno_forward.15} parent=5 // pred_region
      // Predicated region
      $region49: #{afno_forward.15} parent=47 // pred_check
        %p278 = pneg %p35
      $region50: #{afno_forward.15} parent=47 // pred_check_branch
        %280 = sbr.rel (%p278) target = $region52
      $region51: #{afno_forward.15} parent=47 // pred_region
        %p281 = scmp.lt.s32.totalorder %s15, 3
        %s282 = scalar_select %p281, %s15, 3
        %s283 = smul.addr %s282, 8
        %s284 = scalar_lea.vmem %s0, %s283
      $region52: #{afno_forward.15} parent=47 // pred_fallthru
        _
    $region48: #{afno_forward.15} parent=5 // pred_fallthru
      _
    %p285 = scmp.le.s32.totalorder 1, %s15
    %p286 = scmp.lt.s32.totalorder %s15, 5
    %p287 = pnand %p285, %p286
    %p288 = pneg %p287
    // Predicated region
    $region53: #{afno_forward.15} parent=5 // pred_check
      _
    $region54: #{afno_forward.15} parent=5 // pred_check_branch
      %290 = sbr.rel (%p287) target = $region56
    $region55: #{afno_forward.15} parent=5 // pred_region
      %s291 = ssub.s32 %s15, 1
      %p292 = scmp.lt.s32.totalorder %s20, 3
      %s293 = scalar_select %p292, %s20, 3
      %s294 = smul.addr %s293, 8
      %s295 = scalar_lea.vmem %s0, %s294
      %p296 = pneg %p41
      %p297 = pneg %p38
      %p298 = pneg %p62
      %p299 = pneg %p59
      %p300 = pneg %p83
      %p301 = pneg %p80
      %p302 = pneg %p104
      %p303 = pneg %p101
      %p304 = pneg %p125
      %p305 = pneg %p122
      %p306 = pneg %p146
      %p307 = pneg %p143
      %p308 = pneg %p167
      %p309 = pneg %p164
      %p310 = pneg %p188
      %p311 = pneg %p185
      %p312 = pneg %p209
      %p313 = pneg %p206
      %p314 = pneg %p235
      %p315 = pneg %p232
      %p316 = scmp.lt.s32.totalorder %s20, 3
      %s317 = scalar_select %p316, %s20, 3
      %s318 = smul.addr %s317, 8
      %s319 = scalar_lea.vmem %s9, %s318
      %p320 = scmp.lt.s32.totalorder %s20, 3
      %s321 = scalar_select %p320, %s20, 3
      %s322 = smul.addr %s321, 8
      %s323 = scalar_lea.vmem %s0, %s322
      %p324 = scmp.lt.s32.totalorder %s20, 3
      %s325 = scalar_select %p324, %s20, 3
      %s326 = smul.addr %s325, 8
      %s327 = scalar_lea.vmem %s9, %s326
      %v329 = vld [vmem:[%s323] sm:$0xff]
      %vm330 = vcmask 523264
      %v331 = vsel %vm330, %v329, 0.0
      %332 = vadd.xlane.f32.xlu0 %v331
      %v333 = vpop.xlane.xlu0 %332
      %v334 = vrcp.pop 64.0
      %v335 = vmul.f32 %v333, %v334
      %v336 = vsub.f32 %v329, %v335
      %v337 = vmul.f32 %v336, %v336
      %v338 = vsel %vm330, %v337, 0.0
      %339 = vadd.xlane.f32.xlu0 %v338
      %v340 = vpop.xlane.xlu0 %339
      %v341 = vmul.f32 %v340, %v334
      %v342 = vadd.f32 %v341, 1e-06
      %v343 = vrsqrt.pop %v342
      %v344 = vmul.f32 %v336, %v343
      %v345 = vld [vmem:[%s1] sm:$0x1]
      %v347 = vlaneseq
      %v348 = vshrl.u32 %v347, 7
      %v349 = vsub.s32 0, %v348
      %v350 = vrot.slane %v345, %v349
      %v352 = vmul.f32 %v344, %v350
      %v353 = vld [vmem:[%s2] sm:$0x1]
      %v355 = vlaneseq
      %v356 = vshrl.u32 %v355, 7
      %v357 = vsub.s32 0, %v356
      %v358 = vrot.slane %v353, %v357
      %v360 = vadd.f32 %v352, %v358
      %v361 = vpack.c.bf16 %v360, %v360
      %v362 = vld [vmem:[%s3] sm:$0xf]
      %v363 = vld [vmem:[%s3 + $0x4] sm:$0xf]
      %v364 = vld [vmem:[%s3 + $0x8] sm:$0xf]
      %v365 = vld [vmem:[%s3 + $0xc] sm:$0xf]
      %v366 = vld [vmem:[%s3 + $0x10] sm:$0xf]
      %v367 = vld [vmem:[%s3 + $0x14] sm:$0xf]
      %v368 = vld [vmem:[%s3 + $0x18] sm:$0xf]
      %v369 = vld [vmem:[%s3 + $0x1c] sm:$0xf]
      %v370 = vld [vmem:[%s4] sm:$0x1]
      %v372 = vlaneseq
      %v373 = vshrl.u32 %v372, 7
      %v374 = vsub.s32 0, %v373
      %v375 = vrot.slane %v370, %v374
      %v385 = vunpack.c.l.b16 %v362
      %v386 = vunpack.c.l.b16 %v363
      %v387 = vunpack.c.l.b16 %v364
      %v388 = vunpack.c.l.b16 %v365
      %v389 = vunpack.c.l.b16 %v366
      %v390 = vunpack.c.l.b16 %v367
      %v391 = vunpack.c.l.b16 %v368
      %v392 = vunpack.c.l.b16 %v369
      %v393 = vpack.c.b16 %v386, %v385
      %v394 = vpack.c.b16 %v388, %v387
      %v395 = vpack.c.b16 %v390, %v389
      %v396 = vpack.c.b16 %v392, %v391
      %v402 = vsel %vm330, %v361, 0
      %404 = vmatprep.subr.bf16.mxu0 0
      %405 = vmatpush1.bf16.msra.mxu0 %v393
      %406 = vmatprep.subr.bf16.mxu0 0
      %407 = vmatpush1.bf16.msra.mxu0 %v394
      %408 = vmatprep.subr.bf16.mxu0 0
      %409 = vmatpush1.bf16.msra.mxu0 %v395
      %410 = vmatprep.subr.bf16.mxu0 0
      %411 = vmatpush1.bf16.msra.mxu0 %v396
      %412 = vmatprep.subr.bf16.mxu0 0
      %413 = vmatpush1.bf16.msra.mxu0 0
      %414 = vmatprep.subr.bf16.mxu0 0
      %415 = vmatpush1.bf16.msra.mxu0 0
      %416 = vmatprep.subr.bf16.mxu0 0
      %417 = vmatpush1.bf16.msra.mxu0 0
      %418 = vmatprep.subr.bf16.mxu0 0
      %419 = vmatpush1.bf16.msra.mxu0 0
      %420 = vmatprep.subr.bf16.mxu0 0
      %421 = vmatpush1.bf16.msra.mxu0 0
      %422 = vmatprep.subr.bf16.mxu0 0
      %423 = vmatpush1.bf16.msra.mxu0 0
      %424 = vmatprep.subr.bf16.mxu0 0
      %425 = vmatpush1.bf16.msra.mxu0 0
      %426 = vmatprep.subr.bf16.mxu0 0
      %427 = vmatpush1.bf16.msra.mxu0 0
      %428 = vmatprep.subr.bf16.mxu0 0
      %429 = vmatpush1.bf16.msra.mxu0 0
      %430 = vmatprep.subr.bf16.mxu0 0
      %431 = vmatpush1.bf16.msra.mxu0 0
      %432 = vmatprep.subr.bf16.mxu0 0
      %433 = vmatpush1.bf16.msra.mxu0 0
      %434 = vmatprep.subr.bf16.mxu0 0
      %435 = vmatpush1.bf16.msra.mxu0 0
      %436 = vmatprep.mubr.bf16.mxu0 0
      %437 = vmatmul.mubr.bf16.gmra.mrb[0].mxu0 %v402
      %v438 = vpop.f32.mrb[0].mxu0
      %v439 = vadd.f32 %v375, %v438
      %v440 = vpop.f32.mrb[0].mxu0
      %v441 = vpop.f32.mrb[0].mxu0
      %v442 = vpop.f32.mrb[0].mxu0
      %443 = vdwg.mxu0
      %v444 = vtanh.pop %v439
      %v445 = vpack.c.bf16 %v444, %v444
      %v446 = vld [vmem:[%s5] sm:$0xf]
      %v447 = vld [vmem:[%s5 + $0x4] sm:$0xf]
      %v448 = vld [vmem:[%s5 + $0x8] sm:$0xf]
      %v449 = vld [vmem:[%s5 + $0xc] sm:$0xf]
      %v450 = vld [vmem:[%s5 + $0x10] sm:$0xf]
      %v451 = vld [vmem:[%s5 + $0x14] sm:$0xf]
      %v452 = vld [vmem:[%s5 + $0x18] sm:$0xf]
      %v453 = vld [vmem:[%s5 + $0x1c] sm:$0xf]
      %v454 = vld [vmem:[%s6] sm:$0x1]
      %v456 = vlaneseq
      %v457 = vshrl.u32 %v456, 7
      %v458 = vsub.s32 0, %v457
      %v459 = vrot.slane %v454, %v458
      %v469 = vunpack.c.l.b16 %v446
      %v470 = vunpack.c.l.b16 %v447
      %v471 = vunpack.c.l.b16 %v448
      %v472 = vunpack.c.l.b16 %v449
      %v473 = vunpack.c.l.b16 %v450
      %v474 = vunpack.c.l.b16 %v451
      %v475 = vunpack.c.l.b16 %v452
      %v476 = vunpack.c.l.b16 %v453
      %v477 = vpack.c.b16 %v470, %v469
      %v478 = vpack.c.b16 %v472, %v471
      %v479 = vpack.c.b16 %v474, %v473
      %v480 = vpack.c.b16 %v476, %v475
      %v486 = vsel %vm330, %v445, 0
      %488 = vmatprep.subr.bf16.mxu0 0
      %489 = vmatpush1.bf16.msra.mxu0 %v477
      %490 = vmatprep.subr.bf16.mxu0 0
      %491 = vmatpush1.bf16.msra.mxu0 %v478
      %492 = vmatprep.subr.bf16.mxu0 0
      %493 = vmatpush1.bf16.msra.mxu0 %v479
      %494 = vmatprep.subr.bf16.mxu0 0
      %495 = vmatpush1.bf16.msra.mxu0 %v480
      %496 = vmatprep.subr.bf16.mxu0 0
      %497 = vmatpush1.bf16.msra.mxu0 0
      %498 = vmatprep.subr.bf16.mxu0 0
      %499 = vmatpush1.bf16.msra.mxu0 0
      %500 = vmatprep.subr.bf16.mxu0 0
      %501 = vmatpush1.bf16.msra.mxu0 0
      %502 = vmatprep.subr.bf16.mxu0 0
      %503 = vmatpush1.bf16.msra.mxu0 0
      %504 = vmatprep.subr.bf16.mxu0 0
      %505 = vmatpush1.bf16.msra.mxu0 0
      %506 = vmatprep.subr.bf16.mxu0 0
      %507 = vmatpush1.bf16.msra.mxu0 0
      %508 = vmatprep.subr.bf16.mxu0 0
      %509 = vmatpush1.bf16.msra.mxu0 0
      %510 = vmatprep.subr.bf16.mxu0 0
      %511 = vmatpush1.bf16.msra.mxu0 0
      %512 = vmatprep.subr.bf16.mxu0 0
      %513 = vmatpush1.bf16.msra.mxu0 0
      %514 = vmatprep.subr.bf16.mxu0 0
      %515 = vmatpush1.bf16.msra.mxu0 0
      %516 = vmatprep.subr.bf16.mxu0 0
      %517 = vmatpush1.bf16.msra.mxu0 0
      %518 = vmatprep.subr.bf16.mxu0 0
      %519 = vmatpush1.bf16.msra.mxu0 0
      %520 = vmatprep.mubr.bf16.mxu0 0
      %521 = vmatmul.mubr.bf16.gmra.mrb[0].mxu0 %v486
      %v522 = vpop.f32.mrb[0].mxu0
      %v523 = vadd.f32 %v459, %v522
      %v524 = vpop.f32.mrb[0].mxu0
      %v525 = vpop.f32.mrb[0].mxu0
      %v526 = vpop.f32.mrb[0].mxu0
      %527 = vdwg.mxu0
      %v528 = vtanh.pop %v523
      %v529 = vpack.c.bf16 %v528, %v528
      %v530 = vld [vmem:[%s7] sm:$0xf]
      %v531 = vld [vmem:[%s7 + $0x4] sm:$0xf]
      %v532 = vld [vmem:[%s7 + $0x8] sm:$0xf]
      %v533 = vld [vmem:[%s7 + $0xc] sm:$0xf]
      %v534 = vld [vmem:[%s7 + $0x10] sm:$0xf]
      %v535 = vld [vmem:[%s7 + $0x14] sm:$0xf]
      %v536 = vld [vmem:[%s7 + $0x18] sm:$0xf]
      %v537 = vld [vmem:[%s7 + $0x1c] sm:$0xf]
      %v538 = vld [vmem:[%s8] sm:$0x1]
      %v540 = vlaneseq
      %v541 = vshrl.u32 %v540, 7
      %v542 = vsub.s32 0, %v541
      %v543 = vrot.slane %v538, %v542
      %v553 = vunpack.c.l.b16 %v530
      %v554 = vunpack.c.l.b16 %v531
      %v555 = vunpack.c.l.b16 %v532
      %v556 = vunpack.c.l.b16 %v533
      %v557 = vunpack.c.l.b16 %v534
      %v558 = vunpack.c.l.b16 %v535
      %v559 = vunpack.c.l.b16 %v536
      %v560 = vunpack.c.l.b16 %v537
      %v561 = vpack.c.b16 %v554, %v553
      %v562 = vpack.c.b16 %v556, %v555
      %v563 = vpack.c.b16 %v558, %v557
      %v564 = vpack.c.b16 %v560, %v559
      %v570 = vsel %vm330, %v529, 0
      %572 = vmatprep.subr.bf16.mxu0 0
      %573 = vmatpush1.bf16.msra.mxu0 %v561
      %574 = vmatprep.subr.bf16.mxu0 0
      %575 = vmatpush1.bf16.msra.mxu0 %v562
      %576 = vmatprep.subr.bf16.mxu0 0
      %577 = vmatpush1.bf16.msra.mxu0 %v563
      %578 = vmatprep.subr.bf16.mxu0 0
      %579 = vmatpush1.bf16.msra.mxu0 %v564
      %580 = vmatprep.subr.bf16.mxu0 0
      %581 = vmatpush1.bf16.msra.mxu0 0
      %582 = vmatprep.subr.bf16.mxu0 0
      %583 = vmatpush1.bf16.msra.mxu0 0
      %584 = vmatprep.subr.bf16.mxu0 0
      %585 = vmatpush1.bf16.msra.mxu0 0
      %586 = vmatprep.subr.bf16.mxu0 0
      %587 = vmatpush1.bf16.msra.mxu0 0
      %588 = vmatprep.subr.bf16.mxu0 0
      %589 = vmatpush1.bf16.msra.mxu0 0
      %590 = vmatprep.subr.bf16.mxu0 0
      %591 = vmatpush1.bf16.msra.mxu0 0
      %592 = vmatprep.subr.bf16.mxu0 0
      %593 = vmatpush1.bf16.msra.mxu0 0
      %594 = vmatprep.subr.bf16.mxu0 0
      %595 = vmatpush1.bf16.msra.mxu0 0
      %596 = vmatprep.subr.bf16.mxu0 0
      %597 = vmatpush1.bf16.msra.mxu0 0
      %598 = vmatprep.subr.bf16.mxu0 0
      %599 = vmatpush1.bf16.msra.mxu0 0
      %600 = vmatprep.subr.bf16.mxu0 0
      %601 = vmatpush1.bf16.msra.mxu0 0
      %602 = vmatprep.subr.bf16.mxu0 0
      %603 = vmatpush1.bf16.msra.mxu0 0
      %604 = vmatprep.mubr.bf16.mxu0 0
      %605 = vmatmul.mubr.bf16.gmra.mrb[0].mxu0 %v570
      %v606 = vpop.f32.mrb[0].mxu0
      %v607 = vadd.f32 %v543, %v606
      %v608 = vpop.f32.mrb[0].mxu0
      %v609 = vpop.f32.mrb[0].mxu0
      %v610 = vpop.f32.mrb[0].mxu0
      %611 = vdwg.mxu0
      %612 = vst.msk [vmem:[%s327] sm:$0xff] %vm330, %v607
      %p613 = scmp.lt.s32.totalorder %s20, 3
      %s614 = scalar_select %p613, %s20, 3
      %s615 = smul.addr %s614, 8
      %s616 = scalar_lea.vmem %s9, %s615
      // Predicated region
      $region57: #{afno_forward.15} parent=55 // pred_check
        %p617 = pneg %p232
      $region58: #{afno_forward.15} parent=55 // pred_check_branch
        %619 = sbr.rel (%p617) target = $region60
      $region59: #{afno_forward.15} parent=55 // pred_region
        _
      $region60: #{afno_forward.15} parent=55 // pred_fallthru
        _
    $region56: #{afno_forward.15} parent=5 // pred_fallthru
      _
    %p620 = scmp.le.s32.totalorder 2, %s15
    // Predicated region
    $region61: #{afno_forward.15} parent=5 // pred_check
      %p621 = pneg %p620
    $region62: #{afno_forward.15} parent=5 // pred_check_branch
      %623 = sbr.rel (%p621) target = $region64
    $region63: #{afno_forward.15} parent=5 // pred_region
      %s624 = ssub.s32 %s15, 2
      // Predicated region
      $region65: #{afno_forward.15} parent=63 // pred_check
        %p625 = pneg %p238
      $region66: #{afno_forward.15} parent=63 // pred_check_branch
        %627 = sbr.rel (%p625) target = $region68
      $region67: #{afno_forward.15} parent=63 // pred_region
        %p628 = scmp.lt.s32.totalorder %s21, 3
        %s629 = scalar_select %p628, %s21, 3
        %s630 = smul.addr %s629, 8
        %s631 = scalar_lea.vmem %s9, %s630
      $region68: #{afno_forward.15} parent=63 // pred_fallthru
        _
    $region64: #{afno_forward.15} parent=5 // pred_fallthru
      _
  $region6: #{afno_forward.15} parent=0 // loop_footer
    %s19 = sadd.s32 1, %s15
  $region7: #{afno_forward.15} parent=0 // loop_footer_branch
    %14 = sbr.rel target = $region3
  $region8: #{afno_forward.15} parent=0 // loop_exit
    _

// kernel: afno_forward.11
$region0: #{afno_forward.11}
  #allocation0 [shape = 'u32[]', space=smem, size = 0x4, offset = 0x4, fixed_abs, tag = 'smem constant byte address 0x4 - core index']
  #allocation1 [shape = 'u32[144,128]{1,0:T(1,128)}', space=vmem, size = 0x12000, scoped, tag = 'internal scratch']
  %s0 = inlined_call_operand.vmem [shape: f32[32,64], index: 0, kind: input, shape index: {}]
  %s1 = inlined_call_operand.vmem [shape: f32[32,64], index: 1, kind: input, shape index: {}]
  %s2 = inlined_call_operand.vmem [shape: f32[1,64], index: 2, kind: input, shape index: {}]
  %s3 = inlined_call_operand.vmem [shape: f32[1,64], index: 3, kind: input, shape index: {}]
  %s4 = inlined_call_operand.vmem [shape: bf16[64,256], index: 4, kind: input, shape index: {}]
  %s5 = inlined_call_operand.vmem [shape: f32[1,256], index: 5, kind: input, shape index: {}]
  %s6 = inlined_call_operand.vmem [shape: bf16[256,64], index: 6, kind: input, shape index: {}]
  %s7 = inlined_call_operand.vmem [shape: f32[1,64], index: 7, kind: input, shape index: {}]
  %s8 = inlined_call_operand.vmem [shape: f32[32,64], index: 8, kind: output, shape index: {}]
  %s9 = sld [smem:[#allocation0]]
  $region65: #{afno_forward.11} parent=0
    _
  %s11 = ssub.s32 1, %s9
  %s12 = scalar_select 0, %s11, %s9
  loop: start=0, step=1, limit=6
  $region2: #{afno_forward.11} parent=0 // loop_pre_header
    _
  $region3: #{afno_forward.11} parent=0 // loop_header
    %s14 = sphi 0, %s18
    %p15 = scmp.ge.s32.totalorder %s14, 6
    %s24 = sphi 0, %s26
    %s27 = sphi 0, %s24
    %s28 = sphi 0, %s27
    %s44 = sphi 0, %s28
    %s50 = sphi 0, %s52
    %s53 = sphi 0, %s50
    %s54 = sphi 0, %s53
    %s70 = sphi 0, %s54
    %s74 = sphi 0, %s74
    %s76 = sphi 0, %s74
    %s77 = sphi 0, %s76
    %s91 = sphi 0, %s77
    %s95 = sphi 0, %s95
    %s97 = sphi 0, %s95
    %s98 = sphi 0, %s97
    %s112 = sphi 0, %s98
    %s116 = sphi 0, %s116
    %s118 = sphi 0, %s116
    %s119 = sphi 0, %s118
    %s133 = sphi 0, %s119
    %s137 = sphi 0, %s137
    %s139 = sphi 0, %s137
    %s140 = sphi 0, %s139
    %s154 = sphi 0, %s140
    %s158 = sphi 0, %s158
    %s160 = sphi 0, %s158
    %s161 = sphi 0, %s160
    %s175 = sphi 0, %s161
    %s179 = sphi 0, %s179
    %s181 = sphi 0, %s179
    %s182 = sphi 0, %s181
    %s196 = sphi 0, %s182
    %s202 = sphi 0, %s204
    %s205 = sphi 0, %s202
    %s206 = sphi 0, %s205
    %s222 = sphi 0, %s206
  $region4: #{afno_forward.11} parent=0 // loop_header_branch
    %17 = sbr.rel (%p15) target = $region8
  $region5: #{afno_forward.11} parent=0 // loop_body
    %s19 = ssub.s32 %s14, 1
    %s20 = ssub.s32 %s14, 2
    %s21 = sadd.s32 %s14, 1
    %s22 = ssub.s32 %s14, %s21
    %p23 = scmp.eq.s32.totalorder %s22, 0
    %s25 = sadd.s32 %s24, 1
    %s26 = scalar_select %p23, %s24, %s25
    %p29 = pneg %p23
    %p30 = scmp.eq.s32.totalorder %s14, 3
    %p31 = por %p29, %p30
    %p32 = scmp.ne.s32.totalorder %s24, %s27
    %p33 = scmp.eq.s32.totalorder %s14, 0
    %p34 = por %p32, %p33
    %p35 = scmp.ne.s32.totalorder %s24, %s27
    %p36 = scmp.eq.s32.totalorder %s19, 3
    %p37 = por %p35, %p36
    %p38 = scmp.ne.s32.totalorder %s27, %s28
    %p39 = scmp.eq.s32.totalorder %s19, 0
    %p40 = por %p38, %p39
    %p41 = scmp.ne.s32.totalorder %s27, %s28
    %p42 = scmp.eq.s32.totalorder %s20, 3
    %p43 = por %p41, %p42
    %p45 = scmp.ne.s32.totalorder %s28, %s44
    %p46 = scmp.eq.s32.totalorder %s20, 0
    %p47 = por %p45, %p46
    %s48 = ssub.s32 %s14, %s21
    %p49 = scmp.eq.s32.totalorder %s48, 0
    %s51 = sadd.s32 %s50, 1
    %s52 = scalar_select %p49, %s50, %s51
    %p55 = pneg %p49
    %p56 = scmp.eq.s32.totalorder %s14, 3
    %p57 = por %p55, %p56
    %p58 = scmp.ne.s32.totalorder %s50, %s53
    %p59 = scmp.eq.s32.totalorder %s14, 0
    %p60 = por %p58, %p59
    %p61 = scmp.ne.s32.totalorder %s50, %s53
    %p62 = scmp.eq.s32.totalorder %s19, 3
    %p63 = por %p61, %p62
    %p64 = scmp.ne.s32.totalorder %s53, %s54
    %p65 = scmp.eq.s32.totalorder %s19, 0
    %p66 = por %p64, %p65
    %p67 = scmp.ne.s32.totalorder %s53, %s54
    %p68 = scmp.eq.s32.totalorder %s20, 3
    %p69 = por %p67, %p68
    %p71 = scmp.ne.s32.totalorder %s54, %s70
    %p72 = scmp.eq.s32.totalorder %s20, 0
    %p73 = por %p71, %p72
    %s75 = sadd.s32 %s74, 1
    %p78 = scmp.eq.s32.totalorder %s14, 3
    %p79 = scmp.ne.s32.totalorder %s74, %s76
    %p80 = scmp.eq.s32.totalorder %s14, 0
    %p81 = por %p79, %p80
    %p82 = scmp.ne.s32.totalorder %s74, %s76
    %p83 = scmp.eq.s32.totalorder %s19, 3
    %p84 = por %p82, %p83
    %p85 = scmp.ne.s32.totalorder %s76, %s77
    %p86 = scmp.eq.s32.totalorder %s19, 0
    %p87 = por %p85, %p86
    %p88 = scmp.ne.s32.totalorder %s76, %s77
    %p89 = scmp.eq.s32.totalorder %s20, 3
    %p90 = por %p88, %p89
    %p92 = scmp.ne.s32.totalorder %s77, %s91
    %p93 = scmp.eq.s32.totalorder %s20, 0
    %p94 = por %p92, %p93
    %s96 = sadd.s32 %s95, 1
    %p99 = scmp.eq.s32.totalorder %s14, 3
    %p100 = scmp.ne.s32.totalorder %s95, %s97
    %p101 = scmp.eq.s32.totalorder %s14, 0
    %p102 = por %p100, %p101
    %p103 = scmp.ne.s32.totalorder %s95, %s97
    %p104 = scmp.eq.s32.totalorder %s19, 3
    %p105 = por %p103, %p104
    %p106 = scmp.ne.s32.totalorder %s97, %s98
    %p107 = scmp.eq.s32.totalorder %s19, 0
    %p108 = por %p106, %p107
    %p109 = scmp.ne.s32.totalorder %s97, %s98
    %p110 = scmp.eq.s32.totalorder %s20, 3
    %p111 = por %p109, %p110
    %p113 = scmp.ne.s32.totalorder %s98, %s112
    %p114 = scmp.eq.s32.totalorder %s20, 0
    %p115 = por %p113, %p114
    %s117 = sadd.s32 %s116, 1
    %p120 = scmp.eq.s32.totalorder %s14, 3
    %p121 = scmp.ne.s32.totalorder %s116, %s118
    %p122 = scmp.eq.s32.totalorder %s14, 0
    %p123 = por %p121, %p122
    %p124 = scmp.ne.s32.totalorder %s116, %s118
    %p125 = scmp.eq.s32.totalorder %s19, 3
    %p126 = por %p124, %p125
    %p127 = scmp.ne.s32.totalorder %s118, %s119
    %p128 = scmp.eq.s32.totalorder %s19, 0
    %p129 = por %p127, %p128
    %p130 = scmp.ne.s32.totalorder %s118, %s119
    %p131 = scmp.eq.s32.totalorder %s20, 3
    %p132 = por %p130, %p131
    %p134 = scmp.ne.s32.totalorder %s119, %s133
    %p135 = scmp.eq.s32.totalorder %s20, 0
    %p136 = por %p134, %p135
    %s138 = sadd.s32 %s137, 1
    %p141 = scmp.eq.s32.totalorder %s14, 3
    %p142 = scmp.ne.s32.totalorder %s137, %s139
    %p143 = scmp.eq.s32.totalorder %s14, 0
    %p144 = por %p142, %p143
    %p145 = scmp.ne.s32.totalorder %s137, %s139
    %p146 = scmp.eq.s32.totalorder %s19, 3
    %p147 = por %p145, %p146
    %p148 = scmp.ne.s32.totalorder %s139, %s140
    %p149 = scmp.eq.s32.totalorder %s19, 0
    %p150 = por %p148, %p149
    %p151 = scmp.ne.s32.totalorder %s139, %s140
    %p152 = scmp.eq.s32.totalorder %s20, 3
    %p153 = por %p151, %p152
    %p155 = scmp.ne.s32.totalorder %s140, %s154
    %p156 = scmp.eq.s32.totalorder %s20, 0
    %p157 = por %p155, %p156
    %s159 = sadd.s32 %s158, 1
    %p162 = scmp.eq.s32.totalorder %s14, 3
    %p163 = scmp.ne.s32.totalorder %s158, %s160
    %p164 = scmp.eq.s32.totalorder %s14, 0
    %p165 = por %p163, %p164
    %p166 = scmp.ne.s32.totalorder %s158, %s160
    %p167 = scmp.eq.s32.totalorder %s19, 3
    %p168 = por %p166, %p167
    %p169 = scmp.ne.s32.totalorder %s160, %s161
    %p170 = scmp.eq.s32.totalorder %s19, 0
    %p171 = por %p169, %p170
    %p172 = scmp.ne.s32.totalorder %s160, %s161
    %p173 = scmp.eq.s32.totalorder %s20, 3
    %p174 = por %p172, %p173
    %p176 = scmp.ne.s32.totalorder %s161, %s175
    %p177 = scmp.eq.s32.totalorder %s20, 0
    %p178 = por %p176, %p177
    %s180 = sadd.s32 %s179, 1
    %p183 = scmp.eq.s32.totalorder %s14, 3
    %p184 = scmp.ne.s32.totalorder %s179, %s181
    %p185 = scmp.eq.s32.totalorder %s14, 0
    %p186 = por %p184, %p185
    %p187 = scmp.ne.s32.totalorder %s179, %s181
    %p188 = scmp.eq.s32.totalorder %s19, 3
    %p189 = por %p187, %p188
    %p190 = scmp.ne.s32.totalorder %s181, %s182
    %p191 = scmp.eq.s32.totalorder %s19, 0
    %p192 = por %p190, %p191
    %p193 = scmp.ne.s32.totalorder %s181, %s182
    %p194 = scmp.eq.s32.totalorder %s20, 3
    %p195 = por %p193, %p194
    %p197 = scmp.ne.s32.totalorder %s182, %s196
    %p198 = scmp.eq.s32.totalorder %s20, 0
    %p199 = por %p197, %p198
    %s200 = ssub.s32 %s14, %s21
    %p201 = scmp.eq.s32.totalorder %s200, 0
    %s203 = sadd.s32 %s202, 1
    %s204 = scalar_select %p201, %s202, %s203
    %p207 = pneg %p201
    %p208 = scmp.eq.s32.totalorder %s14, 3
    %p209 = por %p207, %p208
    %p210 = scmp.ne.s32.totalorder %s202, %s205
    %p211 = scmp.eq.s32.totalorder %s14, 0
    %p212 = por %p210, %p211
    %p213 = scmp.ne.s32.totalorder %s202, %s205
    %p214 = scmp.eq.s32.totalorder %s19, 3
    %p215 = por %p213, %p214
    %p216 = scmp.ne.s32.totalorder %s205, %s206
    %p217 = scmp.eq.s32.totalorder %s19, 0
    %p218 = por %p216, %p217
    %p219 = scmp.ne.s32.totalorder %s205, %s206
    %p220 = scmp.eq.s32.totalorder %s20, 3
    %p221 = por %p219, %p220
    %p223 = scmp.ne.s32.totalorder %s206, %s222
    %p224 = scmp.eq.s32.totalorder %s20, 0
    %p225 = por %p223, %p224
    %p226 = scmp.le.s32.totalorder 1, %s14
    %p227 = scmp.lt.s32.totalorder %s14, 5
    %p228 = pnand %p226, %p227
    %p229 = pneg %p228
    // Predicated region
    $region9: #{afno_forward.11} parent=5 // pred_check
      _
    $region10: #{afno_forward.11} parent=5 // pred_check_branch
      %231 = sbr.rel (%p228) target = $region12
    $region11: #{afno_forward.11} parent=5 // pred_region
      %s232 = ssub.s32 %s14, 1
      // Predicated region
      $region13: #{afno_forward.11} parent=11 // pred_check
        %p233 = pneg %p87
      $region14: #{afno_forward.11} parent=11 // pred_check_branch
        %235 = sbr.rel (%p233) target = $region16
      $region15: #{afno_forward.11} parent=11 // pred_region
        _
      $region16: #{afno_forward.11} parent=11 // pred_fallthru
        _
      // Predicated region
      $region17: #{afno_forward.11} parent=11 // pred_check
        %p236 = pneg %p108
      $region18: #{afno_forward.11} parent=11 // pred_check_branch
        %238 = sbr.rel (%p236) target = $region20
      $region19: #{afno_forward.11} parent=11 // pred_region
        _
      $region20: #{afno_forward.11} parent=11 // pred_fallthru
        _
      // Predicated region
      $region21: #{afno_forward.11} parent=11 // pred_check
        %p239 = pneg %p129
      $region22: #{afno_forward.11} parent=11 // pred_check_branch
        %241 = sbr.rel (%p239) target = $region24
      $region23: #{afno_forward.11} parent=11 // pred_region
        _
      $region24: #{afno_forward.11} parent=11 // pred_fallthru
        _
      // Predicated region
      $region25: #{afno_forward.11} parent=11 // pred_check
        %p242 = pneg %p150
      $region26: #{afno_forward.11} parent=11 // pred_check_branch
        %244 = sbr.rel (%p242) target = $region28
      $region27: #{afno_forward.11} parent=11 // pred_region
        _
      $region28: #{afno_forward.11} parent=11 // pred_fallthru
        _
      // Predicated region
      $region29: #{afno_forward.11} parent=11 // pred_check
        %p245 = pneg %p171
      $region30: #{afno_forward.11} parent=11 // pred_check_branch
        %247 = sbr.rel (%p245) target = $region32
      $region31: #{afno_forward.11} parent=11 // pred_region
        _
      $region32: #{afno_forward.11} parent=11 // pred_fallthru
        _
      // Predicated region
      $region33: #{afno_forward.11} parent=11 // pred_check
        %p248 = pneg %p192
      $region34: #{afno_forward.11} parent=11 // pred_check_branch
        %250 = sbr.rel (%p248) target = $region36
      $region35: #{afno_forward.11} parent=11 // pred_region
        _
      $region36: #{afno_forward.11} parent=11 // pred_fallthru
        _
    $region12: #{afno_forward.11} parent=5 // pred_fallthru
      _
    %p251 = scmp.lt.s32.totalorder %s14, 4
    // Predicated region
    $region37: #{afno_forward.11} parent=5 // pred_check
      %p252 = pneg %p251
    $region38: #{afno_forward.11} parent=5 // pred_check_branch
      %254 = sbr.rel (%p252) target = $region40
    $region39: #{afno_forward.11} parent=5 // pred_region
      // Predicated region
      $region41: #{afno_forward.11} parent=39 // pred_check
        %p255 = pneg %p34
      $region42: #{afno_forward.11} parent=39 // pred_check_branch
        %257 = sbr.rel (%p255) target = $region44
      $region43: #{afno_forward.11} parent=39 // pred_region
        %p258 = scmp.lt.s32.totalorder %s14, 3
        %s259 = scalar_select %p258, %s14, 3
        %s260 = smul.addr %s259, 8
        %s261 = scalar_lea.vmem %s0, %s260
      $region44: #{afno_forward.11} parent=39 // pred_fallthru
        _
      // Predicated region
      $region45: #{afno_forward.11} parent=39 // pred_check
        %p262 = pneg %p60
      $region46: #{afno_forward.11} parent=39 // pred_check_branch
        %264 = sbr.rel (%p262) target = $region48
      $region47: #{afno_forward.11} parent=39 // pred_region
        %p265 = scmp.lt.s32.totalorder %s14, 3
        %s266 = scalar_select %p265, %s14, 3
        %s267 = smul.addr %s266, 8
        %s268 = scalar_lea.vmem %s1, %s267
      $region48: #{afno_forward.11} parent=39 // pred_fallthru
        _
    $region40: #{afno_forward.11} parent=5 // pred_fallthru
      _
    %p269 = scmp.le.s32.totalorder 1, %s14
    %p270 = scmp.lt.s32.totalorder %s14, 5
    %p271 = pnand %p269, %p270
    %p272 = pneg %p271
    // Predicated region
    $region49: #{afno_forward.11} parent=5 // pred_check
      _
    $region50: #{afno_forward.11} parent=5 // pred_check_branch
      %274 = sbr.rel (%p271) target = $region52
    $region51: #{afno_forward.11} parent=5 // pred_region
      %s275 = ssub.s32 %s14, 1
      %p276 = scmp.lt.s32.totalorder %s19, 3
      %s277 = scalar_select %p276, %s19, 3
      %s278 = smul.addr %s277, 8
      %s279 = scalar_lea.vmem %s0, %s278
      %p280 = pneg %p40
      %p281 = pneg %p37
      %p282 = scmp.lt.s32.totalorder %s19, 3
      %s283 = scalar_select %p282, %s19, 3
      %s284 = smul.addr %s283, 8
      %s285 = scalar_lea.vmem %s1, %s284
      %p286 = pneg %p66
      %p287 = pneg %p63
      %p288 = pneg %p87
      %p289 = pneg %p84
      %p290 = pneg %p108
      %p291 = pneg %p105
      %p292 = pneg %p129
      %p293 = pneg %p126
      %p294 = pneg %p150
      %p295 = pneg %p147
      %p296 = pneg %p171
      %p297 = pneg %p168
      %p298 = pneg %p192
      %p299 = pneg %p189
      %p300 = pneg %p218
      %p301 = pneg %p215
      %p302 = scmp.lt.s32.totalorder %s19, 3
      %s303 = scalar_select %p302, %s19, 3
      %s304 = smul.addr %s303, 8
      %s305 = scalar_lea.vmem %s8, %s304
      %p306 = scmp.lt.s32.totalorder %s19, 3
      %s307 = scalar_select %p306, %s19, 3
      %s308 = smul.addr %s307, 8
      %s309 = scalar_lea.vmem %s0, %s308
      %p310 = scmp.lt.s32.totalorder %s19, 3
      %s311 = scalar_select %p310, %s19, 3
      %s312 = smul.addr %s311, 8
      %s313 = scalar_lea.vmem %s1, %s312
      %p314 = scmp.lt.s32.totalorder %s19, 3
      %s315 = scalar_select %p314, %s19, 3
      %s316 = smul.addr %s315, 8
      %s317 = scalar_lea.vmem %s8, %s316
      %v319 = vld [vmem:[%s309] sm:$0xff]
      %v320 = vld [vmem:[%s313] sm:$0xff]
      %v321 = vadd.f32 %v319, %v320
      %vm322 = vcmask 523264
      %v323 = vsel %vm322, %v321, 0.0
      %324 = vadd.xlane.f32.xlu0 %v323
      %v325 = vpop.xlane.xlu0 %324
      %v326 = vrcp.pop 64.0
      %v327 = vmul.f32 %v325, %v326
      %v328 = vsub.f32 %v321, %v327
      %v329 = vmul.f32 %v328, %v328
      %v330 = vsel %vm322, %v329, 0.0
      %331 = vadd.xlane.f32.xlu0 %v330
      %v332 = vpop.xlane.xlu0 %331
      %v333 = vmul.f32 %v332, %v326
      %v334 = vadd.f32 %v333, 1e-06
      %v335 = vrsqrt.pop %v334
      %v336 = vmul.f32 %v328, %v335
      %v337 = vld [vmem:[%s2] sm:$0x1]
      %v339 = vlaneseq
      %v340 = vshrl.u32 %v339, 7
      %v341 = vsub.s32 0, %v340
      %v342 = vrot.slane %v337, %v341
      %v344 = vmul.f32 %v336, %v342
      %v345 = vld [vmem:[%s3] sm:$0x1]
      %v347 = vlaneseq
      %v348 = vshrl.u32 %v347, 7
      %v349 = vsub.s32 0, %v348
      %v350 = vrot.slane %v345, %v349
      %v352 = vadd.f32 %v344, %v350
      %v353 = vpack.c.bf16 %v352, %v352
      %v354 = vld [vmem:[%s4] sm:$0xff]
      %v355 = vld [vmem:[%s4 + $0x8] sm:$0xff]
      %v356 = vld [vmem:[%s4 + $0x10] sm:$0xff]
      %v357 = vld [vmem:[%s4 + $0x18] sm:$0xff]
      %v358 = vld [vmem:[%s4 + $0x20] sm:$0xff]
      %v359 = vld [vmem:[%s4 + $0x28] sm:$0xff]
      %v360 = vld [vmem:[%s4 + $0x30] sm:$0xff]
      %v361 = vld [vmem:[%s4 + $0x38] sm:$0xff]
      %v362 = vld [vmem:[%s5] sm:$0x3]
      %v364 = vlaneseq
      %v365 = vshrl.u32 %v364, 7
      %v366 = vsub.s32 0, %v365
      %v367 = vrot.slane %v362, %v366
      %v368 = vlaneseq
      %v369 = vshrl.u32 %v368, 7
      %v370 = vsub.s32 1, %v369
      %v371 = vrot.slane %v362, %v370
      %v382 = vunpack.c.l.b16 %v354
      %v383 = vunpack.c.h.b16 %v354
      %v384 = vunpack.c.l.b16 %v355
      %v385 = vunpack.c.h.b16 %v355
      %v386 = vunpack.c.l.b16 %v356
      %v387 = vunpack.c.h.b16 %v356
      %v388 = vunpack.c.l.b16 %v357
      %v389 = vunpack.c.h.b16 %v357
      %v390 = vunpack.c.l.b16 %v358
      %v391 = vunpack.c.h.b16 %v358
      %v392 = vunpack.c.l.b16 %v359
      %v393 = vunpack.c.h.b16 %v359
      %v394 = vunpack.c.l.b16 %v360
      %v395 = vunpack.c.h.b16 %v360
      %v396 = vunpack.c.l.b16 %v361
      %v397 = vunpack.c.h.b16 %v361
      %v398 = vpack.c.b16 %v384, %v382
      %v399 = vpack.c.b16 %v385, %v383
      %v400 = vpack.c.b16 %v388, %v386
      %v401 = vpack.c.b16 %v389, %v387
      %v402 = vpack.c.b16 %v392, %v390
      %v403 = vpack.c.b16 %v393, %v391
      %v404 = vpack.c.b16 %v396, %v394
      %v405 = vpack.c.b16 %v397, %v395
      %v415 = vsel %vm322, %v353, 0
      %417 = vmatprep.subr.bf16.mxu0 %v399
      %418 = vmatpush1.bf16.msra.mxu0 %v398
      %419 = vmatprep.subr.bf16.mxu0 %v401
      %420 = vmatpush1.bf16.msra.mxu0 %v400
      %421 = vmatprep.subr.bf16.mxu0 %v403
      %422 = vmatpush1.bf16.msra.mxu0 %v402
      %423 = vmatprep.subr.bf16.mxu0 %v405
      %424 = vmatpush1.bf16.msra.mxu0 %v404
      %425 = vmatprep.subr.bf16.mxu0 0
      %426 = vmatpush1.bf16.msra.mxu0 0
      %427 = vmatprep.subr.bf16.mxu0 0
      %428 = vmatpush1.bf16.msra.mxu0 0
      %429 = vmatprep.subr.bf16.mxu0 0
      %430 = vmatpush1.bf16.msra.mxu0 0
      %431 = vmatprep.subr.bf16.mxu0 0
      %432 = vmatpush1.bf16.msra.mxu0 0
      %433 = vmatprep.subr.bf16.mxu0 0
      %434 = vmatpush1.bf16.msra.mxu0 0
      %435 = vmatprep.subr.bf16.mxu0 0
      %436 = vmatpush1.bf16.msra.mxu0 0
      %437 = vmatprep.subr.bf16.mxu0 0
      %438 = vmatpush1.bf16.msra.mxu0 0
      %439 = vmatprep.subr.bf16.mxu0 0
      %440 = vmatpush1.bf16.msra.mxu0 0
      %441 = vmatprep.subr.bf16.mxu0 0
      %442 = vmatpush1.bf16.msra.mxu0 0
      %443 = vmatprep.subr.bf16.mxu0 0
      %444 = vmatpush1.bf16.msra.mxu0 0
      %445 = vmatprep.subr.bf16.mxu0 0
      %446 = vmatpush1.bf16.msra.mxu0 0
      %447 = vmatprep.subr.bf16.mxu0 0
      %448 = vmatpush1.bf16.msra.mxu0 0
      %449 = vmatprep.mubr.bf16.mxu0 0
      %450 = vmatmul.mubr.bf16.gmra.mrb[0].mxu0 %v415
      %v451 = vpop.f32.mrb[0].mxu0
      %v452 = vadd.f32 %v367, %v451
      %v453 = vpop.f32.mrb[0].mxu0
      %v454 = vadd.f32 %v371, %v453
      %v455 = vpop.f32.mrb[0].mxu0
      %v456 = vpop.f32.mrb[0].mxu0
      %457 = vdwg.mxu0
      %v458 = vmul.f32 %v452, 0.5
      %v459 = vmul.f32 %v454, 0.5
      %v460 = vmul.f32 %v452, 0.044715
      %v461 = vmul.f32 %v454, 0.044715
      %v462 = vmul.f32 %v460, %v452
      %v463 = vmul.f32 %v461, %v454
      %v464 = vmul.f32 %v462, %v452
      %v465 = vmul.f32 %v463, %v454
      %v466 = vadd.f32 %v452, %v464
      %v467 = vadd.f32 %v454, %v465
      %v468 = vmul.f32 %v466, 0.7978846
      %v469 = vmul.f32 %v467, 0.7978846
      %v470 = vtanh.pop %v468
      %v471 = vtanh.pop %v469
      %v472 = vadd.f32 %v470, 1.0
      %v473 = vadd.f32 %v471, 1.0
      %v474 = vmul.f32 %v458, %v472
      %v475 = vmul.f32 %v459, %v473
      %v476 = vpack.c.bf16 %v474, %v474
      %v477 = vpack.c.bf16 %v475, %v475
      %v478 = vld [vmem:[%s6] sm:$0xf]
      %v479 = vld [vmem:[%s6 + $0x4] sm:$0xf]
      %v480 = vld [vmem:[%s6 + $0x8] sm:$0xf]
      %v481 = vld [vmem:[%s6 + $0xc] sm:$0xf]
      %v482 = vld [vmem:[%s6 + $0x10] sm:$0xf]
      %v483 = vld [vmem:[%s6 + $0x14] sm:$0xf]
      %v484 = vld [vmem:[%s6 + $0x18] sm:$0xf]
      %v485 = vld [vmem:[%s6 + $0x1c] sm:$0xf]
      %v486 = vld [vmem:[%s6 + $0x20] sm:$0xf]
      %v487 = vld [vmem:[%s6 + $0x24] sm:$0xf]
      %v488 = vld [vmem:[%s6 + $0x28] sm:$0xf]
      %v489 = vld [vmem:[%s6 + $0x2c] sm:$0xf]
      %v490 = vld [vmem:[%s6 + $0x30] sm:$0xf]
      %v491 = vld [vmem:[%s6 + $0x34] sm:$0xf]
      %v492 = vld [vmem:[%s6 + $0x38] sm:$0xf]
      %v493 = vld [vmem:[%s6 + $0x3c] sm:$0xf]
      %v494 = vld [vmem:[%s6 + $0x40] sm:$0xf]
      %v495 = vld [vmem:[%s6 + $0x44] sm:$0xf]
      %v496 = vld [vmem:[%s6 + $0x48] sm:$0xf]
      %v497 = vld [vmem:[%s6 + $0x4c] sm:$0xf]
      %v498 = vld [vmem:[%s6 + $0x50] sm:$0xf]
      %v499 = vld [vmem:[%s6 + $0x54] sm:$0xf]
      %v500 = vld [vmem:[%s6 + $0x58] sm:$0xf]
      %v501 = vld [vmem:[%s6 + $0x5c] sm:$0xf]
      %v502 = vld [vmem:[%s6 + $0x60] sm:$0xf]
      %v503 = vld [vmem:[%s6 + $0x64] sm:$0xf]
      %v504 = vld [vmem:[%s6 + $0x68] sm:$0xf]
      %v505 = vld [vmem:[%s6 + $0x6c] sm:$0xf]
      %v506 = vld [vmem:[%s6 + $0x70] sm:$0xf]
      %v507 = vld [vmem:[%s6 + $0x74] sm:$0xf]
      %v508 = vld [vmem:[%s6 + $0x78] sm:$0xf]
      %v509 = vld [vmem:[%s6 + $0x7c] sm:$0xf]
      %v510 = vld [vmem:[%s7] sm:$0x1]
      %v512 = vlaneseq
      %v513 = vshrl.u32 %v512, 7
      %v514 = vsub.s32 0, %v513
      %v515 = vrot.slane %v510, %v514
      %v549 = vunpack.c.l.b16 %v478
      %v550 = vunpack.c.l.b16 %v479
      %v551 = vunpack.c.l.b16 %v480
      %v552 = vunpack.c.l.b16 %v481
      %v553 = vunpack.c.l.b16 %v482
      %v554 = vunpack.c.l.b16 %v483
      %v555 = vunpack.c.l.b16 %v484
      %v556 = vunpack.c.l.b16 %v485
      %v557 = vunpack.c.l.b16 %v486
      %v558 = vunpack.c.l.b16 %v487
      %v559 = vunpack.c.l.b16 %v488
      %v560 = vunpack.c.l.b16 %v489
      %v561 = vunpack.c.l.b16 %v490
      %v562 = vunpack.c.l.b16 %v491
      %v563 = vunpack.c.l.b16 %v492
      %v564 = vunpack.c.l.b16 %v493
      %v565 = vunpack.c.l.b16 %v494
      %v566 = vunpack.c.l.b16 %v495
      %v567 = vunpack.c.l.b16 %v496
      %v568 = vunpack.c.l.b16 %v497
      %v569 = vunpack.c.l.b16 %v498
      %v570 = vunpack.c.l.b16 %v499
      %v571 = vunpack.c.l.b16 %v500
      %v572 = vunpack.c.l.b16 %v501
      %v573 = vunpack.c.l.b16 %v502
      %v574 = vunpack.c.l.b16 %v503
      %v575 = vunpack.c.l.b16 %v504
      %v576 = vunpack.c.l.b16 %v505
      %v577 = vunpack.c.l.b16 %v506
      %v578 = vunpack.c.l.b16 %v507
      %v579 = vunpack.c.l.b16 %v508
      %v580 = vunpack.c.l.b16 %v509
      %v581 = vpack.c.b16 %v550, %v549
      %v582 = vpack.c.b16 %v552, %v551
      %v583 = vpack.c.b16 %v554, %v553
      %v584 = vpack.c.b16 %v556, %v555
      %v585 = vpack.c.b16 %v558, %v557
      %v586 = vpack.c.b16 %v560, %v559
      %v587 = vpack.c.b16 %v562, %v561
      %v588 = vpack.c.b16 %v564, %v563
      %v589 = vpack.c.b16 %v566, %v565
      %v590 = vpack.c.b16 %v568, %v567
      %v591 = vpack.c.b16 %v570, %v569
      %v592 = vpack.c.b16 %v572, %v571
      %v593 = vpack.c.b16 %v574, %v573
      %v594 = vpack.c.b16 %v576, %v575
      %v595 = vpack.c.b16 %v578, %v577
      %v596 = vpack.c.b16 %v580, %v579
      %613 = vmatprep.subr.bf16.mxu0 0
      %614 = vmatpush1.bf16.msra.mxu0 %v581
      %615 = vmatprep.subr.bf16.mxu0 0
      %616 = vmatpush1.bf16.msra.mxu0 %v582
      %617 = vmatprep.subr.bf16.mxu0 0
      %618 = vmatpush1.bf16.msra.mxu0 %v583
      %619 = vmatprep.subr.bf16.mxu0 0
      %620 = vmatpush1.bf16.msra.mxu0 %v584
      %621 = vmatprep.subr.bf16.mxu0 0
      %622 = vmatpush1.bf16.msra.mxu0 %v585
      %623 = vmatprep.subr.bf16.mxu0 0
      %624 = vmatpush1.bf16.msra.mxu0 %v586
      %625 = vmatprep.subr.bf16.mxu0 0
      %626 = vmatpush1.bf16.msra.mxu0 %v587
      %627 = vmatprep.subr.bf16.mxu0 0
      %628 = vmatpush1.bf16.msra.mxu0 %v588
      %629 = vmatprep.subr.bf16.mxu0 0
      %630 = vmatpush1.bf16.msra.mxu0 %v589
      %631 = vmatprep.subr.bf16.mxu0 0
      %632 = vmatpush1.bf16.msra.mxu0 %v590
      %633 = vmatprep.subr.bf16.mxu0 0
      %634 = vmatpush1.bf16.msra.mxu0 %v591
      %635 = vmatprep.subr.bf16.mxu0 0
      %636 = vmatpush1.bf16.msra.mxu0 %v592
      %637 = vmatprep.subr.bf16.mxu0 0
      %638 = vmatpush1.bf16.msra.mxu0 %v593
      %639 = vmatprep.subr.bf16.mxu0 0
      %640 = vmatpush1.bf16.msra.mxu0 %v594
      %641 = vmatprep.subr.bf16.mxu0 0
      %642 = vmatpush1.bf16.msra.mxu0 %v595
      %643 = vmatprep.subr.bf16.mxu0 0
      %644 = vmatpush1.bf16.msra.mxu0 %v596
      %645 = vmatprep.mubr.bf16.mxu0 %v477
      %646 = vmatmul.mubr.bf16.gmra.mrb[0].mxu0 %v476
      %v647 = vpop.f32.mrb[0].mxu0
      %v648 = vadd.f32 %v515, %v647
      %v649 = vpop.f32.mrb[0].mxu0
      %v650 = vpop.f32.mrb[0].mxu0
      %v651 = vpop.f32.mrb[0].mxu0
      %652 = vdwg.mxu0
      %v653 = vadd.f32 %v321, %v648
      %654 = vst.msk [vmem:[%s317] sm:$0xff] %vm322, %v653
      %p655 = scmp.lt.s32.totalorder %s19, 3
      %s656 = scalar_select %p655, %s19, 3
      %s657 = smul.addr %s656, 8
      %s658 = scalar_lea.vmem %s8, %s657
      // Predicated region
      $region53: #{afno_forward.11} parent=51 // pred_check
        %p659 = pneg %p215
      $region54: #{afno_forward.11} parent=51 // pred_check_branch
        %661 = sbr.rel (%p659) target = $region56
      $region55: #{afno_forward.11} parent=51 // pred_region
        _
      $region56: #{afno_forward.11} parent=51 // pred_fallthru
        _
    $region52: #{afno_forward.11} parent=5 // pred_fallthru
      _
    %p662 = scmp.le.s32.totalorder 2, %s14
    // Predicated region
    $region57: #{afno_forward.11} parent=5 // pred_check
      %p663 = pneg %p662
    $region58: #{afno_forward.11} parent=5 // pred_check_branch
      %665 = sbr.rel (%p663) target = $region60
    $region59: #{afno_forward.11} parent=5 // pred_region
      %s666 = ssub.s32 %s14, 2
      // Predicated region
      $region61: #{afno_forward.11} parent=59 // pred_check
        %p667 = pneg %p221
      $region62: #{afno_forward.11} parent=59 // pred_check_branch
        %669 = sbr.rel (%p667) target = $region64
      $region63: #{afno_forward.11} parent=59 // pred_region
        %p670 = scmp.lt.s32.totalorder %s20, 3
        %s671 = scalar_select %p670, %s20, 3
        %s672 = smul.addr %s671, 8
        %s673 = scalar_lea.vmem %s8, %s672
      $region64: #{afno_forward.11} parent=59 // pred_fallthru
        _
    $region60: #{afno_forward.11} parent=5 // pred_fallthru
      _
  $region6: #{afno_forward.11} parent=0 // loop_footer
    %s18 = sadd.s32 1, %s14
  $region7: #{afno_forward.11} parent=0 // loop_footer_branch
    %13 = sbr.rel target = $region3
  $region8: #{afno_forward.11} parent=0 // loop_exit
    _

</llo_original>
